<compile_context>
chip_gen: v5e
topology: v5e:2x2
jax: 0.10.0
libtpu: 0.0.40
codegen_flags: <defaults>
</compile_context>

<pallas_src>
import numpy as np
import jax
import jax.numpy as jnp
from jax.experimental import pallas as pl
from jax.experimental.pallas import tpu as pltpu

# ----------------------------- configuration --------------------------------
DIM = 32                      # embedding dim
NUM_HEADS = 4
HEAD_DIM = DIM // NUM_HEADS
SCALE = HEAD_DIM ** -0.5
X_SIZE = (8, 8)               # spatial shape of x tokens (queries)
Z_SIZE = (4, 4)               # spatial shape of z tokens (keys / values)
LX = X_SIZE[0] * X_SIZE[1]    # 64
LZ = Z_SIZE[0] * Z_SIZE[1]    # 16
MLP_HIDDEN = int(DIM * 4.0)   # 128
DIM_LOC = 4                   # position_encoder_dim_locality
GROUPS = DIM // DIM_LOC
KSIZE = 3                     # position_encoder_spatial_locality (padding = 1)
LN_EPS = 1e-5
B = 2

BLX = B * LX                  # 128  batch-stacked query tokens
BLZ = B * LZ                  # 32   batch-stacked key/value tokens
NHK = NUM_HEADS * BLZ         # 128  block-diagonal key columns

_GELU_C = 0.7978845608028654  # sqrt(2/pi)

# KSIZE == 3 (|roll| <= W+1) guarantees every cross-image / cross-batch roll
# pickup is zeroed by the edge-validity mask -- do not change without rework.
assert KSIZE == 3 and DIM % DIM_LOC == 0 and DIM % NUM_HEADS == 0

# ---- f32 slab row layout (each vector gets an 8-row aligned slot) ----------
FR_GZ1, FR_BZ1, FR_GX1, FR_BX1 = 0, 8, 16, 24
FR_BQ, FR_BK, FR_BV = 32, 40, 48
FR_QPB, FR_KPB = 56, 64
FR_BPROJ, FR_GX2, FR_BX2 = 72, 80, 88
FR_B1, FR_B2 = 96, 104
FR_ADDMASK = 112                                   # (BLX, NHK) additive mask
FSLAB_ROWS = FR_ADDMASK + BLX                      # 240

# ---- bf16 width-32 slab row layout (offsets are multiples of 16) -----------
WR_WQ, WR_WK, WR_WV, WR_WPROJ = 0, 32, 64, 96
WR_W2 = 128
WR_QPW = WR_W2 + MLP_HIDDEN                        # 256: 9 taps x DIM rows
WR_KPW = WR_QPW + KSIZE * KSIZE * DIM              # 544
WR_HEADMASK = WR_KPW + KSIZE * KSIZE * DIM         # 832
WR_MASKQ = WR_HEADMASK + NHK                       # 960: 9 taps x BLX rows
WR_MASKK = WR_MASKQ + KSIZE * KSIZE * BLX          # 2112: 9 taps x BLZ rows
W32_ROWS = WR_MASKK + KSIZE * KSIZE * BLZ          # 2400

# ---- bf16 width-128 slab row layout -----------------------------------------
W128_W1 = 0
W128_GONES = W128_W1 + DIM                         # 32
W128_ROWS = W128_GONES + NHK                       # 160


# ------------------------------ kernel helpers -------------------------------
def _layernorm(v, g, b):
    mu = jnp.mean(v, axis=-1, keepdims=True)
    var = jnp.mean((v - mu) ** 2, axis=-1, keepdims=True)
    return (v - mu) * jax.lax.rsqrt(var + LN_EPS) * g + b


def _gelu_tanh(x):
    # TODO(synk): tanh-form GELU (EUP); the PyTorch module uses exact erf GELU.
    return 0.5 * x * (1.0 + jnp.tanh(_GELU_C * (x + 0.044715 * x * x * x)))


# --------------------------------- kernel ------------------------------------
def decoder_kernel(x_ref, z_ref, fvec_ref, w32_ref, w128_ref, o_ref):
    f32, bf16 = jnp.float32, jnp.bfloat16

    def vec(row, width=DIM):
        return fvec_ref[row:row + 1, 0:width]          # static slice, free

    x = x_ref[...]                                     # (BLX, DIM) f32
    z = z_ref[...]                                     # (BLZ, DIM) f32

    xn = _layernorm(x, vec(FR_GX1), vec(FR_BX1)).astype(bf16)
    zn = _layernorm(z, vec(FR_GZ1), vec(FR_BZ1)).astype(bf16)

    wq = w32_ref[WR_WQ:WR_WQ + DIM, :]                 # SCALE folded in
    wk = w32_ref[WR_WK:WR_WK + DIM, :]
    wv = w32_ref[WR_WV:WR_WV + DIM, :]

    q = jnp.dot(xn, wq, preferred_element_type=f32) + vec(FR_BQ)
    k = jnp.dot(zn, wk, preferred_element_type=f32) + vec(FR_BK)
    v = jnp.dot(zn, wv, preferred_element_type=f32) + vec(FR_BV)

    # ---- locally-enhanced position encoding (grouped 3x3 conv) --------------
    # 9 token rolls (XLU) * precomputed edge masks, accumulated through 9
    # bf16 (BL,DIM)@(DIM,DIM) dots (acc += dot -> MRB accumulation on v7x).
    def pos_enc(t, w_base, m_base, hw):
        H, W = hw
        BL = t.shape[0]
        acc = None
        for kh in range(KSIZE):
            for kw in range(KSIZE):
                tap = kh * KSIZE + kw
                delta = (kh - 1) * W + (kw - 1)
                shifted = t if delta == 0 else pltpu.roll(t, shift=(-delta) % BL, axis=0)
                mask = w32_ref[m_base + tap * BL:m_base + (tap + 1) * BL, :]
                wt = w32_ref[w_base + tap * DIM:w_base + (tap + 1) * DIM, :]
                d = jnp.dot(shifted.astype(bf16) * mask, wt,
                            preferred_element_type=f32)
                acc = d if acc is None else acc + d
        return acc

    q = q + pos_enc(q, WR_QPW, WR_MASKQ, X_SIZE) + vec(FR_QPB)
    k = k + pos_enc(k, WR_KPW, WR_MASKK, Z_SIZE) + vec(FR_KPB)

    # ---- fused multi-head / multi-batch cross attention ----------------------
    head_mask = w32_ref[WR_HEADMASK:WR_HEADMASK + NHK, :]        # (NHK, DIM) bf16
    k_b = k.astype(bf16)
    v_b = v.astype(bf16)
    k_bd = jnp.concatenate([k_b] * NUM_HEADS, axis=0) * head_mask
    v_bd = jnp.concatenate([v_b] * NUM_HEADS, axis=0) * head_mask

    qs = q.astype(bf16)                  # SCALE already folded into wq/bq/qpb
    logits = jax.lax.dot_general(qs, k_bd, (((1,), (1,)), ((), ())),
                                 preferred_element_type=f32)     # (BLX, NHK)
    # queries may only attend to keys of the same batch element (additive mask)
    logits = logits + fvec_ref[FR_ADDMASK:FR_ADDMASK + BLX, :]

    # per-(query, head) softmax: full-row max is a valid stabilizer for every
    # head group; per-group sums are broadcast back by one bf16 matmul with a
    # block-diagonal ones matrix.
    m = jnp.max(logits, axis=-1, keepdims=True)
    e = jnp.exp(logits - m)                                      # masked -> 0
    e_b = e.astype(bf16)
    group_ones = w128_ref[W128_GONES:W128_GONES + NHK, :]        # bf16
    denom = jnp.dot(e_b, group_ones, preferred_element_type=f32) + 1e-30
    p = e_b * pl.reciprocal(denom, approx=True).astype(bf16)

    attn = jnp.dot(p, v_bd, preferred_element_type=f32)          # (BLX, DIM)
    wproj = w32_ref[WR_WPROJ:WR_WPROJ + DIM, :]
    attn = jnp.dot(attn.astype(bf16), wproj,
                   preferred_element_type=f32) + vec(FR_BPROJ)

    # ---- residual + MLP -------------------------------------------------------
    x1 = x + attn
    x2n = _layernorm(x1, vec(FR_GX2), vec(FR_BX2)).astype(bf16)
    w1 = w128_ref[W128_W1:W128_W1 + DIM, :]
    h = jnp.dot(x2n, w1, preferred_element_type=f32) + vec(FR_B1, MLP_HIDDEN)
    h = _gelu_tanh(h).astype(bf16)
    w2 = w32_ref[WR_W2:WR_W2 + MLP_HIDDEN, :]
    mlp = jnp.dot(h, w2, preferred_element_type=f32) + vec(FR_B2)
    o_ref[...] = x1 + mlp


# ------------------------------- wrapper --------------------------------------
def cross_attention_decoder(z, x, kernel_params):
    # Single invocation, no grid: whole working set (< 1 MiB) lives in VMEM.
    fvec, w32, w128 = kernel_params
    out = pl.pallas_call(
        decoder_kernel,
        out_shape=jax.ShapeDtypeStruct((BLX, DIM), jnp.float32),
    )(x.reshape(BLX, DIM), z.reshape(BLZ, DIM), fvec, w32, w128)
    return out.reshape(B, LX, DIM)


# --------------------------- parameter plumbing --------------------------------
def expand_grouped_conv_taps(w_oihw):
    """torch grouped Conv2d weight (C, C/G, 3, 3) -> (9, DIM, DIM) per-tap mixers."""
    w = np.asarray(w_oihw, np.float32)
    c_out, gin = w.shape[0], w.shape[1]
    out = np.zeros((KSIZE * KSIZE, DIM, DIM), np.float32)
    for co in range(c_out):
        g = co // gin                      # out-channels per group == gin here
        for cil in range(gin):
            ci = g * gin + cil
            for kh in range(KSIZE):
                for kw in range(KSIZE):
                    out[kh * KSIZE + kw, ci, co] = w[co, cil, kh, kw]
    return out


def conv_validity_masks(hw):
    """Per-tap (9, B*L) {0,1} masks: 1 where the rolled neighbour stays inside
    the token's own image (which also excludes every cross-batch pickup)."""
    H, W = hw
    L = H * W
    tok = np.arange(B * L)
    l = tok % L
    hh, ww = l // W, l % W
    masks = np.zeros((KSIZE * KSIZE, B * L), np.float32)
    for kh in range(KSIZE):
        for kw in range(KSIZE):
            dh, dw = kh - 1, kw - 1
            valid = ((hh + dh >= 0) & (hh + dh < H) &
                     (ww + dw >= 0) & (ww + dw < W))
            masks[kh * KSIZE + kw] = valid.astype(np.float32)
    return masks


def make_kernel_params(p):
    # ---- f32 vector / mask slab ------------------------------------------------
    fslab = np.zeros((FSLAB_ROWS, 128), np.float32)

    def put(row, vv):
        vv = np.asarray(vv, np.float32).reshape(-1)
        fslab[row, :vv.shape[0]] = vv

    put(FR_GZ1, p['gz1']); put(FR_BZ1, p['bz1'])
    put(FR_GX1, p['gx1']); put(FR_BX1, p['bx1'])
    put(FR_BQ, np.asarray(p['bq'], np.float32) * SCALE)           # SCALE folded
    put(FR_BK, p['bkv'][:, :DIM]); put(FR_BV, p['bkv'][:, DIM:])
    put(FR_QPB, np.asarray(p['q_conv_b'], np.float32) * SCALE)    # SCALE folded
    put(FR_KPB, p['k_conv_b'])
    put(FR_BPROJ, p['bproj'])
    put(FR_GX2, p['gx2']); put(FR_BX2, p['bx2'])
    put(FR_B1, p['b1']); put(FR_B2, p['b2'])
    qb = np.arange(BLX)[:, None] // LX
    kb = (np.arange(NHK)[None, :] % BLZ) // LZ
    fslab[FR_ADDMASK:FR_ADDMASK + BLX, :NHK] = np.where(qb == kb, 0.0, -1e30)

    # ---- bf16 width-32 weight / mask slab ---------------------------------------
    w32 = np.zeros((W32_ROWS, DIM), np.float32)
    w32[WR_WQ:WR_WQ + DIM] = np.asarray(p['wq'], np.float32) * SCALE   # SCALE folded
    w32[WR_WK:WR_WK + DIM] = np.asarray(p['wkv'], np.float32)[:, :DIM]
    w32[WR_WV:WR_WV + DIM] = np.asarray(p['wkv'], np.float32)[:, DIM:]
    w32[WR_WPROJ:WR_WPROJ + DIM] = np.asarray(p['wproj'], np.float32)
    w32[WR_W2:WR_W2 + MLP_HIDDEN] = np.asarray(p['w2'], np.float32)
    w32[WR_QPW:WR_QPW + KSIZE * KSIZE * DIM] = \
        expand_grouped_conv_taps(p['q_conv_w']).reshape(-1, DIM)
    w32[WR_KPW:WR_KPW + KSIZE * KSIZE * DIM] = \
        expand_grouped_conv_taps(p['k_conv_w']).reshape(-1, DIM)
    rr = np.arange(NHK)[:, None] // BLZ
    cc = np.arange(DIM)[None, :] // HEAD_DIM
    w32[WR_HEADMASK:WR_HEADMASK + NHK] = (rr == cc).astype(np.float32)
    mq = conv_validity_masks(X_SIZE).reshape(-1, 1)                    # (9*BLX, 1)
    mk = conv_validity_masks(Z_SIZE).reshape(-1, 1)                    # (9*BLZ, 1)
    w32[WR_MASKQ:WR_MASKQ + KSIZE * KSIZE * BLX] = np.repeat(mq, DIM, axis=1)
    w32[WR_MASKK:WR_MASKK + KSIZE * KSIZE * BLZ] = np.repeat(mk, DIM, axis=1)

    # ---- bf16 width-128 slab ------------------------------------------------------
    w128 = np.zeros((W128_ROWS, 128), np.float32)
    w128[W128_W1:W128_W1 + DIM] = np.asarray(p['w1'], np.float32)
    gr = np.arange(NHK)[:, None] // BLZ
    gc = np.arange(NHK)[None, :] // BLZ
    w128[W128_GONES:W128_GONES + NHK] = (gr == gc).astype(np.float32)

    return (jnp.asarray(fslab, jnp.float32),
            jnp.asarray(w32, jnp.bfloat16),
            jnp.asarray(w128, jnp.bfloat16))


def init_params(key):
    keys = iter(jax.random.split(key, 32))

    def nrm(shape, scale):
        return jax.random.normal(next(keys), shape, dtype=jnp.float32) * scale

    return dict(
        gz1=1.0 + nrm((1, DIM), 0.02), bz1=nrm((1, DIM), 0.02),
        gx1=1.0 + nrm((1, DIM), 0.02), bx1=nrm((1, DIM), 0.02),
        wq=nrm((DIM, DIM), 0.08), bq=nrm((1, DIM), 0.02),
        wkv=nrm((DIM, 2 * DIM), 0.08), bkv=nrm((1, 2 * DIM), 0.02),
        q_conv_w=nrm((DIM, DIM_LOC, KSIZE, KSIZE), 0.1), q_conv_b=nrm((DIM,), 0.02),
        k_conv_w=nrm((DIM, DIM_LOC, KSIZE, KSIZE), 0.1), k_conv_b=nrm((DIM,), 0.02),
        wproj=nrm((DIM, DIM), 0.08), bproj=nrm((1, DIM), 0.02),
        gx2=1.0 + nrm((1, DIM), 0.02), bx2=nrm((1, DIM), 0.02),
        w1=nrm((DIM, MLP_HIDDEN), 0.08), b1=nrm((1, MLP_HIDDEN), 0.02),
        w2=nrm((MLP_HIDDEN, DIM), 0.08), b2=nrm((1, DIM), 0.02),
    )


# ------------------------------ JAX reference ----------------------------------
def reference(z, x, p):
    def ln(v, g, b):
        mu = jnp.mean(v, -1, keepdims=True)
        var = jnp.mean((v - mu) ** 2, -1, keepdims=True)
        return (v - mu) / jnp.sqrt(var + LN_EPS) * g + b

    zn = ln(z, p['gz1'], p['bz1'])
    xn = ln(x, p['gx1'], p['bx1'])
    Q = xn @ p['wq'] + p['bq']
    KV = zn @ p['wkv'] + p['bkv']
    K, V = KV[..., :DIM], KV[..., DIM:]

    def grouped_conv(tokens, hw, w, b):
        Bn, L, C = tokens.shape
        H, W = hw
        img = jnp.transpose(tokens, (0, 2, 1)).reshape(Bn, C, H, W)
        out = jax.lax.conv_general_dilated(
            img, w, window_strides=(1, 1), padding=((1, 1), (1, 1)),
            dimension_numbers=('NCHW', 'OIHW', 'NCHW'),
            feature_group_count=GROUPS)
        out = out + b.reshape(1, C, 1, 1)
        return jnp.transpose(out.reshape(Bn, C, L), (0, 2, 1))

    q_enc = grouped_conv(Q, X_SIZE, p['q_conv_w'], p['q_conv_b'])
    k_enc = grouped_conv(K, Z_SIZE, p['k_conv_w'], p['k_conv_b'])

    Qh = (Q + q_enc).reshape(B, LX, NUM_HEADS, HEAD_DIM).transpose(0, 2, 1, 3)
    Kh = (K + k_enc).reshape(B, LZ, NUM_HEADS, HEAD_DIM).transpose(0, 2, 1, 3)
    Vh = V.reshape(B, LZ, NUM_HEADS, HEAD_DIM).transpose(0, 2, 1, 3)
    attn = jnp.einsum('bhqd,bhkd->bhqk', Qh * SCALE, Kh)
    attn = jax.nn.softmax(attn, axis=-1)
    out = jnp.einsum('bhqk,bhkd->bhqd', attn, Vh)
    out = out.transpose(0, 2, 1, 3).reshape(B, LX, DIM)
    out = out @ p['wproj'] + p['bproj']
    x1 = x + out
    x2n = ln(x1, p['gx2'], p['bx2'])
    h1 = jax.nn.gelu(x2n @ p['w1'] + p['b1'], approximate=False)
    return x1 + h1 @ p['w2'] + p['b2']


# ---------------------------------- main ----------------------------------------
if __name__ == "__main__":
    key = jax.random.PRNGKey(0)
    kp, kz, kx = jax.random.split(key, 3)
    params = init_params(kp)
    z = jax.random.normal(kz, (B, LZ, DIM), dtype=jnp.float32)   # template tokens
    x = jax.random.normal(kx, (B, LX, DIM), dtype=jnp.float32)   # search tokens

    out = cross_attention_decoder(z, x, make_kernel_params(params))
    out = jax.block_until_ready(out)
    assert out.shape == (B, LX, DIM)

    with jax.default_matmul_precision("highest"):
        ref = jax.block_until_ready(reference(z, x, params))
    max_err = float(jnp.max(jnp.abs(out - ref)))
    assert max_err < 2e-2, f"mismatch vs reference: max abs err = {max_err}"
    print("KERNEL_OK")
</pallas_src>

<mosaic_0001>
module attributes {stable_mosaic.version = 11 : i64} {
  func.func @decoder_kernel(%arg0: memref<128x32xf32, #tpu.memory_space<vmem>>, %arg1: memref<32x32xf32, #tpu.memory_space<vmem>>, %arg2: memref<240x128xf32, #tpu.memory_space<vmem>>, %arg3: memref<2400x32xbf16, #tpu.memory_space<vmem>>, %arg4: memref<160x128xbf16, #tpu.memory_space<vmem>>, %arg5: memref<128x32xf32, #tpu.memory_space<vmem>>) attributes {dimension_semantics = [], scalar_prefetch = 0 : i64, scratch_operands = 0 : i64, tpu.core_type = #tpu.core_type<tc>} {
    %c0 = arith.constant 0 : index
    %c0_0 = arith.constant 0 : index
    %0 = vector.load %arg0[%c0, %c0_0] : memref<128x32xf32, #tpu.memory_space<vmem>>, vector<128x32xf32>
    %c0_1 = arith.constant 0 : index
    %c0_2 = arith.constant 0 : index
    %1 = vector.load %arg1[%c0_1, %c0_2] : memref<32x32xf32, #tpu.memory_space<vmem>>, vector<32x32xf32>
    %c16 = arith.constant 16 : index
    %c0_3 = arith.constant 0 : index
    %2 = vector.load %arg2[%c16, %c0_3] : memref<240x128xf32, #tpu.memory_space<vmem>>, vector<1x32xf32>
    %c24 = arith.constant 24 : index
    %c0_4 = arith.constant 0 : index
    %3 = vector.load %arg2[%c24, %c0_4] : memref<240x128xf32, #tpu.memory_space<vmem>>, vector<1x32xf32>
    %cst = arith.constant dense<0.000000e+00> : vector<128xf32>
    %4 = vector.multi_reduction <add>, %0, %cst [1] : vector<128x32xf32> to vector<128xf32>
    %5 = vector.shape_cast %4 : vector<128xf32> to vector<128x1xf32>
    %cst_5 = arith.constant 3.200000e+01 : f32
    %6 = vector.broadcast %cst_5 : f32 to vector<128x1xf32>
    %7 = arith.divf %5, %6 : vector<128x1xf32>
    %8 = vector.broadcast %7 : vector<128x1xf32> to vector<128x32xf32>
    %9 = arith.subf %0, %8 : vector<128x32xf32>
    %10 = arith.mulf %9, %9 : vector<128x32xf32>
    %cst_6 = arith.constant dense<0.000000e+00> : vector<128xf32>
    %11 = vector.multi_reduction <add>, %10, %cst_6 [1] : vector<128x32xf32> to vector<128xf32>
    %12 = vector.shape_cast %11 : vector<128xf32> to vector<128x1xf32>
    %cst_7 = arith.constant 3.200000e+01 : f32
    %13 = vector.broadcast %cst_7 : f32 to vector<128x1xf32>
    %14 = arith.divf %12, %13 : vector<128x1xf32>
    %15 = vector.broadcast %7 : vector<128x1xf32> to vector<128x32xf32>
    %16 = arith.subf %0, %15 : vector<128x32xf32>
    %cst_8 = arith.constant 9.99999974E-6 : f32
    %17 = vector.broadcast %cst_8 : f32 to vector<128x1xf32>
    %18 = arith.addf %14, %17 : vector<128x1xf32>
    %19 = math.rsqrt %18 : vector<128x1xf32>
    %20 = vector.broadcast %19 : vector<128x1xf32> to vector<128x32xf32>
    %21 = arith.mulf %16, %20 : vector<128x32xf32>
    %22 = vector.broadcast %2 : vector<1x32xf32> to vector<128x32xf32>
    %23 = arith.mulf %21, %22 : vector<128x32xf32>
    %24 = vector.broadcast %3 : vector<1x32xf32> to vector<128x32xf32>
    %25 = arith.addf %23, %24 : vector<128x32xf32>
    %26 = arith.truncf %25 : vector<128x32xf32> to vector<128x32xbf16>
    %c0_9 = arith.constant 0 : index
    %c0_10 = arith.constant 0 : index
    %27 = vector.load %arg2[%c0_9, %c0_10] : memref<240x128xf32, #tpu.memory_space<vmem>>, vector<1x32xf32>
    %c8 = arith.constant 8 : index
    %c0_11 = arith.constant 0 : index
    %28 = vector.load %arg2[%c8, %c0_11] : memref<240x128xf32, #tpu.memory_space<vmem>>, vector<1x32xf32>
    %cst_12 = arith.constant dense<0.000000e+00> : vector<32xf32>
    %29 = vector.multi_reduction <add>, %1, %cst_12 [1] : vector<32x32xf32> to vector<32xf32>
    %30 = vector.shape_cast %29 : vector<32xf32> to vector<32x1xf32>
    %cst_13 = arith.constant 3.200000e+01 : f32
    %31 = vector.broadcast %cst_13 : f32 to vector<32x1xf32>
    %32 = arith.divf %30, %31 : vector<32x1xf32>
    %33 = vector.broadcast %32 : vector<32x1xf32> to vector<32x32xf32>
    %34 = arith.subf %1, %33 : vector<32x32xf32>
    %35 = arith.mulf %34, %34 : vector<32x32xf32>
    %cst_14 = arith.constant dense<0.000000e+00> : vector<32xf32>
    %36 = vector.multi_reduction <add>, %35, %cst_14 [1] : vector<32x32xf32> to vector<32xf32>
    %37 = vector.shape_cast %36 : vector<32xf32> to vector<32x1xf32>
    %cst_15 = arith.constant 3.200000e+01 : f32
    %38 = vector.broadcast %cst_15 : f32 to vector<32x1xf32>
    %39 = arith.divf %37, %38 : vector<32x1xf32>
    %40 = vector.broadcast %32 : vector<32x1xf32> to vector<32x32xf32>
    %41 = arith.subf %1, %40 : vector<32x32xf32>
    %cst_16 = arith.constant 9.99999974E-6 : f32
    %42 = vector.broadcast %cst_16 : f32 to vector<32x1xf32>
    %43 = arith.addf %39, %42 : vector<32x1xf32>
    %44 = math.rsqrt %43 : vector<32x1xf32>
    %45 = vector.broadcast %44 : vector<32x1xf32> to vector<32x32xf32>
    %46 = arith.mulf %41, %45 : vector<32x32xf32>
    %47 = vector.broadcast %27 : vector<1x32xf32> to vector<32x32xf32>
    %48 = arith.mulf %46, %47 : vector<32x32xf32>
    %49 = vector.broadcast %28 : vector<1x32xf32> to vector<32x32xf32>
    %50 = arith.addf %48, %49 : vector<32x32xf32>
    %51 = arith.truncf %50 : vector<32x32xf32> to vector<32x32xbf16>
    %c0_17 = arith.constant 0 : index
    %c0_18 = arith.constant 0 : index
    %52 = vector.load %arg3[%c0_17, %c0_18] : memref<2400x32xbf16, #tpu.memory_space<vmem>>, vector<32x32xbf16>
    %c32 = arith.constant 32 : index
    %c0_19 = arith.constant 0 : index
    %53 = vector.load %arg3[%c32, %c0_19] : memref<2400x32xbf16, #tpu.memory_space<vmem>>, vector<32x32xbf16>
    %c64 = arith.constant 64 : index
    %c0_20 = arith.constant 0 : index
    %54 = vector.load %arg3[%c64, %c0_20] : memref<2400x32xbf16, #tpu.memory_space<vmem>>, vector<32x32xbf16>
    %cst_21 = arith.constant dense<0.000000e+00> : vector<128x32xf32>
    %55 = tpu.matmul %26, %52, %cst_21 {dimension_numbers = #tpu.dot_dimension_numbers<[1], [0], [0], [1], [0, 0, 1, 1], [], []>} : vector<128x32xbf16>, vector<32x32xbf16>, vector<128x32xf32> -> vector<128x32xf32>
    %c32_22 = arith.constant 32 : index
    %c0_23 = arith.constant 0 : index
    %56 = vector.load %arg2[%c32_22, %c0_23] : memref<240x128xf32, #tpu.memory_space<vmem>>, vector<1x32xf32>
    %57 = vector.broadcast %56 : vector<1x32xf32> to vector<128x32xf32>
    %58 = arith.addf %55, %57 : vector<128x32xf32>
    %cst_24 = arith.constant dense<0.000000e+00> : vector<32x32xf32>
    %59 = tpu.matmul %51, %53, %cst_24 {dimension_numbers = #tpu.dot_dimension_numbers<[1], [0], [0], [1], [0, 0, 1, 1], [], []>} : vector<32x32xbf16>, vector<32x32xbf16>, vector<32x32xf32> -> vector<32x32xf32>
    %c40 = arith.constant 40 : index
    %c0_25 = arith.constant 0 : index
    %60 = vector.load %arg2[%c40, %c0_25] : memref<240x128xf32, #tpu.memory_space<vmem>>, vector<1x32xf32>
    %61 = vector.broadcast %60 : vector<1x32xf32> to vector<32x32xf32>
    %62 = arith.addf %59, %61 : vector<32x32xf32>
    %cst_26 = arith.constant dense<0.000000e+00> : vector<32x32xf32>
    %63 = tpu.matmul %51, %54, %cst_26 {dimension_numbers = #tpu.dot_dimension_numbers<[1], [0], [0], [1], [0, 0, 1, 1], [], []>} : vector<32x32xbf16>, vector<32x32xbf16>, vector<32x32xf32> -> vector<32x32xf32>
    %c48 = arith.constant 48 : index
    %c0_27 = arith.constant 0 : index
    %64 = vector.load %arg2[%c48, %c0_27] : memref<240x128xf32, #tpu.memory_space<vmem>>, vector<1x32xf32>
    %65 = vector.broadcast %64 : vector<1x32xf32> to vector<32x32xf32>
    %66 = arith.addf %63, %65 : vector<32x32xf32>
    %c9_i32 = arith.constant 9 : i32
    %67 = tpu.dynamic_rotate %58 by %c9_i32 dim 0 : vector<128x32xf32>, i32 -> vector<128x32xf32>
    %c960 = arith.constant 960 : index
    %c0_28 = arith.constant 0 : index
    %68 = vector.load %arg3[%c960, %c0_28] : memref<2400x32xbf16, #tpu.memory_space<vmem>>, vector<128x32xbf16>
    %c256 = arith.constant 256 : index
    %c0_29 = arith.constant 0 : index
    %69 = vector.load %arg3[%c256, %c0_29] : memref<2400x32xbf16, #tpu.memory_space<vmem>>, vector<32x32xbf16>
    %70 = arith.truncf %67 : vector<128x32xf32> to vector<128x32xbf16>
    %71 = arith.mulf %70, %68 : vector<128x32xbf16>
    %cst_30 = arith.constant dense<0.000000e+00> : vector<128x32xf32>
    %72 = tpu.matmul %71, %69, %cst_30 {dimension_numbers = #tpu.dot_dimension_numbers<[1], [0], [0], [1], [0, 0, 1, 1], [], []>} : vector<128x32xbf16>, vector<32x32xbf16>, vector<128x32xf32> -> vector<128x32xf32>
    %c8_i32 = arith.constant 8 : i32
    %73 = tpu.dynamic_rotate %58 by %c8_i32 dim 0 : vector<128x32xf32>, i32 -> vector<128x32xf32>
    %c1088 = arith.constant 1088 : index
    %c0_31 = arith.constant 0 : index
    %74 = vector.load %arg3[%c1088, %c0_31] : memref<2400x32xbf16, #tpu.memory_space<vmem>>, vector<128x32xbf16>
    %c288 = arith.constant 288 : index
    %c0_32 = arith.constant 0 : index
    %75 = vector.load %arg3[%c288, %c0_32] : memref<2400x32xbf16, #tpu.memory_space<vmem>>, vector<32x32xbf16>
    %76 = arith.truncf %73 : vector<128x32xf32> to vector<128x32xbf16>
    %77 = arith.mulf %76, %74 : vector<128x32xbf16>
    %cst_33 = arith.constant dense<0.000000e+00> : vector<128x32xf32>
    %78 = tpu.matmul %77, %75, %cst_33 {dimension_numbers = #tpu.dot_dimension_numbers<[1], [0], [0], [1], [0, 0, 1, 1], [], []>} : vector<128x32xbf16>, vector<32x32xbf16>, vector<128x32xf32> -> vector<128x32xf32>
    %79 = arith.addf %72, %78 : vector<128x32xf32>
    %c7_i32 = arith.constant 7 : i32
    %80 = tpu.dynamic_rotate %58 by %c7_i32 dim 0 : vector<128x32xf32>, i32 -> vector<128x32xf32>
    %c1216 = arith.constant 1216 : index
    %c0_34 = arith.constant 0 : index
    %81 = vector.load %arg3[%c1216, %c0_34] : memref<2400x32xbf16, #tpu.memory_space<vmem>>, vector<128x32xbf16>
    %c320 = arith.constant 320 : index
    %c0_35 = arith.constant 0 : index
    %82 = vector.load %arg3[%c320, %c0_35] : memref<2400x32xbf16, #tpu.memory_space<vmem>>, vector<32x32xbf16>
    %83 = arith.truncf %80 : vector<128x32xf32> to vector<128x32xbf16>
    %84 = arith.mulf %83, %81 : vector<128x32xbf16>
    %cst_36 = arith.constant dense<0.000000e+00> : vector<128x32xf32>
    %85 = tpu.matmul %84, %82, %cst_36 {dimension_numbers = #tpu.dot_dimension_numbers<[1], [0], [0], [1], [0, 0, 1, 1], [], []>} : vector<128x32xbf16>, vector<32x32xbf16>, vector<128x32xf32> -> vector<128x32xf32>
    %86 = arith.addf %79, %85 : vector<128x32xf32>
    %c1_i32 = arith.constant 1 : i32
    %87 = tpu.dynamic_rotate %58 by %c1_i32 dim 0 : vector<128x32xf32>, i32 -> vector<128x32xf32>
    %c1344 = arith.constant 1344 : index
    %c0_37 = arith.constant 0 : index
    %88 = vector.load %arg3[%c1344, %c0_37] : memref<2400x32xbf16, #tpu.memory_space<vmem>>, vector<128x32xbf16>
    %c352 = arith.constant 352 : index
    %c0_38 = arith.constant 0 : index
    %89 = vector.load %arg3[%c352, %c0_38] : memref<2400x32xbf16, #tpu.memory_space<vmem>>, vector<32x32xbf16>
    %90 = arith.truncf %87 : vector<128x32xf32> to vector<128x32xbf16>
    %91 = arith.mulf %90, %88 : vector<128x32xbf16>
    %cst_39 = arith.constant dense<0.000000e+00> : vector<128x32xf32>
    %92 = tpu.matmul %91, %89, %cst_39 {dimension_numbers = #tpu.dot_dimension_numbers<[1], [0], [0], [1], [0, 0, 1, 1], [], []>} : vector<128x32xbf16>, vector<32x32xbf16>, vector<128x32xf32> -> vector<128x32xf32>
    %93 = arith.addf %86, %92 : vector<128x32xf32>
    %c1472 = arith.constant 1472 : index
    %c0_40 = arith.constant 0 : index
    %94 = vector.load %arg3[%c1472, %c0_40] : memref<2400x32xbf16, #tpu.memory_space<vmem>>, vector<128x32xbf16>
    %c384 = arith.constant 384 : index
    %c0_41 = arith.constant 0 : index
    %95 = vector.load %arg3[%c384, %c0_41] : memref<2400x32xbf16, #tpu.memory_space<vmem>>, vector<32x32xbf16>
    %96 = arith.truncf %58 : vector<128x32xf32> to vector<128x32xbf16>
    %97 = arith.mulf %96, %94 : vector<128x32xbf16>
    %cst_42 = arith.constant dense<0.000000e+00> : vector<128x32xf32>
    %98 = tpu.matmul %97, %95, %cst_42 {dimension_numbers = #tpu.dot_dimension_numbers<[1], [0], [0], [1], [0, 0, 1, 1], [], []>} : vector<128x32xbf16>, vector<32x32xbf16>, vector<128x32xf32> -> vector<128x32xf32>
    %99 = arith.addf %93, %98 : vector<128x32xf32>
    %c127_i32 = arith.constant 127 : i32
    %100 = tpu.dynamic_rotate %58 by %c127_i32 dim 0 : vector<128x32xf32>, i32 -> vector<128x32xf32>
    %c1600 = arith.constant 1600 : index
    %c0_43 = arith.constant 0 : index
    %101 = vector.load %arg3[%c1600, %c0_43] : memref<2400x32xbf16, #tpu.memory_space<vmem>>, vector<128x32xbf16>
    %c416 = arith.constant 416 : index
    %c0_44 = arith.constant 0 : index
    %102 = vector.load %arg3[%c416, %c0_44] : memref<2400x32xbf16, #tpu.memory_space<vmem>>, vector<32x32xbf16>
    %103 = arith.truncf %100 : vector<128x32xf32> to vector<128x32xbf16>
    %104 = arith.mulf %103, %101 : vector<128x32xbf16>
    %cst_45 = arith.constant dense<0.000000e+00> : vector<128x32xf32>
    %105 = tpu.matmul %104, %102, %cst_45 {dimension_numbers = #tpu.dot_dimension_numbers<[1], [0], [0], [1], [0, 0, 1, 1], [], []>} : vector<128x32xbf16>, vector<32x32xbf16>, vector<128x32xf32> -> vector<128x32xf32>
    %106 = arith.addf %99, %105 : vector<128x32xf32>
    %c121_i32 = arith.constant 121 : i32
    %107 = tpu.dynamic_rotate %58 by %c121_i32 dim 0 : vector<128x32xf32>, i32 -> vector<128x32xf32>
    %c1728 = arith.constant 1728 : index
    %c0_46 = arith.constant 0 : index
    %108 = vector.load %arg3[%c1728, %c0_46] : memref<2400x32xbf16, #tpu.memory_space<vmem>>, vector<128x32xbf16>
    %c448 = arith.constant 448 : index
    %c0_47 = arith.constant 0 : index
    %109 = vector.load %arg3[%c448, %c0_47] : memref<2400x32xbf16, #tpu.memory_space<vmem>>, vector<32x32xbf16>
    %110 = arith.truncf %107 : vector<128x32xf32> to vector<128x32xbf16>
    %111 = arith.mulf %110, %108 : vector<128x32xbf16>
    %cst_48 = arith.constant dense<0.000000e+00> : vector<128x32xf32>
    %112 = tpu.matmul %111, %109, %cst_48 {dimension_numbers = #tpu.dot_dimension_numbers<[1], [0], [0], [1], [0, 0, 1, 1], [], []>} : vector<128x32xbf16>, vector<32x32xbf16>, vector<128x32xf32> -> vector<128x32xf32>
    %113 = arith.addf %106, %112 : vector<128x32xf32>
    %c120_i32 = arith.constant 120 : i32
    %114 = tpu.dynamic_rotate %58 by %c120_i32 dim 0 : vector<128x32xf32>, i32 -> vector<128x32xf32>
    %c1856 = arith.constant 1856 : index
    %c0_49 = arith.constant 0 : index
    %115 = vector.load %arg3[%c1856, %c0_49] : memref<2400x32xbf16, #tpu.memory_space<vmem>>, vector<128x32xbf16>
    %c480 = arith.constant 480 : index
    %c0_50 = arith.constant 0 : index
    %116 = vector.load %arg3[%c480, %c0_50] : memref<2400x32xbf16, #tpu.memory_space<vmem>>, vector<32x32xbf16>
    %117 = arith.truncf %114 : vector<128x32xf32> to vector<128x32xbf16>
    %118 = arith.mulf %117, %115 : vector<128x32xbf16>
    %cst_51 = arith.constant dense<0.000000e+00> : vector<128x32xf32>
    %119 = tpu.matmul %118, %116, %cst_51 {dimension_numbers = #tpu.dot_dimension_numbers<[1], [0], [0], [1], [0, 0, 1, 1], [], []>} : vector<128x32xbf16>, vector<32x32xbf16>, vector<128x32xf32> -> vector<128x32xf32>
    %120 = arith.addf %113, %119 : vector<128x32xf32>
    %c119_i32 = arith.constant 119 : i32
    %121 = tpu.dynamic_rotate %58 by %c119_i32 dim 0 : vector<128x32xf32>, i32 -> vector<128x32xf32>
    %c1984 = arith.constant 1984 : index
    %c0_52 = arith.constant 0 : index
    %122 = vector.load %arg3[%c1984, %c0_52] : memref<2400x32xbf16, #tpu.memory_space<vmem>>, vector<128x32xbf16>
    %c512 = arith.constant 512 : index
    %c0_53 = arith.constant 0 : index
    %123 = vector.load %arg3[%c512, %c0_53] : memref<2400x32xbf16, #tpu.memory_space<vmem>>, vector<32x32xbf16>
    %124 = arith.truncf %121 : vector<128x32xf32> to vector<128x32xbf16>
    %125 = arith.mulf %124, %122 : vector<128x32xbf16>
    %cst_54 = arith.constant dense<0.000000e+00> : vector<128x32xf32>
    %126 = tpu.matmul %125, %123, %cst_54 {dimension_numbers = #tpu.dot_dimension_numbers<[1], [0], [0], [1], [0, 0, 1, 1], [], []>} : vector<128x32xbf16>, vector<32x32xbf16>, vector<128x32xf32> -> vector<128x32xf32>
    %127 = arith.addf %120, %126 : vector<128x32xf32>
    %128 = arith.addf %58, %127 : vector<128x32xf32>
    %c56 = arith.constant 56 : index
    %c0_55 = arith.constant 0 : index
    %129 = vector.load %arg2[%c56, %c0_55] : memref<240x128xf32, #tpu.memory_space<vmem>>, vector<1x32xf32>
    %130 = vector.broadcast %129 : vector<1x32xf32> to vector<128x32xf32>
    %131 = arith.addf %128, %130 : vector<128x32xf32>
    %c5_i32 = arith.constant 5 : i32
    %132 = tpu.dynamic_rotate %62 by %c5_i32 dim 0 : vector<32x32xf32>, i32 -> vector<32x32xf32>
    %c2112 = arith.constant 2112 : index
    %c0_56 = arith.constant 0 : index
    %133 = vector.load %arg3[%c2112, %c0_56] : memref<2400x32xbf16, #tpu.memory_space<vmem>>, vector<32x32xbf16>
    %c544 = arith.constant 544 : index
    %c0_57 = arith.constant 0 : index
    %134 = vector.load %arg3[%c544, %c0_57] : memref<2400x32xbf16, #tpu.memory_space<vmem>>, vector<32x32xbf16>
    %135 = arith.truncf %132 : vector<32x32xf32> to vector<32x32xbf16>
    %136 = arith.mulf %135, %133 : vector<32x32xbf16>
    %cst_58 = arith.constant dense<0.000000e+00> : vector<32x32xf32>
    %137 = tpu.matmul %136, %134, %cst_58 {dimension_numbers = #tpu.dot_dimension_numbers<[1], [0], [0], [1], [0, 0, 1, 1], [], []>} : vector<32x32xbf16>, vector<32x32xbf16>, vector<32x32xf32> -> vector<32x32xf32>
    %c4_i32 = arith.constant 4 : i32
    %138 = tpu.dynamic_rotate %62 by %c4_i32 dim 0 : vector<32x32xf32>, i32 -> vector<32x32xf32>
    %c2144 = arith.constant 2144 : index
    %c0_59 = arith.constant 0 : index
    %139 = vector.load %arg3[%c2144, %c0_59] : memref<2400x32xbf16, #tpu.memory_space<vmem>>, vector<32x32xbf16>
    %c576 = arith.constant 576 : index
    %c0_60 = arith.constant 0 : index
    %140 = vector.load %arg3[%c576, %c0_60] : memref<2400x32xbf16, #tpu.memory_space<vmem>>, vector<32x32xbf16>
    %141 = arith.truncf %138 : vector<32x32xf32> to vector<32x32xbf16>
    %142 = arith.mulf %141, %139 : vector<32x32xbf16>
    %cst_61 = arith.constant dense<0.000000e+00> : vector<32x32xf32>
    %143 = tpu.matmul %142, %140, %cst_61 {dimension_numbers = #tpu.dot_dimension_numbers<[1], [0], [0], [1], [0, 0, 1, 1], [], []>} : vector<32x32xbf16>, vector<32x32xbf16>, vector<32x32xf32> -> vector<32x32xf32>
    %144 = arith.addf %137, %143 : vector<32x32xf32>
    %c3_i32 = arith.constant 3 : i32
    %145 = tpu.dynamic_rotate %62 by %c3_i32 dim 0 : vector<32x32xf32>, i32 -> vector<32x32xf32>
    %c2176 = arith.constant 2176 : index
    %c0_62 = arith.constant 0 : index
    %146 = vector.load %arg3[%c2176, %c0_62] : memref<2400x32xbf16, #tpu.memory_space<vmem>>, vector<32x32xbf16>
    %c608 = arith.constant 608 : index
    %c0_63 = arith.constant 0 : index
    %147 = vector.load %arg3[%c608, %c0_63] : memref<2400x32xbf16, #tpu.memory_space<vmem>>, vector<32x32xbf16>
    %148 = arith.truncf %145 : vector<32x32xf32> to vector<32x32xbf16>
    %149 = arith.mulf %148, %146 : vector<32x32xbf16>
    %cst_64 = arith.constant dense<0.000000e+00> : vector<32x32xf32>
    %150 = tpu.matmul %149, %147, %cst_64 {dimension_numbers = #tpu.dot_dimension_numbers<[1], [0], [0], [1], [0, 0, 1, 1], [], []>} : vector<32x32xbf16>, vector<32x32xbf16>, vector<32x32xf32> -> vector<32x32xf32>
    %151 = arith.addf %144, %150 : vector<32x32xf32>
    %c1_i32_65 = arith.constant 1 : i32
    %152 = tpu.dynamic_rotate %62 by %c1_i32_65 dim 0 : vector<32x32xf32>, i32 -> vector<32x32xf32>
    %c2208 = arith.constant 2208 : index
    %c0_66 = arith.constant 0 : index
    %153 = vector.load %arg3[%c2208, %c0_66] : memref<2400x32xbf16, #tpu.memory_space<vmem>>, vector<32x32xbf16>
    %c640 = arith.constant 640 : index
    %c0_67 = arith.constant 0 : index
    %154 = vector.load %arg3[%c640, %c0_67] : memref<2400x32xbf16, #tpu.memory_space<vmem>>, vector<32x32xbf16>
    %155 = arith.truncf %152 : vector<32x32xf32> to vector<32x32xbf16>
    %156 = arith.mulf %155, %153 : vector<32x32xbf16>
    %cst_68 = arith.constant dense<0.000000e+00> : vector<32x32xf32>
    %157 = tpu.matmul %156, %154, %cst_68 {dimension_numbers = #tpu.dot_dimension_numbers<[1], [0], [0], [1], [0, 0, 1, 1], [], []>} : vector<32x32xbf16>, vector<32x32xbf16>, vector<32x32xf32> -> vector<32x32xf32>
    %158 = arith.addf %151, %157 : vector<32x32xf32>
    %c2240 = arith.constant 2240 : index
    %c0_69 = arith.constant 0 : index
    %159 = vector.load %arg3[%c2240, %c0_69] : memref<2400x32xbf16, #tpu.memory_space<vmem>>, vector<32x32xbf16>
    %c672 = arith.constant 672 : index
    %c0_70 = arith.constant 0 : index
    %160 = vector.load %arg3[%c672, %c0_70] : memref<2400x32xbf16, #tpu.memory_space<vmem>>, vector<32x32xbf16>
    %161 = arith.truncf %62 : vector<32x32xf32> to vector<32x32xbf16>
    %162 = arith.mulf %161, %159 : vector<32x32xbf16>
    %cst_71 = arith.constant dense<0.000000e+00> : vector<32x32xf32>
    %163 = tpu.matmul %162, %160, %cst_71 {dimension_numbers = #tpu.dot_dimension_numbers<[1], [0], [0], [1], [0, 0, 1, 1], [], []>} : vector<32x32xbf16>, vector<32x32xbf16>, vector<32x32xf32> -> vector<32x32xf32>
    %164 = arith.addf %158, %163 : vector<32x32xf32>
    %c31_i32 = arith.constant 31 : i32
    %165 = tpu.dynamic_rotate %62 by %c31_i32 dim 0 : vector<32x32xf32>, i32 -> vector<32x32xf32>
    %c2272 = arith.constant 2272 : index
    %c0_72 = arith.constant 0 : index
    %166 = vector.load %arg3[%c2272, %c0_72] : memref<2400x32xbf16, #tpu.memory_space<vmem>>, vector<32x32xbf16>
    %c704 = arith.constant 704 : index
    %c0_73 = arith.constant 0 : index
    %167 = vector.load %arg3[%c704, %c0_73] : memref<2400x32xbf16, #tpu.memory_space<vmem>>, vector<32x32xbf16>
    %168 = arith.truncf %165 : vector<32x32xf32> to vector<32x32xbf16>
    %169 = arith.mulf %168, %166 : vector<32x32xbf16>
    %cst_74 = arith.constant dense<0.000000e+00> : vector<32x32xf32>
    %170 = tpu.matmul %169, %167, %cst_74 {dimension_numbers = #tpu.dot_dimension_numbers<[1], [0], [0], [1], [0, 0, 1, 1], [], []>} : vector<32x32xbf16>, vector<32x32xbf16>, vector<32x32xf32> -> vector<32x32xf32>
    %171 = arith.addf %164, %170 : vector<32x32xf32>
    %c29_i32 = arith.constant 29 : i32
    %172 = tpu.dynamic_rotate %62 by %c29_i32 dim 0 : vector<32x32xf32>, i32 -> vector<32x32xf32>
    %c2304 = arith.constant 2304 : index
    %c0_75 = arith.constant 0 : index
    %173 = vector.load %arg3[%c2304, %c0_75] : memref<2400x32xbf16, #tpu.memory_space<vmem>>, vector<32x32xbf16>
    %c736 = arith.constant 736 : index
    %c0_76 = arith.constant 0 : index
    %174 = vector.load %arg3[%c736, %c0_76] : memref<2400x32xbf16, #tpu.memory_space<vmem>>, vector<32x32xbf16>
    %175 = arith.truncf %172 : vector<32x32xf32> to vector<32x32xbf16>
    %176 = arith.mulf %175, %173 : vector<32x32xbf16>
    %cst_77 = arith.constant dense<0.000000e+00> : vector<32x32xf32>
    %177 = tpu.matmul %176, %174, %cst_77 {dimension_numbers = #tpu.dot_dimension_numbers<[1], [0], [0], [1], [0, 0, 1, 1], [], []>} : vector<32x32xbf16>, vector<32x32xbf16>, vector<32x32xf32> -> vector<32x32xf32>
    %178 = arith.addf %171, %177 : vector<32x32xf32>
    %c28_i32 = arith.constant 28 : i32
    %179 = tpu.dynamic_rotate %62 by %c28_i32 dim 0 : vector<32x32xf32>, i32 -> vector<32x32xf32>
    %c2336 = arith.constant 2336 : index
    %c0_78 = arith.constant 0 : index
    %180 = vector.load %arg3[%c2336, %c0_78] : memref<2400x32xbf16, #tpu.memory_space<vmem>>, vector<32x32xbf16>
    %c768 = arith.constant 768 : index
    %c0_79 = arith.constant 0 : index
    %181 = vector.load %arg3[%c768, %c0_79] : memref<2400x32xbf16, #tpu.memory_space<vmem>>, vector<32x32xbf16>
    %182 = arith.truncf %179 : vector<32x32xf32> to vector<32x32xbf16>
    %183 = arith.mulf %182, %180 : vector<32x32xbf16>
    %cst_80 = arith.constant dense<0.000000e+00> : vector<32x32xf32>
    %184 = tpu.matmul %183, %181, %cst_80 {dimension_numbers = #tpu.dot_dimension_numbers<[1], [0], [0], [1], [0, 0, 1, 1], [], []>} : vector<32x32xbf16>, vector<32x32xbf16>, vector<32x32xf32> -> vector<32x32xf32>
    %185 = arith.addf %178, %184 : vector<32x32xf32>
    %c27_i32 = arith.constant 27 : i32
    %186 = tpu.dynamic_rotate %62 by %c27_i32 dim 0 : vector<32x32xf32>, i32 -> vector<32x32xf32>
    %c2368 = arith.constant 2368 : index
    %c0_81 = arith.constant 0 : index
    %187 = vector.load %arg3[%c2368, %c0_81] : memref<2400x32xbf16, #tpu.memory_space<vmem>>, vector<32x32xbf16>
    %c800 = arith.constant 800 : index
    %c0_82 = arith.constant 0 : index
    %188 = vector.load %arg3[%c800, %c0_82] : memref<2400x32xbf16, #tpu.memory_space<vmem>>, vector<32x32xbf16>
    %189 = arith.truncf %186 : vector<32x32xf32> to vector<32x32xbf16>
    %190 = arith.mulf %189, %187 : vector<32x32xbf16>
    %cst_83 = arith.constant dense<0.000000e+00> : vector<32x32xf32>
    %191 = tpu.matmul %190, %188, %cst_83 {dimension_numbers = #tpu.dot_dimension_numbers<[1], [0], [0], [1], [0, 0, 1, 1], [], []>} : vector<32x32xbf16>, vector<32x32xbf16>, vector<32x32xf32> -> vector<32x32xf32>
    %192 = arith.addf %185, %191 : vector<32x32xf32>
    %193 = arith.addf %62, %192 : vector<32x32xf32>
    %c64_84 = arith.constant 64 : index
    %c0_85 = arith.constant 0 : index
    %194 = vector.load %arg2[%c64_84, %c0_85] : memref<240x128xf32, #tpu.memory_space<vmem>>, vector<1x32xf32>
    %195 = vector.broadcast %194 : vector<1x32xf32> to vector<32x32xf32>
    %196 = arith.addf %193, %195 : vector<32x32xf32>
    %c832 = arith.constant 832 : index
    %c0_86 = arith.constant 0 : index
    %197 = vector.load %arg3[%c832, %c0_86] : memref<2400x32xbf16, #tpu.memory_space<vmem>>, vector<128x32xbf16>
    %198 = arith.truncf %196 : vector<32x32xf32> to vector<32x32xbf16>
    %199 = arith.truncf %66 : vector<32x32xf32> to vector<32x32xbf16>
    %200 = tpu.concatenate %198, %198, %198, %198 in 0 : vector<32x32xbf16>, vector<32x32xbf16>, vector<32x32xbf16>, vector<32x32xbf16> -> vector<128x32xbf16>
    %201 = arith.mulf %200, %197 : vector<128x32xbf16>
    %202 = tpu.concatenate %199, %199, %199, %199 in 0 : vector<32x32xbf16>, vector<32x32xbf16>, vector<32x32xbf16>, vector<32x32xbf16> -> vector<128x32xbf16>
    %203 = arith.mulf %202, %197 : vector<128x32xbf16>
    %204 = arith.truncf %131 : vector<128x32xf32> to vector<128x32xbf16>
    %cst_87 = arith.constant dense<0.000000e+00> : vector<128x128xf32>
    %205 = tpu.matmul %204, %201, %cst_87 {dimension_numbers = #tpu.dot_dimension_numbers<[1], [1], [0], [0], [0, 0, 1, 0], [], []>} : vector<128x32xbf16>, vector<128x32xbf16>, vector<128x128xf32> -> vector<128x128xf32>
    %c112 = arith.constant 112 : index
    %c0_88 = arith.constant 0 : index
    %206 = vector.load %arg2[%c112, %c0_88] : memref<240x128xf32, #tpu.memory_space<vmem>>, vector<128x128xf32>
    %207 = arith.addf %205, %206 : vector<128x128xf32>
    %cst_89 = arith.constant dense<0xFF800000> : vector<128xf32>
    %208 = vector.multi_reduction <maximumf>, %207, %cst_89 [1] : vector<128x128xf32> to vector<128xf32>
    %209 = vector.shape_cast %208 : vector<128xf32> to vector<128x1xf32>
    %210 = vector.broadcast %209 : vector<128x1xf32> to vector<128x128xf32>
    %211 = arith.subf %207, %210 : vector<128x128xf32>
    %212 = math.exp %211 : vector<128x128xf32>
    %213 = arith.truncf %212 : vector<128x128xf32> to vector<128x128xbf16>
    %c32_90 = arith.constant 32 : index
    %c0_91 = arith.constant 0 : index
    %214 = vector.load %arg4[%c32_90, %c0_91] : memref<160x128xbf16, #tpu.memory_space<vmem>>, vector<128x128xbf16>
    %cst_92 = arith.constant dense<0.000000e+00> : vector<128x128xf32>
    %215 = tpu.matmul %213, %214, %cst_92 {dimension_numbers = #tpu.dot_dimension_numbers<[1], [0], [0], [1], [0, 0, 1, 1], [], []>} : vector<128x128xbf16>, vector<128x128xbf16>, vector<128x128xf32> -> vector<128x128xf32>
    %cst_93 = arith.constant 1.000000e-30 : f32
    %216 = vector.broadcast %cst_93 : f32 to vector<128x128xf32>
    %217 = arith.addf %215, %216 : vector<128x128xf32>
    %218 = tpu.reciprocal %217 {approx = true} : vector<128x128xf32> -> vector<128x128xf32>
    %219 = arith.truncf %218 : vector<128x128xf32> to vector<128x128xbf16>
    %220 = arith.mulf %213, %219 : vector<128x128xbf16>
    %cst_94 = arith.constant dense<0.000000e+00> : vector<128x32xf32>
    %221 = tpu.matmul %220, %203, %cst_94 {dimension_numbers = #tpu.dot_dimension_numbers<[1], [0], [0], [1], [0, 0, 1, 1], [], []>} : vector<128x128xbf16>, vector<128x32xbf16>, vector<128x32xf32> -> vector<128x32xf32>
    %c96 = arith.constant 96 : index
    %c0_95 = arith.constant 0 : index
    %222 = vector.load %arg3[%c96, %c0_95] : memref<2400x32xbf16, #tpu.memory_space<vmem>>, vector<32x32xbf16>
    %223 = arith.truncf %221 : vector<128x32xf32> to vector<128x32xbf16>
    %cst_96 = arith.constant dense<0.000000e+00> : vector<128x32xf32>
    %224 = tpu.matmul %223, %222, %cst_96 {dimension_numbers = #tpu.dot_dimension_numbers<[1], [0], [0], [1], [0, 0, 1, 1], [], []>} : vector<128x32xbf16>, vector<32x32xbf16>, vector<128x32xf32> -> vector<128x32xf32>
    %c72 = arith.constant 72 : index
    %c0_97 = arith.constant 0 : index
    %225 = vector.load %arg2[%c72, %c0_97] : memref<240x128xf32, #tpu.memory_space<vmem>>, vector<1x32xf32>
    %226 = vector.broadcast %225 : vector<1x32xf32> to vector<128x32xf32>
    %227 = arith.addf %224, %226 : vector<128x32xf32>
    %228 = arith.addf %0, %227 : vector<128x32xf32>
    %c80 = arith.constant 80 : index
    %c0_98 = arith.constant 0 : index
    %229 = vector.load %arg2[%c80, %c0_98] : memref<240x128xf32, #tpu.memory_space<vmem>>, vector<1x32xf32>
    %c88 = arith.constant 88 : index
    %c0_99 = arith.constant 0 : index
    %230 = vector.load %arg2[%c88, %c0_99] : memref<240x128xf32, #tpu.memory_space<vmem>>, vector<1x32xf32>
    %cst_100 = arith.constant dense<0.000000e+00> : vector<128xf32>
    %231 = vector.multi_reduction <add>, %228, %cst_100 [1] : vector<128x32xf32> to vector<128xf32>
    %232 = vector.shape_cast %231 : vector<128xf32> to vector<128x1xf32>
    %cst_101 = arith.constant 3.200000e+01 : f32
    %233 = vector.broadcast %cst_101 : f32 to vector<128x1xf32>
    %234 = arith.divf %232, %233 : vector<128x1xf32>
    %235 = vector.broadcast %234 : vector<128x1xf32> to vector<128x32xf32>
    %236 = arith.subf %228, %235 : vector<128x32xf32>
    %237 = arith.mulf %236, %236 : vector<128x32xf32>
    %cst_102 = arith.constant dense<0.000000e+00> : vector<128xf32>
    %238 = vector.multi_reduction <add>, %237, %cst_102 [1] : vector<128x32xf32> to vector<128xf32>
    %239 = vector.shape_cast %238 : vector<128xf32> to vector<128x1xf32>
    %cst_103 = arith.constant 3.200000e+01 : f32
    %240 = vector.broadcast %cst_103 : f32 to vector<128x1xf32>
    %241 = arith.divf %239, %240 : vector<128x1xf32>
    %242 = vector.broadcast %234 : vector<128x1xf32> to vector<128x32xf32>
    %243 = arith.subf %228, %242 : vector<128x32xf32>
    %cst_104 = arith.constant 9.99999974E-6 : f32
    %244 = vector.broadcast %cst_104 : f32 to vector<128x1xf32>
    %245 = arith.addf %241, %244 : vector<128x1xf32>
    %246 = math.rsqrt %245 : vector<128x1xf32>
    %247 = vector.broadcast %246 : vector<128x1xf32> to vector<128x32xf32>
    %248 = arith.mulf %243, %247 : vector<128x32xf32>
    %249 = vector.broadcast %229 : vector<1x32xf32> to vector<128x32xf32>
    %250 = arith.mulf %248, %249 : vector<128x32xf32>
    %251 = vector.broadcast %230 : vector<1x32xf32> to vector<128x32xf32>
    %252 = arith.addf %250, %251 : vector<128x32xf32>
    %253 = arith.truncf %252 : vector<128x32xf32> to vector<128x32xbf16>
    %c0_105 = arith.constant 0 : index
    %c0_106 = arith.constant 0 : index
    %254 = vector.load %arg4[%c0_105, %c0_106] : memref<160x128xbf16, #tpu.memory_space<vmem>>, vector<32x128xbf16>
    %cst_107 = arith.constant dense<0.000000e+00> : vector<128x128xf32>
    %255 = tpu.matmul %253, %254, %cst_107 {dimension_numbers = #tpu.dot_dimension_numbers<[1], [0], [0], [1], [0, 0, 1, 1], [], []>} : vector<128x32xbf16>, vector<32x128xbf16>, vector<128x128xf32> -> vector<128x128xf32>
    %c96_108 = arith.constant 96 : index
    %c0_109 = arith.constant 0 : index
    %256 = vector.load %arg2[%c96_108, %c0_109] : memref<240x128xf32, #tpu.memory_space<vmem>>, vector<1x128xf32>
    %257 = vector.broadcast %256 : vector<1x128xf32> to vector<128x128xf32>
    %258 = arith.addf %255, %257 : vector<128x128xf32>
    %cst_110 = arith.constant 5.000000e-01 : f32
    %259 = vector.broadcast %cst_110 : f32 to vector<128x128xf32>
    %260 = arith.mulf %259, %258 : vector<128x128xf32>
    %cst_111 = arith.constant 4.471500e-02 : f32
    %261 = vector.broadcast %cst_111 : f32 to vector<128x128xf32>
    %262 = arith.mulf %261, %258 : vector<128x128xf32>
    %263 = arith.mulf %262, %258 : vector<128x128xf32>
    %264 = arith.mulf %263, %258 : vector<128x128xf32>
    %265 = arith.addf %258, %264 : vector<128x128xf32>
    %cst_112 = arith.constant 0.797884583 : f32
    %266 = vector.broadcast %cst_112 : f32 to vector<128x128xf32>
    %267 = arith.mulf %266, %265 : vector<128x128xf32>
    %268 = math.tanh %267 : vector<128x128xf32>
    %cst_113 = arith.constant 1.000000e+00 : f32
    %269 = vector.broadcast %cst_113 : f32 to vector<128x128xf32>
    %270 = arith.addf %269, %268 : vector<128x128xf32>
    %271 = arith.mulf %260, %270 : vector<128x128xf32>
    %272 = arith.truncf %271 : vector<128x128xf32> to vector<128x128xbf16>
    %c128 = arith.constant 128 : index
    %c0_114 = arith.constant 0 : index
    %273 = vector.load %arg3[%c128, %c0_114] : memref<2400x32xbf16, #tpu.memory_space<vmem>>, vector<128x32xbf16>
    %cst_115 = arith.constant dense<0.000000e+00> : vector<128x32xf32>
    %274 = tpu.matmul %272, %273, %cst_115 {dimension_numbers = #tpu.dot_dimension_numbers<[1], [0], [0], [1], [0, 0, 1, 1], [], []>} : vector<128x128xbf16>, vector<128x32xbf16>, vector<128x32xf32> -> vector<128x32xf32>
    %c104 = arith.constant 104 : index
    %c0_116 = arith.constant 0 : index
    %275 = vector.load %arg2[%c104, %c0_116] : memref<240x128xf32, #tpu.memory_space<vmem>>, vector<1x32xf32>
    %276 = vector.broadcast %275 : vector<1x32xf32> to vector<128x32xf32>
    %277 = arith.addf %274, %276 : vector<128x32xf32>
    %278 = arith.addf %228, %277 : vector<128x32xf32>
    %c0_117 = arith.constant 0 : index
    %c0_118 = arith.constant 0 : index
    %279 = vector.load %arg5[%c0_117, %c0_118] : memref<128x32xf32, #tpu.memory_space<vmem>>, vector<128x32xf32>
    tpu.vector_store %arg5[%c0_117, %c0_118], %278 {strides = array<i32>} : memref<128x32xf32, #tpu.memory_space<vmem>>, vector<128x32xf32>,
    return
  }
}

</mosaic_0001>

<llo_original>
// kernel: tpu_custom_call.1
$region0: #{tpu_custom_call.1}
  #allocation0 [shape = 'u32[]', space=smem, size = 0x4, offset = 0x4, fixed_abs, tag = 'smem constant byte address 0x4 - core index']
  #allocation1 [shape = 'u32[72,128]{1,0:T(1,128)}', space=vmem, size = 0x9000, scoped, tag = 'internal scratch']
  %s0 = inlined_call_operand.vmem [shape: f32[128,32], index: 0, kind: input, shape index: {}]
  %s1 = inlined_call_operand.vmem [shape: f32[32,32], index: 1, kind: input, shape index: {}]
  %s2 = inlined_call_operand.vmem [shape: f32[240,128], index: 2, kind: input, shape index: {}]
  %s3 = inlined_call_operand.vmem [shape: bf16[2400,32], index: 3, kind: input, shape index: {}]
  %s4 = inlined_call_operand.vmem [shape: bf16[160,128], index: 4, kind: input, shape index: {}]
  %s5 = inlined_call_operand.vmem [shape: f32[128,32], index: 5, kind: output, shape index: {}]
  %s6 = sld [smem:[#allocation0]]
  $region30: #{tpu_custom_call.1} parent=0
    _
  %s8 = ssub.s32 1, %s6
  %s9 = scalar_select 0, %s8, %s6
  // Predicated region
  $region2: #{tpu_custom_call.1} parent=0 // pred_check
    _
  $region3: #{tpu_custom_call.1} parent=0 // pred_check_branch
    %11 = sbr.rel (0) target = $region5
  $region4: #{tpu_custom_call.1} parent=0 // pred_region
    _
  $region5: #{tpu_custom_call.1} parent=0 // pred_fallthru
    _
  // Predicated region
  $region6: #{tpu_custom_call.1} parent=0 // pred_check
    _
  $region7: #{tpu_custom_call.1} parent=0 // pred_check_branch
    %13 = sbr.rel (0) target = $region9
  $region8: #{tpu_custom_call.1} parent=0 // pred_region
    _
  $region9: #{tpu_custom_call.1} parent=0 // pred_fallthru
    _
  // Predicated region
  $region10: #{tpu_custom_call.1} parent=0 // pred_check
    _
  $region11: #{tpu_custom_call.1} parent=0 // pred_check_branch
    %15 = sbr.rel (0) target = $region13
  $region12: #{tpu_custom_call.1} parent=0 // pred_region
    _
  $region13: #{tpu_custom_call.1} parent=0 // pred_fallthru
    _
  // Predicated region
  $region14: #{tpu_custom_call.1} parent=0 // pred_check
    _
  $region15: #{tpu_custom_call.1} parent=0 // pred_check_branch
    %17 = sbr.rel (0) target = $region17
  $region16: #{tpu_custom_call.1} parent=0 // pred_region
    _
  $region17: #{tpu_custom_call.1} parent=0 // pred_fallthru
    _
  // Predicated region
  $region18: #{tpu_custom_call.1} parent=0 // pred_check
    _
  $region19: #{tpu_custom_call.1} parent=0 // pred_check_branch
    %19 = sbr.rel (0) target = $region21
  $region20: #{tpu_custom_call.1} parent=0 // pred_region
    _
  $region21: #{tpu_custom_call.1} parent=0 // pred_fallthru
    _
  %v21 = vld [vmem:[%s0] sm:$0xff]
  %v22 = vld [vmem:[%s0 + $0x8] sm:$0xff]
  %v23 = vld [vmem:[%s0 + $0x10] sm:$0xff]
  %v24 = vld [vmem:[%s0 + $0x18] sm:$0xff]
  %v25 = vld [vmem:[%s0 + $0x20] sm:$0xff]
  %v26 = vld [vmem:[%s0 + $0x28] sm:$0xff]
  %v27 = vld [vmem:[%s0 + $0x30] sm:$0xff]
  %v28 = vld [vmem:[%s0 + $0x38] sm:$0xff]
  %v29 = vld [vmem:[%s0 + $0x40] sm:$0xff]
  %v30 = vld [vmem:[%s0 + $0x48] sm:$0xff]
  %v31 = vld [vmem:[%s0 + $0x50] sm:$0xff]
  %v32 = vld [vmem:[%s0 + $0x58] sm:$0xff]
  %v33 = vld [vmem:[%s0 + $0x60] sm:$0xff]
  %v34 = vld [vmem:[%s0 + $0x68] sm:$0xff]
  %v35 = vld [vmem:[%s0 + $0x70] sm:$0xff]
  %v36 = vld [vmem:[%s0 + $0x78] sm:$0xff]
  %v37 = vld [vmem:[%s1] sm:$0xff]
  %v38 = vld [vmem:[%s1 + $0x8] sm:$0xff]
  %v39 = vld [vmem:[%s1 + $0x10] sm:$0xff]
  %v40 = vld [vmem:[%s1 + $0x18] sm:$0xff]
  %v41 = vld [vmem:[%s2 + $0x10] sm:$0x1]
  %v42 = vld [vmem:[%s2 + $0x18] sm:$0x1]
  %vm43 = vcmask 261120
  %v44 = vsel %vm43, %v21, 0.0
  %45 = vadd.xlane.f32.xlu0 %v44
  %v46 = vpop.xlane.xlu0 %45
  %v47 = vsel %vm43, %v22, 0.0
  %48 = vadd.xlane.f32.xlu0 %v47
  %v49 = vpop.xlane.xlu0 %48
  %v50 = vsel %vm43, %v23, 0.0
  %51 = vadd.xlane.f32.xlu0 %v50
  %v52 = vpop.xlane.xlu0 %51
  %v53 = vsel %vm43, %v24, 0.0
  %54 = vadd.xlane.f32.xlu0 %v53
  %v55 = vpop.xlane.xlu0 %54
  %v56 = vsel %vm43, %v25, 0.0
  %57 = vadd.xlane.f32.xlu0 %v56
  %v58 = vpop.xlane.xlu0 %57
  %v59 = vsel %vm43, %v26, 0.0
  %60 = vadd.xlane.f32.xlu0 %v59
  %v61 = vpop.xlane.xlu0 %60
  %v62 = vsel %vm43, %v27, 0.0
  %63 = vadd.xlane.f32.xlu0 %v62
  %v64 = vpop.xlane.xlu0 %63
  %v65 = vsel %vm43, %v28, 0.0
  %66 = vadd.xlane.f32.xlu0 %v65
  %v67 = vpop.xlane.xlu0 %66
  %v68 = vsel %vm43, %v29, 0.0
  %69 = vadd.xlane.f32.xlu0 %v68
  %v70 = vpop.xlane.xlu0 %69
  %v71 = vsel %vm43, %v30, 0.0
  %72 = vadd.xlane.f32.xlu0 %v71
  %v73 = vpop.xlane.xlu0 %72
  %v74 = vsel %vm43, %v31, 0.0
  %75 = vadd.xlane.f32.xlu0 %v74
  %v76 = vpop.xlane.xlu0 %75
  %v77 = vsel %vm43, %v32, 0.0
  %78 = vadd.xlane.f32.xlu0 %v77
  %v79 = vpop.xlane.xlu0 %78
  %v80 = vsel %vm43, %v33, 0.0
  %81 = vadd.xlane.f32.xlu0 %v80
  %v82 = vpop.xlane.xlu0 %81
  %v83 = vsel %vm43, %v34, 0.0
  %84 = vadd.xlane.f32.xlu0 %v83
  %v85 = vpop.xlane.xlu0 %84
  %v86 = vsel %vm43, %v35, 0.0
  %87 = vadd.xlane.f32.xlu0 %v86
  %v88 = vpop.xlane.xlu0 %87
  %v89 = vsel %vm43, %v36, 0.0
  %90 = vadd.xlane.f32.xlu0 %v89
  %v91 = vpop.xlane.xlu0 %90
  %v92 = vrcp.pop 32.0
  %v93 = vmul.f32 32.0, %v92
  %v94 = vsub.f32 1.0, %v93
  %v95 = vmul.f32 %v92, %v94
  %v96 = vadd.f32 %v92, %v95
  %vm97 = vweird.f32 %v92
  %v98 = vsel %vm97, %v92, %v96
  %v99 = vmul.f32 %v46, %v98
  %v100 = vmul.f32 %v49, %v98
  %v101 = vmul.f32 %v52, %v98
  %v102 = vmul.f32 %v55, %v98
  %v103 = vmul.f32 %v58, %v98
  %v104 = vmul.f32 %v61, %v98
  %v105 = vmul.f32 %v64, %v98
  %v106 = vmul.f32 %v67, %v98
  %v107 = vmul.f32 %v70, %v98
  %v108 = vmul.f32 %v73, %v98
  %v109 = vmul.f32 %v76, %v98
  %v110 = vmul.f32 %v79, %v98
  %v111 = vmul.f32 %v82, %v98
  %v112 = vmul.f32 %v85, %v98
  %v113 = vmul.f32 %v88, %v98
  %v114 = vmul.f32 %v91, %v98
  %v115 = vsub.f32 %v21, %v99
  %v116 = vsub.f32 %v22, %v100
  %v117 = vsub.f32 %v23, %v101
  %v118 = vsub.f32 %v24, %v102
  %v119 = vsub.f32 %v25, %v103
  %v120 = vsub.f32 %v26, %v104
  %v121 = vsub.f32 %v27, %v105
  %v122 = vsub.f32 %v28, %v106
  %v123 = vsub.f32 %v29, %v107
  %v124 = vsub.f32 %v30, %v108
  %v125 = vsub.f32 %v31, %v109
  %v126 = vsub.f32 %v32, %v110
  %v127 = vsub.f32 %v33, %v111
  %v128 = vsub.f32 %v34, %v112
  %v129 = vsub.f32 %v35, %v113
  %v130 = vsub.f32 %v36, %v114
  %v131 = vmul.f32 %v115, %v115
  %v132 = vmul.f32 %v116, %v116
  %v133 = vmul.f32 %v117, %v117
  %v134 = vmul.f32 %v118, %v118
  %v135 = vmul.f32 %v119, %v119
  %v136 = vmul.f32 %v120, %v120
  %v137 = vmul.f32 %v121, %v121
  %v138 = vmul.f32 %v122, %v122
  %v139 = vmul.f32 %v123, %v123
  %v140 = vmul.f32 %v124, %v124
  %v141 = vmul.f32 %v125, %v125
  %v142 = vmul.f32 %v126, %v126
  %v143 = vmul.f32 %v127, %v127
  %v144 = vmul.f32 %v128, %v128
  %v145 = vmul.f32 %v129, %v129
  %v146 = vmul.f32 %v130, %v130
  %v147 = vsel %vm43, %v131, 0.0
  %148 = vadd.xlane.f32.xlu0 %v147
  %v149 = vpop.xlane.xlu0 %148
  %v150 = vsel %vm43, %v132, 0.0
  %151 = vadd.xlane.f32.xlu0 %v150
  %v152 = vpop.xlane.xlu0 %151
  %v153 = vsel %vm43, %v133, 0.0
  %154 = vadd.xlane.f32.xlu0 %v153
  %v155 = vpop.xlane.xlu0 %154
  %v156 = vsel %vm43, %v134, 0.0
  %157 = vadd.xlane.f32.xlu0 %v156
  %v158 = vpop.xlane.xlu0 %157
  %v159 = vsel %vm43, %v135, 0.0
  %160 = vadd.xlane.f32.xlu0 %v159
  %v161 = vpop.xlane.xlu0 %160
  %v162 = vsel %vm43, %v136, 0.0
  %163 = vadd.xlane.f32.xlu0 %v162
  %v164 = vpop.xlane.xlu0 %163
  %v165 = vsel %vm43, %v137, 0.0
  %166 = vadd.xlane.f32.xlu0 %v165
  %v167 = vpop.xlane.xlu0 %166
  %v168 = vsel %vm43, %v138, 0.0
  %169 = vadd.xlane.f32.xlu0 %v168
  %v170 = vpop.xlane.xlu0 %169
  %v171 = vsel %vm43, %v139, 0.0
  %172 = vadd.xlane.f32.xlu0 %v171
  %v173 = vpop.xlane.xlu0 %172
  %v174 = vsel %vm43, %v140, 0.0
  %175 = vadd.xlane.f32.xlu0 %v174
  %v176 = vpop.xlane.xlu0 %175
  %v177 = vsel %vm43, %v141, 0.0
  %178 = vadd.xlane.f32.xlu0 %v177
  %v179 = vpop.xlane.xlu0 %178
  %v180 = vsel %vm43, %v142, 0.0
  %181 = vadd.xlane.f32.xlu0 %v180
  %v182 = vpop.xlane.xlu0 %181
  %v183 = vsel %vm43, %v143, 0.0
  %184 = vadd.xlane.f32.xlu0 %v183
  %v185 = vpop.xlane.xlu0 %184
  %v186 = vsel %vm43, %v144, 0.0
  %187 = vadd.xlane.f32.xlu0 %v186
  %v188 = vpop.xlane.xlu0 %187
  %v189 = vsel %vm43, %v145, 0.0
  %190 = vadd.xlane.f32.xlu0 %v189
  %v191 = vpop.xlane.xlu0 %190
  %v192 = vsel %vm43, %v146, 0.0
  %193 = vadd.xlane.f32.xlu0 %v192
  %v194 = vpop.xlane.xlu0 %193
  %v195 = vmul.f32 %v149, %v98
  %v196 = vmul.f32 %v152, %v98
  %v197 = vmul.f32 %v155, %v98
  %v198 = vmul.f32 %v158, %v98
  %v199 = vmul.f32 %v161, %v98
  %v200 = vmul.f32 %v164, %v98
  %v201 = vmul.f32 %v167, %v98
  %v202 = vmul.f32 %v170, %v98
  %v203 = vmul.f32 %v173, %v98
  %v204 = vmul.f32 %v176, %v98
  %v205 = vmul.f32 %v179, %v98
  %v206 = vmul.f32 %v182, %v98
  %v207 = vmul.f32 %v185, %v98
  %v208 = vmul.f32 %v188, %v98
  %v209 = vmul.f32 %v191, %v98
  %v210 = vmul.f32 %v194, %v98
  %v211 = vadd.f32 %v195, 1e-05
  %v212 = vadd.f32 %v196, 1e-05
  %v213 = vadd.f32 %v197, 1e-05
  %v214 = vadd.f32 %v198, 1e-05
  %v215 = vadd.f32 %v199, 1e-05
  %v216 = vadd.f32 %v200, 1e-05
  %v217 = vadd.f32 %v201, 1e-05
  %v218 = vadd.f32 %v202, 1e-05
  %v219 = vadd.f32 %v203, 1e-05
  %v220 = vadd.f32 %v204, 1e-05
  %v221 = vadd.f32 %v205, 1e-05
  %v222 = vadd.f32 %v206, 1e-05
  %v223 = vadd.f32 %v207, 1e-05
  %v224 = vadd.f32 %v208, 1e-05
  %v225 = vadd.f32 %v209, 1e-05
  %v226 = vadd.f32 %v210, 1e-05
  %v227 = vrsqrt.pop %v211
  %v228 = vmul.f32 %v227, %v211
  %v229 = vmul.f32 %v228, %v227
  %v230 = vmul.f32 0.5, %v229
  %v231 = vsub.f32 1.5, %v230
  %v232 = vmul.f32 %v227, %v231
  %vm233 = vweird.f32 %v211
  %vm234 = vweird.f32 %v227
  %vm235 = vmor %vm233, %vm234
  %v236 = vsel %vm235, %v227, %v232
  %v237 = vrsqrt.pop %v212
  %v238 = vmul.f32 %v237, %v212
  %v239 = vmul.f32 %v238, %v237
  %v240 = vmul.f32 0.5, %v239
  %v241 = vsub.f32 1.5, %v240
  %v242 = vmul.f32 %v237, %v241
  %vm243 = vweird.f32 %v212
  %vm244 = vweird.f32 %v237
  %vm245 = vmor %vm243, %vm244
  %v246 = vsel %vm245, %v237, %v242
  %v247 = vrsqrt.pop %v213
  %v248 = vmul.f32 %v247, %v213
  %v249 = vmul.f32 %v248, %v247
  %v250 = vmul.f32 0.5, %v249
  %v251 = vsub.f32 1.5, %v250
  %v252 = vmul.f32 %v247, %v251
  %vm253 = vweird.f32 %v213
  %vm254 = vweird.f32 %v247
  %vm255 = vmor %vm253, %vm254
  %v256 = vsel %vm255, %v247, %v252
  %v257 = vrsqrt.pop %v214
  %v258 = vmul.f32 %v257, %v214
  %v259 = vmul.f32 %v258, %v257
  %v260 = vmul.f32 0.5, %v259
  %v261 = vsub.f32 1.5, %v260
  %v262 = vmul.f32 %v257, %v261
  %vm263 = vweird.f32 %v214
  %vm264 = vweird.f32 %v257
  %vm265 = vmor %vm263, %vm264
  %v266 = vsel %vm265, %v257, %v262
  %v267 = vrsqrt.pop %v215
  %v268 = vmul.f32 %v267, %v215
  %v269 = vmul.f32 %v268, %v267
  %v270 = vmul.f32 0.5, %v269
  %v271 = vsub.f32 1.5, %v270
  %v272 = vmul.f32 %v267, %v271
  %vm273 = vweird.f32 %v215
  %vm274 = vweird.f32 %v267
  %vm275 = vmor %vm273, %vm274
  %v276 = vsel %vm275, %v267, %v272
  %v277 = vrsqrt.pop %v216
  %v278 = vmul.f32 %v277, %v216
  %v279 = vmul.f32 %v278, %v277
  %v280 = vmul.f32 0.5, %v279
  %v281 = vsub.f32 1.5, %v280
  %v282 = vmul.f32 %v277, %v281
  %vm283 = vweird.f32 %v216
  %vm284 = vweird.f32 %v277
  %vm285 = vmor %vm283, %vm284
  %v286 = vsel %vm285, %v277, %v282
  %v287 = vrsqrt.pop %v217
  %v288 = vmul.f32 %v287, %v217
  %v289 = vmul.f32 %v288, %v287
  %v290 = vmul.f32 0.5, %v289
  %v291 = vsub.f32 1.5, %v290
  %v292 = vmul.f32 %v287, %v291
  %vm293 = vweird.f32 %v217
  %vm294 = vweird.f32 %v287
  %vm295 = vmor %vm293, %vm294
  %v296 = vsel %vm295, %v287, %v292
  %v297 = vrsqrt.pop %v218
  %v298 = vmul.f32 %v297, %v218
  %v299 = vmul.f32 %v298, %v297
  %v300 = vmul.f32 0.5, %v299
  %v301 = vsub.f32 1.5, %v300
  %v302 = vmul.f32 %v297, %v301
  %vm303 = vweird.f32 %v218
  %vm304 = vweird.f32 %v297
  %vm305 = vmor %vm303, %vm304
  %v306 = vsel %vm305, %v297, %v302
  %v307 = vrsqrt.pop %v219
  %v308 = vmul.f32 %v307, %v219
  %v309 = vmul.f32 %v308, %v307
  %v310 = vmul.f32 0.5, %v309
  %v311 = vsub.f32 1.5, %v310
  %v312 = vmul.f32 %v307, %v311
  %vm313 = vweird.f32 %v219
  %vm314 = vweird.f32 %v307
  %vm315 = vmor %vm313, %vm314
  %v316 = vsel %vm315, %v307, %v312
  %v317 = vrsqrt.pop %v220
  %v318 = vmul.f32 %v317, %v220
  %v319 = vmul.f32 %v318, %v317
  %v320 = vmul.f32 0.5, %v319
  %v321 = vsub.f32 1.5, %v320
  %v322 = vmul.f32 %v317, %v321
  %vm323 = vweird.f32 %v220
  %vm324 = vweird.f32 %v317
  %vm325 = vmor %vm323, %vm324
  %v326 = vsel %vm325, %v317, %v322
  %v327 = vrsqrt.pop %v221
  %v328 = vmul.f32 %v327, %v221
  %v329 = vmul.f32 %v328, %v327
  %v330 = vmul.f32 0.5, %v329
  %v331 = vsub.f32 1.5, %v330
  %v332 = vmul.f32 %v327, %v331
  %vm333 = vweird.f32 %v221
  %vm334 = vweird.f32 %v327
  %vm335 = vmor %vm333, %vm334
  %v336 = vsel %vm335, %v327, %v332
  %v337 = vrsqrt.pop %v222
  %v338 = vmul.f32 %v337, %v222
  %v339 = vmul.f32 %v338, %v337
  %v340 = vmul.f32 0.5, %v339
  %v341 = vsub.f32 1.5, %v340
  %v342 = vmul.f32 %v337, %v341
  %vm343 = vweird.f32 %v222
  %vm344 = vweird.f32 %v337
  %vm345 = vmor %vm343, %vm344
  %v346 = vsel %vm345, %v337, %v342
  %v347 = vrsqrt.pop %v223
  %v348 = vmul.f32 %v347, %v223
  %v349 = vmul.f32 %v348, %v347
  %v350 = vmul.f32 0.5, %v349
  %v351 = vsub.f32 1.5, %v350
  %v352 = vmul.f32 %v347, %v351
  %vm353 = vweird.f32 %v223
  %vm354 = vweird.f32 %v347
  %vm355 = vmor %vm353, %vm354
  %v356 = vsel %vm355, %v347, %v352
  %v357 = vrsqrt.pop %v224
  %v358 = vmul.f32 %v357, %v224
  %v359 = vmul.f32 %v358, %v357
  %v360 = vmul.f32 0.5, %v359
  %v361 = vsub.f32 1.5, %v360
  %v362 = vmul.f32 %v357, %v361
  %vm363 = vweird.f32 %v224
  %vm364 = vweird.f32 %v357
  %vm365 = vmor %vm363, %vm364
  %v366 = vsel %vm365, %v357, %v362
  %v367 = vrsqrt.pop %v225
  %v368 = vmul.f32 %v367, %v225
  %v369 = vmul.f32 %v368, %v367
  %v370 = vmul.f32 0.5, %v369
  %v371 = vsub.f32 1.5, %v370
  %v372 = vmul.f32 %v367, %v371
  %vm373 = vweird.f32 %v225
  %vm374 = vweird.f32 %v367
  %vm375 = vmor %vm373, %vm374
  %v376 = vsel %vm375, %v367, %v372
  %v377 = vrsqrt.pop %v226
  %v378 = vmul.f32 %v377, %v226
  %v379 = vmul.f32 %v378, %v377
  %v380 = vmul.f32 0.5, %v379
  %v381 = vsub.f32 1.5, %v380
  %v382 = vmul.f32 %v377, %v381
  %vm383 = vweird.f32 %v226
  %vm384 = vweird.f32 %v377
  %vm385 = vmor %vm383, %vm384
  %v386 = vsel %vm385, %v377, %v382
  %v387 = vmul.f32 %v115, %v236
  %v388 = vmul.f32 %v116, %v246
  %v389 = vmul.f32 %v117, %v256
  %v390 = vmul.f32 %v118, %v266
  %v391 = vmul.f32 %v119, %v276
  %v392 = vmul.f32 %v120, %v286
  %v393 = vmul.f32 %v121, %v296
  %v394 = vmul.f32 %v122, %v306
  %v395 = vmul.f32 %v123, %v316
  %v396 = vmul.f32 %v124, %v326
  %v397 = vmul.f32 %v125, %v336
  %v398 = vmul.f32 %v126, %v346
  %v399 = vmul.f32 %v127, %v356
  %v400 = vmul.f32 %v128, %v366
  %v401 = vmul.f32 %v129, %v376
  %v402 = vmul.f32 %v130, %v386
  %v403 = vperm.slane %v41, 0
  %v404 = vmul.f32 %v387, %v403
  %v405 = vmul.f32 %v388, %v403
  %v406 = vmul.f32 %v389, %v403
  %v407 = vmul.f32 %v390, %v403
  %v408 = vmul.f32 %v391, %v403
  %v409 = vmul.f32 %v392, %v403
  %v410 = vmul.f32 %v393, %v403
  %v411 = vmul.f32 %v394, %v403
  %v412 = vmul.f32 %v395, %v403
  %v413 = vmul.f32 %v396, %v403
  %v414 = vmul.f32 %v397, %v403
  %v415 = vmul.f32 %v398, %v403
  %v416 = vmul.f32 %v399, %v403
  %v417 = vmul.f32 %v400, %v403
  %v418 = vmul.f32 %v401, %v403
  %v419 = vmul.f32 %v402, %v403
  %v420 = vperm.slane %v42, 0
  %v421 = vadd.f32 %v404, %v420
  %v422 = vadd.f32 %v405, %v420
  %v423 = vadd.f32 %v406, %v420
  %v424 = vadd.f32 %v407, %v420
  %v425 = vadd.f32 %v408, %v420
  %v426 = vadd.f32 %v409, %v420
  %v427 = vadd.f32 %v410, %v420
  %v428 = vadd.f32 %v411, %v420
  %v429 = vadd.f32 %v412, %v420
  %v430 = vadd.f32 %v413, %v420
  %v431 = vadd.f32 %v414, %v420
  %v432 = vadd.f32 %v415, %v420
  %v433 = vadd.f32 %v416, %v420
  %v434 = vadd.f32 %v417, %v420
  %v435 = vadd.f32 %v418, %v420
  %v436 = vadd.f32 %v419, %v420
  %v437 = vpack.c.bf16 %v422, %v421
  %v438 = vpack.c.bf16 %v424, %v423
  %v439 = vpack.c.bf16 %v426, %v425
  %v440 = vpack.c.bf16 %v428, %v427
  %v441 = vpack.c.bf16 %v430, %v429
  %v442 = vpack.c.bf16 %v432, %v431
  %v443 = vpack.c.bf16 %v434, %v433
  %v444 = vpack.c.bf16 %v436, %v435
  %v445 = vld [vmem:[%s2] sm:$0x1]
  %v446 = vld [vmem:[%s2 + $0x8] sm:$0x1]
  %v447 = vsel %vm43, %v37, 0.0
  %448 = vadd.xlane.f32.xlu0 %v447
  %v449 = vpop.xlane.xlu0 %448
  %v450 = vsel %vm43, %v38, 0.0
  %451 = vadd.xlane.f32.xlu0 %v450
  %v452 = vpop.xlane.xlu0 %451
  %v453 = vsel %vm43, %v39, 0.0
  %454 = vadd.xlane.f32.xlu0 %v453
  %v455 = vpop.xlane.xlu0 %454
  %v456 = vsel %vm43, %v40, 0.0
  %457 = vadd.xlane.f32.xlu0 %v456
  %v458 = vpop.xlane.xlu0 %457
  %v459 = vmul.f32 %v449, %v98
  %v460 = vmul.f32 %v452, %v98
  %v461 = vmul.f32 %v455, %v98
  %v462 = vmul.f32 %v458, %v98
  %v463 = vsub.f32 %v37, %v459
  %v464 = vsub.f32 %v38, %v460
  %v465 = vsub.f32 %v39, %v461
  %v466 = vsub.f32 %v40, %v462
  %v467 = vmul.f32 %v463, %v463
  %v468 = vmul.f32 %v464, %v464
  %v469 = vmul.f32 %v465, %v465
  %v470 = vmul.f32 %v466, %v466
  %v471 = vsel %vm43, %v467, 0.0
  %472 = vadd.xlane.f32.xlu0 %v471
  %v473 = vpop.xlane.xlu0 %472
  %v474 = vsel %vm43, %v468, 0.0
  %475 = vadd.xlane.f32.xlu0 %v474
  %v476 = vpop.xlane.xlu0 %475
  %v477 = vsel %vm43, %v469, 0.0
  %478 = vadd.xlane.f32.xlu0 %v477
  %v479 = vpop.xlane.xlu0 %478
  %v480 = vsel %vm43, %v470, 0.0
  %481 = vadd.xlane.f32.xlu0 %v480
  %v482 = vpop.xlane.xlu0 %481
  %v483 = vmul.f32 %v473, %v98
  %v484 = vmul.f32 %v476, %v98
  %v485 = vmul.f32 %v479, %v98
  %v486 = vmul.f32 %v482, %v98
  %v487 = vadd.f32 %v483, 1e-05
  %v488 = vadd.f32 %v484, 1e-05
  %v489 = vadd.f32 %v485, 1e-05
  %v490 = vadd.f32 %v486, 1e-05
  %v491 = vrsqrt.pop %v487
  %v492 = vmul.f32 %v491, %v487
  %v493 = vmul.f32 %v492, %v491
  %v494 = vmul.f32 0.5, %v493
  %v495 = vsub.f32 1.5, %v494
  %v496 = vmul.f32 %v491, %v495
  %vm497 = vweird.f32 %v487
  %vm498 = vweird.f32 %v491
  %vm499 = vmor %vm497, %vm498
  %v500 = vsel %vm499, %v491, %v496
  %v501 = vrsqrt.pop %v488
  %v502 = vmul.f32 %v501, %v488
  %v503 = vmul.f32 %v502, %v501
  %v504 = vmul.f32 0.5, %v503
  %v505 = vsub.f32 1.5, %v504
  %v506 = vmul.f32 %v501, %v505
  %vm507 = vweird.f32 %v488
  %vm508 = vweird.f32 %v501
  %vm509 = vmor %vm507, %vm508
  %v510 = vsel %vm509, %v501, %v506
  %v511 = vrsqrt.pop %v489
  %v512 = vmul.f32 %v511, %v489
  %v513 = vmul.f32 %v512, %v511
  %v514 = vmul.f32 0.5, %v513
  %v515 = vsub.f32 1.5, %v514
  %v516 = vmul.f32 %v511, %v515
  %vm517 = vweird.f32 %v489
  %vm518 = vweird.f32 %v511
  %vm519 = vmor %vm517, %vm518
  %v520 = vsel %vm519, %v511, %v516
  %v521 = vrsqrt.pop %v490
  %v522 = vmul.f32 %v521, %v490
  %v523 = vmul.f32 %v522, %v521
  %v524 = vmul.f32 0.5, %v523
  %v525 = vsub.f32 1.5, %v524
  %v526 = vmul.f32 %v521, %v525
  %vm527 = vweird.f32 %v490
  %vm528 = vweird.f32 %v521
  %vm529 = vmor %vm527, %vm528
  %v530 = vsel %vm529, %v521, %v526
  %v531 = vmul.f32 %v463, %v500
  %v532 = vmul.f32 %v464, %v510
  %v533 = vmul.f32 %v465, %v520
  %v534 = vmul.f32 %v466, %v530
  %v535 = vperm.slane %v445, 0
  %v536 = vmul.f32 %v531, %v535
  %v537 = vmul.f32 %v532, %v535
  %v538 = vmul.f32 %v533, %v535
  %v539 = vmul.f32 %v534, %v535
  %v540 = vperm.slane %v446, 0
  %v541 = vadd.f32 %v536, %v540
  %v542 = vadd.f32 %v537, %v540
  %v543 = vadd.f32 %v538, %v540
  %v544 = vadd.f32 %v539, %v540
  %v545 = vpack.c.bf16 %v542, %v541
  %v546 = vpack.c.bf16 %v544, %v543
  %v547 = vld [vmem:[%s3] sm:$0xf]
  %v548 = vld [vmem:[%s3 + $0x4] sm:$0xf]
  %v549 = vld [vmem:[%s3 + $0x8] sm:$0xf]
  %v550 = vld [vmem:[%s3 + $0xc] sm:$0xf]
  %v551 = vld [vmem:[%s3 + $0x10] sm:$0xf]
  %v552 = vld [vmem:[%s3 + $0x14] sm:$0xf]
  %v553 = vld [vmem:[%s3 + $0x18] sm:$0xf]
  %v554 = vld [vmem:[%s3 + $0x1c] sm:$0xf]
  %v555 = vld [vmem:[%s3 + $0x20] sm:$0xf]
  %v556 = vld [vmem:[%s3 + $0x24] sm:$0xf]
  %v557 = vld [vmem:[%s3 + $0x28] sm:$0xf]
  %v558 = vld [vmem:[%s3 + $0x2c] sm:$0xf]
  %v559 = vld [vmem:[%s2 + $0x20] sm:$0x1]
  %v560 = vperm.slane %v559, 0
  %v565 = vunpack.c.l.b16 %v547
  %v566 = vunpack.c.l.b16 %v548
  %v567 = vunpack.c.l.b16 %v549
  %v568 = vunpack.c.l.b16 %v550
  %v569 = vpack.c.b16 %v566, %v565
  %v570 = vpack.c.b16 %v568, %v567
  %v574 = vsel %vm43, %v437, 0
  %v577 = vsel %vm43, %v438, 0
  %v580 = vsel %vm43, %v439, 0
  %v583 = vsel %vm43, %v440, 0
  %v586 = vsel %vm43, %v441, 0
  %v589 = vsel %vm43, %v442, 0
  %v592 = vsel %vm43, %v443, 0
  %v595 = vsel %vm43, %v444, 0
  %597 = vmatpush.bf16.msra.mxu0 0
  %598 = vmatpush.bf16.msra.mxu0 0
  %599 = vmatpush.bf16.msra.mxu0 0
  %600 = vmatpush.bf16.msra.mxu0 0
  %601 = vmatpush.bf16.msra.mxu0 0
  %602 = vmatpush.bf16.msra.mxu0 0
  %603 = vmatpush.bf16.msra.mxu0 %v570
  %604 = vmatpush.bf16.msra.mxu0 %v569
  %605 = vmatmul.bf16.gmra.mxu0 %v574
  %v606 = vpop.f32.mrf.mxu0
  %v607 = vadd.f32 %v560, %v606
  %v608 = vpop.f32.mrf.mxu0
  %v609 = vadd.f32 %v560, %v608
  %610 = vmatmul.bf16.gmra.mxu0 %v577
  %v611 = vpop.f32.mrf.mxu0
  %v612 = vadd.f32 %v560, %v611
  %v613 = vpop.f32.mrf.mxu0
  %v614 = vadd.f32 %v560, %v613
  %615 = vmatmul.bf16.gmra.mxu0 %v580
  %v616 = vpop.f32.mrf.mxu0
  %v617 = vadd.f32 %v560, %v616
  %v618 = vpop.f32.mrf.mxu0
  %v619 = vadd.f32 %v560, %v618
  %620 = vmatmul.bf16.gmra.mxu0 %v583
  %v621 = vpop.f32.mrf.mxu0
  %v622 = vadd.f32 %v560, %v621
  %v623 = vpop.f32.mrf.mxu0
  %v624 = vadd.f32 %v560, %v623
  %625 = vmatmul.bf16.gmra.mxu0 %v586
  %v626 = vpop.f32.mrf.mxu0
  %v627 = vadd.f32 %v560, %v626
  %v628 = vpop.f32.mrf.mxu0
  %v629 = vadd.f32 %v560, %v628
  %630 = vmatmul.bf16.gmra.mxu0 %v589
  %v631 = vpop.f32.mrf.mxu0
  %v632 = vadd.f32 %v560, %v631
  %v633 = vpop.f32.mrf.mxu0
  %v634 = vadd.f32 %v560, %v633
  %635 = vmatmul.bf16.gmra.mxu0 %v592
  %v636 = vpop.f32.mrf.mxu0
  %v637 = vadd.f32 %v560, %v636
  %v638 = vpop.f32.mrf.mxu0
  %v639 = vadd.f32 %v560, %v638
  %640 = vmatmul.bf16.gmra.mxu0 %v595
  %v641 = vpop.f32.mrf.mxu0
  %v642 = vadd.f32 %v560, %v641
  %v643 = vpop.f32.mrf.mxu0
  %v644 = vadd.f32 %v560, %v643
  %645 = vdwg.mxu0
  %v646 = vld [vmem:[%s2 + $0x28] sm:$0x1]
  %v647 = vperm.slane %v646, 0
  %v652 = vunpack.c.l.b16 %v551
  %v653 = vunpack.c.l.b16 %v552
  %v654 = vunpack.c.l.b16 %v553
  %v655 = vunpack.c.l.b16 %v554
  %v656 = vpack.c.b16 %v653, %v652
  %v657 = vpack.c.b16 %v655, %v654
  %v661 = vsel %vm43, %v545, 0
  %v664 = vsel %vm43, %v546, 0
  %666 = vmatpush.bf16.msra.mxu0 0
  %667 = vmatpush.bf16.msra.mxu0 0
  %668 = vmatpush.bf16.msra.mxu0 0
  %669 = vmatpush.bf16.msra.mxu0 0
  %670 = vmatpush.bf16.msra.mxu0 0
  %671 = vmatpush.bf16.msra.mxu0 0
  %672 = vmatpush.bf16.msra.mxu0 %v657
  %673 = vmatpush.bf16.msra.mxu0 %v656
  %674 = vmatmul.bf16.gmra.mxu0 %v661
  %v675 = vpop.f32.mrf.mxu0
  %v676 = vadd.f32 %v647, %v675
  %v677 = vpop.f32.mrf.mxu0
  %v678 = vadd.f32 %v647, %v677
  %679 = vmatmul.bf16.gmra.mxu0 %v664
  %v680 = vpop.f32.mrf.mxu0
  %v681 = vadd.f32 %v647, %v680
  %v682 = vpop.f32.mrf.mxu0
  %v683 = vadd.f32 %v647, %v682
  %684 = vdwg.mxu0
  %v685 = vld [vmem:[%s2 + $0x30] sm:$0x1]
  %v686 = vperm.slane %v685, 0
  %v691 = vunpack.c.l.b16 %v555
  %v692 = vunpack.c.l.b16 %v556
  %v693 = vunpack.c.l.b16 %v557
  %v694 = vunpack.c.l.b16 %v558
  %v695 = vpack.c.b16 %v692, %v691
  %v696 = vpack.c.b16 %v694, %v693
  %699 = vmatpush.bf16.msra.mxu0 0
  %700 = vmatpush.bf16.msra.mxu0 0
  %701 = vmatpush.bf16.msra.mxu0 0
  %702 = vmatpush.bf16.msra.mxu0 0
  %703 = vmatpush.bf16.msra.mxu0 0
  %704 = vmatpush.bf16.msra.mxu0 0
  %705 = vmatpush.bf16.msra.mxu0 %v696
  %706 = vmatpush.bf16.msra.mxu0 %v695
  %707 = vmatmul.bf16.gmra.mxu0 %v661
  %v708 = vpop.f32.mrf.mxu0
  %v709 = vadd.f32 %v686, %v708
  %v710 = vpop.f32.mrf.mxu0
  %v711 = vadd.f32 %v686, %v710
  %712 = vmatmul.bf16.gmra.mxu0 %v664
  %v713 = vpop.f32.mrf.mxu0
  %v714 = vadd.f32 %v686, %v713
  %v715 = vpop.f32.mrf.mxu0
  %v716 = vadd.f32 %v686, %v715
  %717 = vdwg.mxu0
  %v718 = vrot.slane %v607, 7
  %v719 = vrot.slane %v609, 7
  %v720 = vrot.slane %v612, 7
  %v721 = vrot.slane %v614, 7
  %v722 = vrot.slane %v617, 7
  %v723 = vrot.slane %v619, 7
  %v724 = vrot.slane %v622, 7
  %v725 = vrot.slane %v624, 7
  %v726 = vrot.slane %v627, 7
  %v727 = vrot.slane %v629, 7
  %v728 = vrot.slane %v632, 7
  %v729 = vrot.slane %v634, 7
  %v730 = vrot.slane %v637, 7
  %v731 = vrot.slane %v639, 7
  %v732 = vrot.slane %v642, 7
  %v733 = vrot.slane %v644, 7
  %v734 = vlaneseq
  %v735 = vshrl.u32 %v734, 7
  %vm736 = vcmp.lt.s32.totalorder %v735, 1
  %v737 = vsel %vm736, %v732, %v733
  %v738 = vsel %vm736, %v731, %v732
  %v739 = vsel %vm736, %v730, %v731
  %v740 = vsel %vm736, %v729, %v730
  %v741 = vsel %vm736, %v728, %v729
  %v742 = vsel %vm736, %v727, %v728
  %v743 = vsel %vm736, %v726, %v727
  %v744 = vsel %vm736, %v725, %v726
  %v745 = vsel %vm736, %v724, %v725
  %v746 = vsel %vm736, %v723, %v724
  %v747 = vsel %vm736, %v722, %v723
  %v748 = vsel %vm736, %v721, %v722
  %v749 = vsel %vm736, %v720, %v721
  %v750 = vsel %vm736, %v719, %v720
  %v751 = vsel %vm736, %v718, %v719
  %v752 = vsel %vm736, %v733, %v718
  %v753 = vld [vmem:[%s3 + $0x1e0] sm:$0xf]
  %v754 = vld [vmem:[%s3 + $0x1e4] sm:$0xf]
  %v755 = vld [vmem:[%s3 + $0x1e8] sm:$0xf]
  %v756 = vld [vmem:[%s3 + $0x1ec] sm:$0xf]
  %v757 = vld [vmem:[%s3 + $0x1f0] sm:$0xf]
  %v758 = vld [vmem:[%s3 + $0x1f4] sm:$0xf]
  %v759 = vld [vmem:[%s3 + $0x1f8] sm:$0xf]
  %v760 = vld [vmem:[%s3 + $0x1fc] sm:$0xf]
  %v761 = vld [vmem:[%s3 + $0x200] sm:$0xf]
  %v762 = vld [vmem:[%s3 + $0x204] sm:$0xf]
  %v763 = vld [vmem:[%s3 + $0x208] sm:$0xf]
  %v764 = vld [vmem:[%s3 + $0x20c] sm:$0xf]
  %v765 = vld [vmem:[%s3 + $0x210] sm:$0xf]
  %v766 = vld [vmem:[%s3 + $0x214] sm:$0xf]
  %v767 = vld [vmem:[%s3 + $0x218] sm:$0xf]
  %v768 = vld [vmem:[%s3 + $0x21c] sm:$0xf]
  %v769 = vld [vmem:[%s3 + $0x80] sm:$0xf]
  %v770 = vld [vmem:[%s3 + $0x84] sm:$0xf]
  %v771 = vld [vmem:[%s3 + $0x88] sm:$0xf]
  %v772 = vld [vmem:[%s3 + $0x8c] sm:$0xf]
  %v773 = vpack.c.bf16 %v737, %v737
  %v774 = vpack.c.bf16 %v752, %v752
  %v775 = vpack.c.bf16 %v751, %v751
  %v776 = vpack.c.bf16 %v750, %v750
  %v777 = vpack.c.bf16 %v749, %v749
  %v778 = vpack.c.bf16 %v748, %v748
  %v779 = vpack.c.bf16 %v747, %v747
  %v780 = vpack.c.bf16 %v746, %v746
  %v781 = vpack.c.bf16 %v745, %v745
  %v782 = vpack.c.bf16 %v744, %v744
  %v783 = vpack.c.bf16 %v743, %v743
  %v784 = vpack.c.bf16 %v742, %v742
  %v785 = vpack.c.bf16 %v741, %v741
  %v786 = vpack.c.bf16 %v740, %v740
  %v787 = vpack.c.bf16 %v739, %v739
  %v788 = vpack.c.bf16 %v738, %v738
  %v789 = vunpack.c.l.bf16 %v773
  %v790 = vunpack.c.l.bf16 %v774
  %v791 = vunpack.c.l.bf16 %v775
  %v792 = vunpack.c.l.bf16 %v776
  %v793 = vunpack.c.l.bf16 %v777
  %v794 = vunpack.c.l.bf16 %v778
  %v795 = vunpack.c.l.bf16 %v779
  %v796 = vunpack.c.l.bf16 %v780
  %v797 = vunpack.c.l.bf16 %v781
  %v798 = vunpack.c.l.bf16 %v782
  %v799 = vunpack.c.l.bf16 %v783
  %v800 = vunpack.c.l.bf16 %v784
  %v801 = vunpack.c.l.bf16 %v785
  %v802 = vunpack.c.l.bf16 %v786
  %v803 = vunpack.c.l.bf16 %v787
  %v804 = vunpack.c.l.bf16 %v788
  %v805 = vunpack.c.l.bf16 %v753
  %v806 = vunpack.c.l.bf16 %v754
  %v807 = vunpack.c.l.bf16 %v755
  %v808 = vunpack.c.l.bf16 %v756
  %v809 = vunpack.c.l.bf16 %v757
  %v810 = vunpack.c.l.bf16 %v758
  %v811 = vunpack.c.l.bf16 %v759
  %v812 = vunpack.c.l.bf16 %v760
  %v813 = vunpack.c.l.bf16 %v761
  %v814 = vunpack.c.l.bf16 %v762
  %v815 = vunpack.c.l.bf16 %v763
  %v816 = vunpack.c.l.bf16 %v764
  %v817 = vunpack.c.l.bf16 %v765
  %v818 = vunpack.c.l.bf16 %v766
  %v819 = vunpack.c.l.bf16 %v767
  %v820 = vunpack.c.l.bf16 %v768
  %v821 = vmul.f32 %v789, %v805
  %v822 = vmul.f32 %v790, %v806
  %v823 = vmul.f32 %v791, %v807
  %v824 = vmul.f32 %v792, %v808
  %v825 = vmul.f32 %v793, %v809
  %v826 = vmul.f32 %v794, %v810
  %v827 = vmul.f32 %v795, %v811
  %v828 = vmul.f32 %v796, %v812
  %v829 = vmul.f32 %v797, %v813
  %v830 = vmul.f32 %v798, %v814
  %v831 = vmul.f32 %v799, %v815
  %v832 = vmul.f32 %v800, %v816
  %v833 = vmul.f32 %v801, %v817
  %v834 = vmul.f32 %v802, %v818
  %v835 = vmul.f32 %v803, %v819
  %v836 = vmul.f32 %v804, %v820
  %v837 = vpack.c.bf16 %v822, %v821
  %v838 = vpack.c.bf16 %v824, %v823
  %v839 = vpack.c.bf16 %v826, %v825
  %v840 = vpack.c.bf16 %v828, %v827
  %v841 = vpack.c.bf16 %v830, %v829
  %v842 = vpack.c.bf16 %v832, %v831
  %v843 = vpack.c.bf16 %v834, %v833
  %v844 = vpack.c.bf16 %v836, %v835
  %v845 = vld [vmem:[%s3 + $0x220] sm:$0xf]
  %v846 = vld [vmem:[%s3 + $0x224] sm:$0xf]
  %v847 = vld [vmem:[%s3 + $0x228] sm:$0xf]
  %v848 = vld [vmem:[%s3 + $0x22c] sm:$0xf]
  %v849 = vld [vmem:[%s3 + $0x230] sm:$0xf]
  %v850 = vld [vmem:[%s3 + $0x234] sm:$0xf]
  %v851 = vld [vmem:[%s3 + $0x238] sm:$0xf]
  %v852 = vld [vmem:[%s3 + $0x23c] sm:$0xf]
  %v853 = vld [vmem:[%s3 + $0x240] sm:$0xf]
  %v854 = vld [vmem:[%s3 + $0x244] sm:$0xf]
  %v855 = vld [vmem:[%s3 + $0x248] sm:$0xf]
  %v856 = vld [vmem:[%s3 + $0x24c] sm:$0xf]
  %v857 = vld [vmem:[%s3 + $0x250] sm:$0xf]
  %v858 = vld [vmem:[%s3 + $0x254] sm:$0xf]
  %v859 = vld [vmem:[%s3 + $0x258] sm:$0xf]
  %v860 = vld [vmem:[%s3 + $0x25c] sm:$0xf]
  %v861 = vld [vmem:[%s3 + $0x90] sm:$0xf]
  %v862 = vld [vmem:[%s3 + $0x94] sm:$0xf]
  %v863 = vld [vmem:[%s3 + $0x98] sm:$0xf]
  %v864 = vld [vmem:[%s3 + $0x9c] sm:$0xf]
  %v865 = vpack.c.bf16 %v644, %v644
  %v866 = vpack.c.bf16 %v607, %v607
  %v867 = vpack.c.bf16 %v609, %v609
  %v868 = vpack.c.bf16 %v612, %v612
  %v869 = vpack.c.bf16 %v614, %v614
  %v870 = vpack.c.bf16 %v617, %v617
  %v871 = vpack.c.bf16 %v619, %v619
  %v872 = vpack.c.bf16 %v622, %v622
  %v873 = vpack.c.bf16 %v624, %v624
  %v874 = vpack.c.bf16 %v627, %v627
  %v875 = vpack.c.bf16 %v629, %v629
  %v876 = vpack.c.bf16 %v632, %v632
  %v877 = vpack.c.bf16 %v634, %v634
  %v878 = vpack.c.bf16 %v637, %v637
  %v879 = vpack.c.bf16 %v639, %v639
  %v880 = vpack.c.bf16 %v642, %v642
  %v881 = vunpack.c.l.bf16 %v865
  %v882 = vunpack.c.l.bf16 %v866
  %v883 = vunpack.c.l.bf16 %v867
  %v884 = vunpack.c.l.bf16 %v868
  %v885 = vunpack.c.l.bf16 %v869
  %v886 = vunpack.c.l.bf16 %v870
  %v887 = vunpack.c.l.bf16 %v871
  %v888 = vunpack.c.l.bf16 %v872
  %v889 = vunpack.c.l.bf16 %v873
  %v890 = vunpack.c.l.bf16 %v874
  %v891 = vunpack.c.l.bf16 %v875
  %v892 = vunpack.c.l.bf16 %v876
  %v893 = vunpack.c.l.bf16 %v877
  %v894 = vunpack.c.l.bf16 %v878
  %v895 = vunpack.c.l.bf16 %v879
  %v896 = vunpack.c.l.bf16 %v880
  %v897 = vunpack.c.l.bf16 %v845
  %v898 = vunpack.c.l.bf16 %v846
  %v899 = vunpack.c.l.bf16 %v847
  %v900 = vunpack.c.l.bf16 %v848
  %v901 = vunpack.c.l.bf16 %v849
  %v902 = vunpack.c.l.bf16 %v850
  %v903 = vunpack.c.l.bf16 %v851
  %v904 = vunpack.c.l.bf16 %v852
  %v905 = vunpack.c.l.bf16 %v853
  %v906 = vunpack.c.l.bf16 %v854
  %v907 = vunpack.c.l.bf16 %v855
  %v908 = vunpack.c.l.bf16 %v856
  %v909 = vunpack.c.l.bf16 %v857
  %v910 = vunpack.c.l.bf16 %v858
  %v911 = vunpack.c.l.bf16 %v859
  %v912 = vunpack.c.l.bf16 %v860
  %v913 = vmul.f32 %v881, %v897
  %v914 = vmul.f32 %v882, %v898
  %v915 = vmul.f32 %v883, %v899
  %v916 = vmul.f32 %v884, %v900
  %v917 = vmul.f32 %v885, %v901
  %v918 = vmul.f32 %v886, %v902
  %v919 = vmul.f32 %v887, %v903
  %v920 = vmul.f32 %v888, %v904
  %v921 = vmul.f32 %v889, %v905
  %v922 = vmul.f32 %v890, %v906
  %v923 = vmul.f32 %v891, %v907
  %v924 = vmul.f32 %v892, %v908
  %v925 = vmul.f32 %v893, %v909
  %v926 = vmul.f32 %v894, %v910
  %v927 = vmul.f32 %v895, %v911
  %v928 = vmul.f32 %v896, %v912
  %v929 = vpack.c.bf16 %v914, %v913
  %v930 = vpack.c.bf16 %v916, %v915
  %v931 = vpack.c.bf16 %v918, %v917
  %v932 = vpack.c.bf16 %v920, %v919
  %v933 = vpack.c.bf16 %v922, %v921
  %v934 = vpack.c.bf16 %v924, %v923
  %v935 = vpack.c.bf16 %v926, %v925
  %v936 = vpack.c.bf16 %v928, %v927
  %v941 = vunpack.c.l.b16 %v861
  %v942 = vunpack.c.l.b16 %v862
  %v943 = vunpack.c.l.b16 %v863
  %v944 = vunpack.c.l.b16 %v864
  %v945 = vpack.c.b16 %v942, %v941
  %v946 = vpack.c.b16 %v944, %v943
  %v950 = vsel %vm43, %v929, 0
  %v953 = vsel %vm43, %v930, 0
  %v956 = vsel %vm43, %v931, 0
  %v959 = vsel %vm43, %v932, 0
  %v962 = vsel %vm43, %v933, 0
  %v965 = vsel %vm43, %v934, 0
  %v968 = vsel %vm43, %v935, 0
  %v971 = vsel %vm43, %v936, 0
  %973 = vmatpush.bf16.msra.mxu0 0
  %974 = vmatpush.bf16.msra.mxu0 0
  %975 = vmatpush.bf16.msra.mxu0 0
  %976 = vmatpush.bf16.msra.mxu0 0
  %977 = vmatpush.bf16.msra.mxu0 0
  %978 = vmatpush.bf16.msra.mxu0 0
  %979 = vmatpush.bf16.msra.mxu0 %v946
  %980 = vmatpush.bf16.msra.mxu0 %v945
  %981 = vmatmul.bf16.gmra.mxu0 %v950
  %v982 = vpop.f32.mrf.mxu0
  %v983 = vadd.f32 0.0, %v982
  %v984 = vpop.f32.mrf.mxu0
  %v985 = vadd.f32 0.0, %v984
  %986 = vmatmul.bf16.gmra.mxu0 %v953
  %v987 = vpop.f32.mrf.mxu0
  %v988 = vadd.f32 0.0, %v987
  %v989 = vpop.f32.mrf.mxu0
  %v990 = vadd.f32 0.0, %v989
  %991 = vmatmul.bf16.gmra.mxu0 %v956
  %v992 = vpop.f32.mrf.mxu0
  %v993 = vadd.f32 0.0, %v992
  %v994 = vpop.f32.mrf.mxu0
  %v995 = vadd.f32 0.0, %v994
  %996 = vmatmul.bf16.gmra.mxu0 %v959
  %v997 = vpop.f32.mrf.mxu0
  %v998 = vadd.f32 0.0, %v997
  %v999 = vpop.f32.mrf.mxu0
  %v1000 = vadd.f32 0.0, %v999
  %1001 = vmatmul.bf16.gmra.mxu0 %v962
  %v1002 = vpop.f32.mrf.mxu0
  %v1003 = vadd.f32 0.0, %v1002
  %v1004 = vpop.f32.mrf.mxu0
  %v1005 = vadd.f32 0.0, %v1004
  %1006 = vmatmul.bf16.gmra.mxu0 %v965
  %v1007 = vpop.f32.mrf.mxu0
  %v1008 = vadd.f32 0.0, %v1007
  %v1009 = vpop.f32.mrf.mxu0
  %v1010 = vadd.f32 0.0, %v1009
  %1011 = vmatmul.bf16.gmra.mxu0 %v968
  %v1012 = vpop.f32.mrf.mxu0
  %v1013 = vadd.f32 0.0, %v1012
  %v1014 = vpop.f32.mrf.mxu0
  %v1015 = vadd.f32 0.0, %v1014
  %1016 = vmatmul.bf16.gmra.mxu0 %v971
  %v1017 = vpop.f32.mrf.mxu0
  %v1018 = vadd.f32 0.0, %v1017
  %v1019 = vpop.f32.mrf.mxu0
  %v1020 = vadd.f32 0.0, %v1019
  %1021 = vdwg.mxu0
  %v1026 = vunpack.c.l.b16 %v769
  %v1027 = vunpack.c.l.b16 %v770
  %v1028 = vunpack.c.l.b16 %v771
  %v1029 = vunpack.c.l.b16 %v772
  %v1030 = vpack.c.b16 %v1027, %v1026
  %v1031 = vpack.c.b16 %v1029, %v1028
  %v1035 = vsel %vm43, %v837, 0
  %v1038 = vsel %vm43, %v838, 0
  %v1041 = vsel %vm43, %v839, 0
  %v1044 = vsel %vm43, %v840, 0
  %v1047 = vsel %vm43, %v841, 0
  %v1050 = vsel %vm43, %v842, 0
  %v1053 = vsel %vm43, %v843, 0
  %v1056 = vsel %vm43, %v844, 0
  %1058 = vmatpush.bf16.msra.mxu0 0
  %1059 = vmatpush.bf16.msra.mxu0 0
  %1060 = vmatpush.bf16.msra.mxu0 0
  %1061 = vmatpush.bf16.msra.mxu0 0
  %1062 = vmatpush.bf16.msra.mxu0 0
  %1063 = vmatpush.bf16.msra.mxu0 0
  %1064 = vmatpush.bf16.msra.mxu0 %v1031
  %1065 = vmatpush.bf16.msra.mxu0 %v1030
  %1066 = vmatmul.bf16.gmra.mxu0 %v1035
  %v1067 = vpop.f32.mrf.mxu0
  %v1068 = vadd.f32 %v983, %v1067
  %v1069 = vpop.f32.mrf.mxu0
  %v1070 = vadd.f32 %v985, %v1069
  %1071 = vmatmul.bf16.gmra.mxu0 %v1038
  %v1072 = vpop.f32.mrf.mxu0
  %v1073 = vadd.f32 %v988, %v1072
  %v1074 = vpop.f32.mrf.mxu0
  %v1075 = vadd.f32 %v990, %v1074
  %1076 = vmatmul.bf16.gmra.mxu0 %v1041
  %v1077 = vpop.f32.mrf.mxu0
  %v1078 = vadd.f32 %v993, %v1077
  %v1079 = vpop.f32.mrf.mxu0
  %v1080 = vadd.f32 %v995, %v1079
  %1081 = vmatmul.bf16.gmra.mxu0 %v1044
  %v1082 = vpop.f32.mrf.mxu0
  %v1083 = vadd.f32 %v998, %v1082
  %v1084 = vpop.f32.mrf.mxu0
  %v1085 = vadd.f32 %v1000, %v1084
  %1086 = vmatmul.bf16.gmra.mxu0 %v1047
  %v1087 = vpop.f32.mrf.mxu0
  %v1088 = vadd.f32 %v1003, %v1087
  %v1089 = vpop.f32.mrf.mxu0
  %v1090 = vadd.f32 %v1005, %v1089
  %1091 = vmatmul.bf16.gmra.mxu0 %v1050
  %v1092 = vpop.f32.mrf.mxu0
  %v1093 = vadd.f32 %v1008, %v1092
  %v1094 = vpop.f32.mrf.mxu0
  %v1095 = vadd.f32 %v1010, %v1094
  %1096 = vmatmul.bf16.gmra.mxu0 %v1053
  %v1097 = vpop.f32.mrf.mxu0
  %v1098 = vadd.f32 %v1013, %v1097
  %v1099 = vpop.f32.mrf.mxu0
  %v1100 = vadd.f32 %v1015, %v1099
  %1101 = vmatmul.bf16.gmra.mxu0 %v1056
  %v1102 = vpop.f32.mrf.mxu0
  %v1103 = vadd.f32 %v1018, %v1102
  %v1104 = vpop.f32.mrf.mxu0
  %v1105 = vadd.f32 %v1020, %v1104
  %1106 = vdwg.mxu0
  %v1107 = vrot.slane %v607, 1
  %v1108 = vrot.slane %v609, 1
  %v1109 = vrot.slane %v612, 1
  %v1110 = vrot.slane %v614, 1
  %v1111 = vrot.slane %v617, 1
  %v1112 = vrot.slane %v619, 1
  %v1113 = vrot.slane %v622, 1
  %v1114 = vrot.slane %v624, 1
  %v1115 = vrot.slane %v627, 1
  %v1116 = vrot.slane %v629, 1
  %v1117 = vrot.slane %v632, 1
  %v1118 = vrot.slane %v634, 1
  %v1119 = vrot.slane %v637, 1
  %v1120 = vrot.slane %v639, 1
  %v1121 = vrot.slane %v642, 1
  %v1122 = vrot.slane %v644, 1
  %vm1123 = vcmp.lt.s32.totalorder %v735, 7
  %v1124 = vsel %vm1123, %v1121, %v1122
  %v1125 = vsel %vm1123, %v1120, %v1121
  %v1126 = vsel %vm1123, %v1119, %v1120
  %v1127 = vsel %vm1123, %v1118, %v1119
  %v1128 = vsel %vm1123, %v1117, %v1118
  %v1129 = vsel %vm1123, %v1116, %v1117
  %v1130 = vsel %vm1123, %v1115, %v1116
  %v1131 = vsel %vm1123, %v1114, %v1115
  %v1132 = vsel %vm1123, %v1113, %v1114
  %v1133 = vsel %vm1123, %v1112, %v1113
  %v1134 = vsel %vm1123, %v1111, %v1112
  %v1135 = vsel %vm1123, %v1110, %v1111
  %v1136 = vsel %vm1123, %v1109, %v1110
  %v1137 = vsel %vm1123, %v1108, %v1109
  %v1138 = vsel %vm1123, %v1107, %v1108
  %v1139 = vsel %vm1123, %v1122, %v1107
  %v1140 = vld [vmem:[%s3 + $0x260] sm:$0xf]
  %v1141 = vld [vmem:[%s3 + $0x264] sm:$0xf]
  %v1142 = vld [vmem:[%s3 + $0x268] sm:$0xf]
  %v1143 = vld [vmem:[%s3 + $0x26c] sm:$0xf]
  %v1144 = vld [vmem:[%s3 + $0x270] sm:$0xf]
  %v1145 = vld [vmem:[%s3 + $0x274] sm:$0xf]
  %v1146 = vld [vmem:[%s3 + $0x278] sm:$0xf]
  %v1147 = vld [vmem:[%s3 + $0x27c] sm:$0xf]
  %v1148 = vld [vmem:[%s3 + $0x280] sm:$0xf]
  %v1149 = vld [vmem:[%s3 + $0x284] sm:$0xf]
  %v1150 = vld [vmem:[%s3 + $0x288] sm:$0xf]
  %v1151 = vld [vmem:[%s3 + $0x28c] sm:$0xf]
  %v1152 = vld [vmem:[%s3 + $0x290] sm:$0xf]
  %v1153 = vld [vmem:[%s3 + $0x294] sm:$0xf]
  %v1154 = vld [vmem:[%s3 + $0x298] sm:$0xf]
  %v1155 = vld [vmem:[%s3 + $0x29c] sm:$0xf]
  %v1156 = vld [vmem:[%s3 + $0xa0] sm:$0xf]
  %v1157 = vld [vmem:[%s3 + $0xa4] sm:$0xf]
  %v1158 = vld [vmem:[%s3 + $0xa8] sm:$0xf]
  %v1159 = vld [vmem:[%s3 + $0xac] sm:$0xf]
  %v1160 = vpack.c.bf16 %v1139, %v1139
  %v1161 = vpack.c.bf16 %v1138, %v1138
  %v1162 = vpack.c.bf16 %v1137, %v1137
  %v1163 = vpack.c.bf16 %v1136, %v1136
  %v1164 = vpack.c.bf16 %v1135, %v1135
  %v1165 = vpack.c.bf16 %v1134, %v1134
  %v1166 = vpack.c.bf16 %v1133, %v1133
  %v1167 = vpack.c.bf16 %v1132, %v1132
  %v1168 = vpack.c.bf16 %v1131, %v1131
  %v1169 = vpack.c.bf16 %v1130, %v1130
  %v1170 = vpack.c.bf16 %v1129, %v1129
  %v1171 = vpack.c.bf16 %v1128, %v1128
  %v1172 = vpack.c.bf16 %v1127, %v1127
  %v1173 = vpack.c.bf16 %v1126, %v1126
  %v1174 = vpack.c.bf16 %v1125, %v1125
  %v1175 = vpack.c.bf16 %v1124, %v1124
  %v1176 = vunpack.c.l.bf16 %v1160
  %v1177 = vunpack.c.l.bf16 %v1161
  %v1178 = vunpack.c.l.bf16 %v1162
  %v1179 = vunpack.c.l.bf16 %v1163
  %v1180 = vunpack.c.l.bf16 %v1164
  %v1181 = vunpack.c.l.bf16 %v1165
  %v1182 = vunpack.c.l.bf16 %v1166
  %v1183 = vunpack.c.l.bf16 %v1167
  %v1184 = vunpack.c.l.bf16 %v1168
  %v1185 = vunpack.c.l.bf16 %v1169
  %v1186 = vunpack.c.l.bf16 %v1170
  %v1187 = vunpack.c.l.bf16 %v1171
  %v1188 = vunpack.c.l.bf16 %v1172
  %v1189 = vunpack.c.l.bf16 %v1173
  %v1190 = vunpack.c.l.bf16 %v1174
  %v1191 = vunpack.c.l.bf16 %v1175
  %v1192 = vunpack.c.l.bf16 %v1140
  %v1193 = vunpack.c.l.bf16 %v1141
  %v1194 = vunpack.c.l.bf16 %v1142
  %v1195 = vunpack.c.l.bf16 %v1143
  %v1196 = vunpack.c.l.bf16 %v1144
  %v1197 = vunpack.c.l.bf16 %v1145
  %v1198 = vunpack.c.l.bf16 %v1146
  %v1199 = vunpack.c.l.bf16 %v1147
  %v1200 = vunpack.c.l.bf16 %v1148
  %v1201 = vunpack.c.l.bf16 %v1149
  %v1202 = vunpack.c.l.bf16 %v1150
  %v1203 = vunpack.c.l.bf16 %v1151
  %v1204 = vunpack.c.l.bf16 %v1152
  %v1205 = vunpack.c.l.bf16 %v1153
  %v1206 = vunpack.c.l.bf16 %v1154
  %v1207 = vunpack.c.l.bf16 %v1155
  %v1208 = vmul.f32 %v1176, %v1192
  %v1209 = vmul.f32 %v1177, %v1193
  %v1210 = vmul.f32 %v1178, %v1194
  %v1211 = vmul.f32 %v1179, %v1195
  %v1212 = vmul.f32 %v1180, %v1196
  %v1213 = vmul.f32 %v1181, %v1197
  %v1214 = vmul.f32 %v1182, %v1198
  %v1215 = vmul.f32 %v1183, %v1199
  %v1216 = vmul.f32 %v1184, %v1200
  %v1217 = vmul.f32 %v1185, %v1201
  %v1218 = vmul.f32 %v1186, %v1202
  %v1219 = vmul.f32 %v1187, %v1203
  %v1220 = vmul.f32 %v1188, %v1204
  %v1221 = vmul.f32 %v1189, %v1205
  %v1222 = vmul.f32 %v1190, %v1206
  %v1223 = vmul.f32 %v1191, %v1207
  %v1224 = vpack.c.bf16 %v1209, %v1208
  %v1225 = vpack.c.bf16 %v1211, %v1210
  %v1226 = vpack.c.bf16 %v1213, %v1212
  %v1227 = vpack.c.bf16 %v1215, %v1214
  %v1228 = vpack.c.bf16 %v1217, %v1216
  %v1229 = vpack.c.bf16 %v1219, %v1218
  %v1230 = vpack.c.bf16 %v1221, %v1220
  %v1231 = vpack.c.bf16 %v1223, %v1222
  %v1236 = vunpack.c.l.b16 %v1156
  %v1237 = vunpack.c.l.b16 %v1157
  %v1238 = vunpack.c.l.b16 %v1158
  %v1239 = vunpack.c.l.b16 %v1159
  %v1240 = vpack.c.b16 %v1237, %v1236
  %v1241 = vpack.c.b16 %v1239, %v1238
  %v1245 = vsel %vm43, %v1224, 0
  %v1248 = vsel %vm43, %v1225, 0
  %v1251 = vsel %vm43, %v1226, 0
  %v1254 = vsel %vm43, %v1227, 0
  %v1257 = vsel %vm43, %v1228, 0
  %v1260 = vsel %vm43, %v1229, 0
  %v1263 = vsel %vm43, %v1230, 0
  %v1266 = vsel %vm43, %v1231, 0
  %1268 = vmatpush.bf16.msra.mxu0 0
  %1269 = vmatpush.bf16.msra.mxu0 0
  %1270 = vmatpush.bf16.msra.mxu0 0
  %1271 = vmatpush.bf16.msra.mxu0 0
  %1272 = vmatpush.bf16.msra.mxu0 0
  %1273 = vmatpush.bf16.msra.mxu0 0
  %1274 = vmatpush.bf16.msra.mxu0 %v1241
  %1275 = vmatpush.bf16.msra.mxu0 %v1240
  %1276 = vmatmul.bf16.gmra.mxu0 %v1245
  %v1277 = vpop.f32.mrf.mxu0
  %v1278 = vadd.f32 0.0, %v1277
  %v1279 = vpop.f32.mrf.mxu0
  %v1280 = vadd.f32 0.0, %v1279
  %1281 = vmatmul.bf16.gmra.mxu0 %v1248
  %v1282 = vpop.f32.mrf.mxu0
  %v1283 = vadd.f32 0.0, %v1282
  %v1284 = vpop.f32.mrf.mxu0
  %v1285 = vadd.f32 0.0, %v1284
  %1286 = vmatmul.bf16.gmra.mxu0 %v1251
  %v1287 = vpop.f32.mrf.mxu0
  %v1288 = vadd.f32 0.0, %v1287
  %v1289 = vpop.f32.mrf.mxu0
  %v1290 = vadd.f32 0.0, %v1289
  %1291 = vmatmul.bf16.gmra.mxu0 %v1254
  %v1292 = vpop.f32.mrf.mxu0
  %v1293 = vadd.f32 0.0, %v1292
  %v1294 = vpop.f32.mrf.mxu0
  %v1295 = vadd.f32 0.0, %v1294
  %1296 = vmatmul.bf16.gmra.mxu0 %v1257
  %v1297 = vpop.f32.mrf.mxu0
  %v1298 = vadd.f32 0.0, %v1297
  %v1299 = vpop.f32.mrf.mxu0
  %v1300 = vadd.f32 0.0, %v1299
  %1301 = vmatmul.bf16.gmra.mxu0 %v1260
  %v1302 = vpop.f32.mrf.mxu0
  %v1303 = vadd.f32 0.0, %v1302
  %v1304 = vpop.f32.mrf.mxu0
  %v1305 = vadd.f32 0.0, %v1304
  %1306 = vmatmul.bf16.gmra.mxu0 %v1263
  %v1307 = vpop.f32.mrf.mxu0
  %v1308 = vadd.f32 0.0, %v1307
  %v1309 = vpop.f32.mrf.mxu0
  %v1310 = vadd.f32 0.0, %v1309
  %1311 = vmatmul.bf16.gmra.mxu0 %v1266
  %v1312 = vpop.f32.mrf.mxu0
  %v1313 = vadd.f32 0.0, %v1312
  %v1314 = vpop.f32.mrf.mxu0
  %v1315 = vadd.f32 0.0, %v1314
  %1316 = vdwg.mxu0
  %v1317 = vadd.f32 %v1068, %v1278
  %v1318 = vadd.f32 %v1070, %v1280
  %v1319 = vadd.f32 %v1073, %v1283
  %v1320 = vadd.f32 %v1075, %v1285
  %v1321 = vadd.f32 %v1078, %v1288
  %v1322 = vadd.f32 %v1080, %v1290
  %v1323 = vadd.f32 %v1083, %v1293
  %v1324 = vadd.f32 %v1085, %v1295
  %v1325 = vadd.f32 %v1088, %v1298
  %v1326 = vadd.f32 %v1090, %v1300
  %v1327 = vadd.f32 %v1093, %v1303
  %v1328 = vadd.f32 %v1095, %v1305
  %v1329 = vadd.f32 %v1098, %v1308
  %v1330 = vadd.f32 %v1100, %v1310
  %v1331 = vadd.f32 %v1103, %v1313
  %v1332 = vadd.f32 %v1105, %v1315
  %v1333 = vld [vmem:[%s3 + $0x2a0] sm:$0xf]
  %v1334 = vld [vmem:[%s3 + $0x2a4] sm:$0xf]
  %v1335 = vld [vmem:[%s3 + $0x2a8] sm:$0xf]
  %v1336 = vld [vmem:[%s3 + $0x2ac] sm:$0xf]
  %v1337 = vld [vmem:[%s3 + $0x2b0] sm:$0xf]
  %v1338 = vld [vmem:[%s3 + $0x2b4] sm:$0xf]
  %v1339 = vld [vmem:[%s3 + $0x2b8] sm:$0xf]
  %v1340 = vld [vmem:[%s3 + $0x2bc] sm:$0xf]
  %v1341 = vld [vmem:[%s3 + $0x2c0] sm:$0xf]
  %v1342 = vld [vmem:[%s3 + $0x2c4] sm:$0xf]
  %v1343 = vld [vmem:[%s3 + $0x2c8] sm:$0xf]
  %v1344 = vld [vmem:[%s3 + $0x2cc] sm:$0xf]
  %v1345 = vld [vmem:[%s3 + $0x2d0] sm:$0xf]
  %v1346 = vld [vmem:[%s3 + $0x2d4] sm:$0xf]
  %v1347 = vld [vmem:[%s3 + $0x2d8] sm:$0xf]
  %v1348 = vld [vmem:[%s3 + $0x2dc] sm:$0xf]
  %v1349 = vld [vmem:[%s3 + $0xb0] sm:$0xf]
  %v1350 = vld [vmem:[%s3 + $0xb4] sm:$0xf]
  %v1351 = vld [vmem:[%s3 + $0xb8] sm:$0xf]
  %v1352 = vld [vmem:[%s3 + $0xbc] sm:$0xf]
  %v1353 = vunpack.c.l.bf16 %v1333
  %v1354 = vunpack.c.l.bf16 %v1334
  %v1355 = vunpack.c.l.bf16 %v1335
  %v1356 = vunpack.c.l.bf16 %v1336
  %v1357 = vunpack.c.l.bf16 %v1337
  %v1358 = vunpack.c.l.bf16 %v1338
  %v1359 = vunpack.c.l.bf16 %v1339
  %v1360 = vunpack.c.l.bf16 %v1340
  %v1361 = vunpack.c.l.bf16 %v1341
  %v1362 = vunpack.c.l.bf16 %v1342
  %v1363 = vunpack.c.l.bf16 %v1343
  %v1364 = vunpack.c.l.bf16 %v1344
  %v1365 = vunpack.c.l.bf16 %v1345
  %v1366 = vunpack.c.l.bf16 %v1346
  %v1367 = vunpack.c.l.bf16 %v1347
  %v1368 = vunpack.c.l.bf16 %v1348
  %v1369 = vmul.f32 %v790, %v1353
  %v1370 = vmul.f32 %v791, %v1354
  %v1371 = vmul.f32 %v792, %v1355
  %v1372 = vmul.f32 %v793, %v1356
  %v1373 = vmul.f32 %v794, %v1357
  %v1374 = vmul.f32 %v795, %v1358
  %v1375 = vmul.f32 %v796, %v1359
  %v1376 = vmul.f32 %v797, %v1360
  %v1377 = vmul.f32 %v798, %v1361
  %v1378 = vmul.f32 %v799, %v1362
  %v1379 = vmul.f32 %v800, %v1363
  %v1380 = vmul.f32 %v801, %v1364
  %v1381 = vmul.f32 %v802, %v1365
  %v1382 = vmul.f32 %v803, %v1366
  %v1383 = vmul.f32 %v804, %v1367
  %v1384 = vmul.f32 %v789, %v1368
  %v1385 = vpack.c.bf16 %v1370, %v1369
  %v1386 = vpack.c.bf16 %v1372, %v1371
  %v1387 = vpack.c.bf16 %v1374, %v1373
  %v1388 = vpack.c.bf16 %v1376, %v1375
  %v1389 = vpack.c.bf16 %v1378, %v1377
  %v1390 = vpack.c.bf16 %v1380, %v1379
  %v1391 = vpack.c.bf16 %v1382, %v1381
  %v1392 = vpack.c.bf16 %v1384, %v1383
  %v1397 = vunpack.c.l.b16 %v1349
  %v1398 = vunpack.c.l.b16 %v1350
  %v1399 = vunpack.c.l.b16 %v1351
  %v1400 = vunpack.c.l.b16 %v1352
  %v1401 = vpack.c.b16 %v1398, %v1397
  %v1402 = vpack.c.b16 %v1400, %v1399
  %v1406 = vsel %vm43, %v1385, 0
  %v1409 = vsel %vm43, %v1386, 0
  %v1412 = vsel %vm43, %v1387, 0
  %v1415 = vsel %vm43, %v1388, 0
  %v1418 = vsel %vm43, %v1389, 0
  %v1421 = vsel %vm43, %v1390, 0
  %v1424 = vsel %vm43, %v1391, 0
  %v1427 = vsel %vm43, %v1392, 0
  %1429 = vmatpush.bf16.msra.mxu0 0
  %1430 = vmatpush.bf16.msra.mxu0 0
  %1431 = vmatpush.bf16.msra.mxu0 0
  %1432 = vmatpush.bf16.msra.mxu0 0
  %1433 = vmatpush.bf16.msra.mxu0 0
  %1434 = vmatpush.bf16.msra.mxu0 0
  %1435 = vmatpush.bf16.msra.mxu0 %v1402
  %1436 = vmatpush.bf16.msra.mxu0 %v1401
  %1437 = vmatmul.bf16.gmra.mxu0 %v1406
  %v1438 = vpop.f32.mrf.mxu0
  %v1439 = vadd.f32 0.0, %v1438
  %v1440 = vpop.f32.mrf.mxu0
  %v1441 = vadd.f32 0.0, %v1440
  %1442 = vmatmul.bf16.gmra.mxu0 %v1409
  %v1443 = vpop.f32.mrf.mxu0
  %v1444 = vadd.f32 0.0, %v1443
  %v1445 = vpop.f32.mrf.mxu0
  %v1446 = vadd.f32 0.0, %v1445
  %1447 = vmatmul.bf16.gmra.mxu0 %v1412
  %v1448 = vpop.f32.mrf.mxu0
  %v1449 = vadd.f32 0.0, %v1448
  %v1450 = vpop.f32.mrf.mxu0
  %v1451 = vadd.f32 0.0, %v1450
  %1452 = vmatmul.bf16.gmra.mxu0 %v1415
  %v1453 = vpop.f32.mrf.mxu0
  %v1454 = vadd.f32 0.0, %v1453
  %v1455 = vpop.f32.mrf.mxu0
  %v1456 = vadd.f32 0.0, %v1455
  %1457 = vmatmul.bf16.gmra.mxu0 %v1418
  %v1458 = vpop.f32.mrf.mxu0
  %v1459 = vadd.f32 0.0, %v1458
  %v1460 = vpop.f32.mrf.mxu0
  %v1461 = vadd.f32 0.0, %v1460
  %1462 = vmatmul.bf16.gmra.mxu0 %v1421
  %v1463 = vpop.f32.mrf.mxu0
  %v1464 = vadd.f32 0.0, %v1463
  %v1465 = vpop.f32.mrf.mxu0
  %v1466 = vadd.f32 0.0, %v1465
  %1467 = vmatmul.bf16.gmra.mxu0 %v1424
  %v1468 = vpop.f32.mrf.mxu0
  %v1469 = vadd.f32 0.0, %v1468
  %v1470 = vpop.f32.mrf.mxu0
  %v1471 = vadd.f32 0.0, %v1470
  %1472 = vmatmul.bf16.gmra.mxu0 %v1427
  %v1473 = vpop.f32.mrf.mxu0
  %v1474 = vadd.f32 0.0, %v1473
  %v1475 = vpop.f32.mrf.mxu0
  %v1476 = vadd.f32 0.0, %v1475
  %1477 = vdwg.mxu0
  %v1478 = vadd.f32 %v1317, %v1439
  %v1479 = vadd.f32 %v1318, %v1441
  %v1480 = vadd.f32 %v1319, %v1444
  %v1481 = vadd.f32 %v1320, %v1446
  %v1482 = vadd.f32 %v1321, %v1449
  %v1483 = vadd.f32 %v1322, %v1451
  %v1484 = vadd.f32 %v1323, %v1454
  %v1485 = vadd.f32 %v1324, %v1456
  %v1486 = vadd.f32 %v1325, %v1459
  %v1487 = vadd.f32 %v1326, %v1461
  %v1488 = vadd.f32 %v1327, %v1464
  %v1489 = vadd.f32 %v1328, %v1466
  %v1490 = vadd.f32 %v1329, %v1469
  %v1491 = vadd.f32 %v1330, %v1471
  %v1492 = vadd.f32 %v1331, %v1474
  %v1493 = vadd.f32 %v1332, %v1476
  %v1494 = vld [vmem:[%s3 + $0x2e0] sm:$0xf]
  %v1495 = vld [vmem:[%s3 + $0x2e4] sm:$0xf]
  %v1496 = vld [vmem:[%s3 + $0x2e8] sm:$0xf]
  %v1497 = vld [vmem:[%s3 + $0x2ec] sm:$0xf]
  %v1498 = vld [vmem:[%s3 + $0x2f0] sm:$0xf]
  %v1499 = vld [vmem:[%s3 + $0x2f4] sm:$0xf]
  %v1500 = vld [vmem:[%s3 + $0x2f8] sm:$0xf]
  %v1501 = vld [vmem:[%s3 + $0x2fc] sm:$0xf]
  %v1502 = vld [vmem:[%s3 + $0x300] sm:$0xf]
  %v1503 = vld [vmem:[%s3 + $0x304] sm:$0xf]
  %v1504 = vld [vmem:[%s3 + $0x308] sm:$0xf]
  %v1505 = vld [vmem:[%s3 + $0x30c] sm:$0xf]
  %v1506 = vld [vmem:[%s3 + $0x310] sm:$0xf]
  %v1507 = vld [vmem:[%s3 + $0x314] sm:$0xf]
  %v1508 = vld [vmem:[%s3 + $0x318] sm:$0xf]
  %v1509 = vld [vmem:[%s3 + $0x31c] sm:$0xf]
  %v1510 = vld [vmem:[%s3 + $0xc0] sm:$0xf]
  %v1511 = vld [vmem:[%s3 + $0xc4] sm:$0xf]
  %v1512 = vld [vmem:[%s3 + $0xc8] sm:$0xf]
  %v1513 = vld [vmem:[%s3 + $0xcc] sm:$0xf]
  %v1514 = vunpack.c.l.bf16 %v1494
  %v1515 = vunpack.c.l.bf16 %v1495
  %v1516 = vunpack.c.l.bf16 %v1496
  %v1517 = vunpack.c.l.bf16 %v1497
  %v1518 = vunpack.c.l.bf16 %v1498
  %v1519 = vunpack.c.l.bf16 %v1499
  %v1520 = vunpack.c.l.bf16 %v1500
  %v1521 = vunpack.c.l.bf16 %v1501
  %v1522 = vunpack.c.l.bf16 %v1502
  %v1523 = vunpack.c.l.bf16 %v1503
  %v1524 = vunpack.c.l.bf16 %v1504
  %v1525 = vunpack.c.l.bf16 %v1505
  %v1526 = vunpack.c.l.bf16 %v1506
  %v1527 = vunpack.c.l.bf16 %v1507
  %v1528 = vunpack.c.l.bf16 %v1508
  %v1529 = vunpack.c.l.bf16 %v1509
  %v1530 = vmul.f32 %v882, %v1514
  %v1531 = vmul.f32 %v883, %v1515
  %v1532 = vmul.f32 %v884, %v1516
  %v1533 = vmul.f32 %v885, %v1517
  %v1534 = vmul.f32 %v886, %v1518
  %v1535 = vmul.f32 %v887, %v1519
  %v1536 = vmul.f32 %v888, %v1520
  %v1537 = vmul.f32 %v889, %v1521
  %v1538 = vmul.f32 %v890, %v1522
  %v1539 = vmul.f32 %v891, %v1523
  %v1540 = vmul.f32 %v892, %v1524
  %v1541 = vmul.f32 %v893, %v1525
  %v1542 = vmul.f32 %v894, %v1526
  %v1543 = vmul.f32 %v895, %v1527
  %v1544 = vmul.f32 %v896, %v1528
  %v1545 = vmul.f32 %v881, %v1529
  %v1546 = vpack.c.bf16 %v1531, %v1530
  %v1547 = vpack.c.bf16 %v1533, %v1532
  %v1548 = vpack.c.bf16 %v1535, %v1534
  %v1549 = vpack.c.bf16 %v1537, %v1536
  %v1550 = vpack.c.bf16 %v1539, %v1538
  %v1551 = vpack.c.bf16 %v1541, %v1540
  %v1552 = vpack.c.bf16 %v1543, %v1542
  %v1553 = vpack.c.bf16 %v1545, %v1544
  %v1558 = vunpack.c.l.b16 %v1510
  %v1559 = vunpack.c.l.b16 %v1511
  %v1560 = vunpack.c.l.b16 %v1512
  %v1561 = vunpack.c.l.b16 %v1513
  %v1562 = vpack.c.b16 %v1559, %v1558
  %v1563 = vpack.c.b16 %v1561, %v1560
  %v1567 = vsel %vm43, %v1546, 0
  %v1570 = vsel %vm43, %v1547, 0
  %v1573 = vsel %vm43, %v1548, 0
  %v1576 = vsel %vm43, %v1549, 0
  %v1579 = vsel %vm43, %v1550, 0
  %v1582 = vsel %vm43, %v1551, 0
  %v1585 = vsel %vm43, %v1552, 0
  %v1588 = vsel %vm43, %v1553, 0
  %1590 = vmatpush.bf16.msra.mxu0 0
  %1591 = vmatpush.bf16.msra.mxu0 0
  %1592 = vmatpush.bf16.msra.mxu0 0
  %1593 = vmatpush.bf16.msra.mxu0 0
  %1594 = vmatpush.bf16.msra.mxu0 0
  %1595 = vmatpush.bf16.msra.mxu0 0
  %1596 = vmatpush.bf16.msra.mxu0 %v1563
  %1597 = vmatpush.bf16.msra.mxu0 %v1562
  %1598 = vmatmul.bf16.gmra.mxu0 %v1567
  %v1599 = vpop.f32.mrf.mxu0
  %v1600 = vadd.f32 0.0, %v1599
  %v1601 = vpop.f32.mrf.mxu0
  %v1602 = vadd.f32 0.0, %v1601
  %1603 = vmatmul.bf16.gmra.mxu0 %v1570
  %v1604 = vpop.f32.mrf.mxu0
  %v1605 = vadd.f32 0.0, %v1604
  %v1606 = vpop.f32.mrf.mxu0
  %v1607 = vadd.f32 0.0, %v1606
  %1608 = vmatmul.bf16.gmra.mxu0 %v1573
  %v1609 = vpop.f32.mrf.mxu0
  %v1610 = vadd.f32 0.0, %v1609
  %v1611 = vpop.f32.mrf.mxu0
  %v1612 = vadd.f32 0.0, %v1611
  %1613 = vmatmul.bf16.gmra.mxu0 %v1576
  %v1614 = vpop.f32.mrf.mxu0
  %v1615 = vadd.f32 0.0, %v1614
  %v1616 = vpop.f32.mrf.mxu0
  %v1617 = vadd.f32 0.0, %v1616
  %1618 = vmatmul.bf16.gmra.mxu0 %v1579
  %v1619 = vpop.f32.mrf.mxu0
  %v1620 = vadd.f32 0.0, %v1619
  %v1621 = vpop.f32.mrf.mxu0
  %v1622 = vadd.f32 0.0, %v1621
  %1623 = vmatmul.bf16.gmra.mxu0 %v1582
  %v1624 = vpop.f32.mrf.mxu0
  %v1625 = vadd.f32 0.0, %v1624
  %v1626 = vpop.f32.mrf.mxu0
  %v1627 = vadd.f32 0.0, %v1626
  %1628 = vmatmul.bf16.gmra.mxu0 %v1585
  %v1629 = vpop.f32.mrf.mxu0
  %v1630 = vadd.f32 0.0, %v1629
  %v1631 = vpop.f32.mrf.mxu0
  %v1632 = vadd.f32 0.0, %v1631
  %1633 = vmatmul.bf16.gmra.mxu0 %v1588
  %v1634 = vpop.f32.mrf.mxu0
  %v1635 = vadd.f32 0.0, %v1634
  %v1636 = vpop.f32.mrf.mxu0
  %v1637 = vadd.f32 0.0, %v1636
  %1638 = vdwg.mxu0
  %v1639 = vadd.f32 %v1478, %v1600
  %v1640 = vadd.f32 %v1479, %v1602
  %v1641 = vadd.f32 %v1480, %v1605
  %v1642 = vadd.f32 %v1481, %v1607
  %v1643 = vadd.f32 %v1482, %v1610
  %v1644 = vadd.f32 %v1483, %v1612
  %v1645 = vadd.f32 %v1484, %v1615
  %v1646 = vadd.f32 %v1485, %v1617
  %v1647 = vadd.f32 %v1486, %v1620
  %v1648 = vadd.f32 %v1487, %v1622
  %v1649 = vadd.f32 %v1488, %v1625
  %v1650 = vadd.f32 %v1489, %v1627
  %v1651 = vadd.f32 %v1490, %v1630
  %v1652 = vadd.f32 %v1491, %v1632
  %v1653 = vadd.f32 %v1492, %v1635
  %v1654 = vadd.f32 %v1493, %v1637
  %v1655 = vld [vmem:[%s3 + $0x320] sm:$0xf]
  %v1656 = vld [vmem:[%s3 + $0x324] sm:$0xf]
  %v1657 = vld [vmem:[%s3 + $0x328] sm:$0xf]
  %v1658 = vld [vmem:[%s3 + $0x32c] sm:$0xf]
  %v1659 = vld [vmem:[%s3 + $0x330] sm:$0xf]
  %v1660 = vld [vmem:[%s3 + $0x334] sm:$0xf]
  %v1661 = vld [vmem:[%s3 + $0x338] sm:$0xf]
  %v1662 = vld [vmem:[%s3 + $0x33c] sm:$0xf]
  %v1663 = vld [vmem:[%s3 + $0x340] sm:$0xf]
  %v1664 = vld [vmem:[%s3 + $0x344] sm:$0xf]
  %v1665 = vld [vmem:[%s3 + $0x348] sm:$0xf]
  %v1666 = vld [vmem:[%s3 + $0x34c] sm:$0xf]
  %v1667 = vld [vmem:[%s3 + $0x350] sm:$0xf]
  %v1668 = vld [vmem:[%s3 + $0x354] sm:$0xf]
  %v1669 = vld [vmem:[%s3 + $0x358] sm:$0xf]
  %v1670 = vld [vmem:[%s3 + $0x35c] sm:$0xf]
  %v1671 = vld [vmem:[%s3 + $0xd0] sm:$0xf]
  %v1672 = vld [vmem:[%s3 + $0xd4] sm:$0xf]
  %v1673 = vld [vmem:[%s3 + $0xd8] sm:$0xf]
  %v1674 = vld [vmem:[%s3 + $0xdc] sm:$0xf]
  %v1675 = vunpack.c.l.bf16 %v1655
  %v1676 = vunpack.c.l.bf16 %v1656
  %v1677 = vunpack.c.l.bf16 %v1657
  %v1678 = vunpack.c.l.bf16 %v1658
  %v1679 = vunpack.c.l.bf16 %v1659
  %v1680 = vunpack.c.l.bf16 %v1660
  %v1681 = vunpack.c.l.bf16 %v1661
  %v1682 = vunpack.c.l.bf16 %v1662
  %v1683 = vunpack.c.l.bf16 %v1663
  %v1684 = vunpack.c.l.bf16 %v1664
  %v1685 = vunpack.c.l.bf16 %v1665
  %v1686 = vunpack.c.l.bf16 %v1666
  %v1687 = vunpack.c.l.bf16 %v1667
  %v1688 = vunpack.c.l.bf16 %v1668
  %v1689 = vunpack.c.l.bf16 %v1669
  %v1690 = vunpack.c.l.bf16 %v1670
  %v1691 = vmul.f32 %v1177, %v1675
  %v1692 = vmul.f32 %v1178, %v1676
  %v1693 = vmul.f32 %v1179, %v1677
  %v1694 = vmul.f32 %v1180, %v1678
  %v1695 = vmul.f32 %v1181, %v1679
  %v1696 = vmul.f32 %v1182, %v1680
  %v1697 = vmul.f32 %v1183, %v1681
  %v1698 = vmul.f32 %v1184, %v1682
  %v1699 = vmul.f32 %v1185, %v1683
  %v1700 = vmul.f32 %v1186, %v1684
  %v1701 = vmul.f32 %v1187, %v1685
  %v1702 = vmul.f32 %v1188, %v1686
  %v1703 = vmul.f32 %v1189, %v1687
  %v1704 = vmul.f32 %v1190, %v1688
  %v1705 = vmul.f32 %v1191, %v1689
  %v1706 = vmul.f32 %v1176, %v1690
  %v1707 = vpack.c.bf16 %v1692, %v1691
  %v1708 = vpack.c.bf16 %v1694, %v1693
  %v1709 = vpack.c.bf16 %v1696, %v1695
  %v1710 = vpack.c.bf16 %v1698, %v1697
  %v1711 = vpack.c.bf16 %v1700, %v1699
  %v1712 = vpack.c.bf16 %v1702, %v1701
  %v1713 = vpack.c.bf16 %v1704, %v1703
  %v1714 = vpack.c.bf16 %v1706, %v1705
  %v1719 = vunpack.c.l.b16 %v1671
  %v1720 = vunpack.c.l.b16 %v1672
  %v1721 = vunpack.c.l.b16 %v1673
  %v1722 = vunpack.c.l.b16 %v1674
  %v1723 = vpack.c.b16 %v1720, %v1719
  %v1724 = vpack.c.b16 %v1722, %v1721
  %v1728 = vsel %vm43, %v1707, 0
  %v1731 = vsel %vm43, %v1708, 0
  %v1734 = vsel %vm43, %v1709, 0
  %v1737 = vsel %vm43, %v1710, 0
  %v1740 = vsel %vm43, %v1711, 0
  %v1743 = vsel %vm43, %v1712, 0
  %v1746 = vsel %vm43, %v1713, 0
  %v1749 = vsel %vm43, %v1714, 0
  %1751 = vmatpush.bf16.msra.mxu0 0
  %1752 = vmatpush.bf16.msra.mxu0 0
  %1753 = vmatpush.bf16.msra.mxu0 0
  %1754 = vmatpush.bf16.msra.mxu0 0
  %1755 = vmatpush.bf16.msra.mxu0 0
  %1756 = vmatpush.bf16.msra.mxu0 0
  %1757 = vmatpush.bf16.msra.mxu0 %v1724
  %1758 = vmatpush.bf16.msra.mxu0 %v1723
  %1759 = vmatmul.bf16.gmra.mxu0 %v1728
  %v1760 = vpop.f32.mrf.mxu0
  %v1761 = vadd.f32 0.0, %v1760
  %v1762 = vpop.f32.mrf.mxu0
  %v1763 = vadd.f32 0.0, %v1762
  %1764 = vmatmul.bf16.gmra.mxu0 %v1731
  %v1765 = vpop.f32.mrf.mxu0
  %v1766 = vadd.f32 0.0, %v1765
  %v1767 = vpop.f32.mrf.mxu0
  %v1768 = vadd.f32 0.0, %v1767
  %1769 = vmatmul.bf16.gmra.mxu0 %v1734
  %v1770 = vpop.f32.mrf.mxu0
  %v1771 = vadd.f32 0.0, %v1770
  %v1772 = vpop.f32.mrf.mxu0
  %v1773 = vadd.f32 0.0, %v1772
  %1774 = vmatmul.bf16.gmra.mxu0 %v1737
  %v1775 = vpop.f32.mrf.mxu0
  %v1776 = vadd.f32 0.0, %v1775
  %v1777 = vpop.f32.mrf.mxu0
  %v1778 = vadd.f32 0.0, %v1777
  %1779 = vmatmul.bf16.gmra.mxu0 %v1740
  %v1780 = vpop.f32.mrf.mxu0
  %v1781 = vadd.f32 0.0, %v1780
  %v1782 = vpop.f32.mrf.mxu0
  %v1783 = vadd.f32 0.0, %v1782
  %1784 = vmatmul.bf16.gmra.mxu0 %v1743
  %v1785 = vpop.f32.mrf.mxu0
  %v1786 = vadd.f32 0.0, %v1785
  %v1787 = vpop.f32.mrf.mxu0
  %v1788 = vadd.f32 0.0, %v1787
  %1789 = vmatmul.bf16.gmra.mxu0 %v1746
  %v1790 = vpop.f32.mrf.mxu0
  %v1791 = vadd.f32 0.0, %v1790
  %v1792 = vpop.f32.mrf.mxu0
  %v1793 = vadd.f32 0.0, %v1792
  %1794 = vmatmul.bf16.gmra.mxu0 %v1749
  %v1795 = vpop.f32.mrf.mxu0
  %v1796 = vadd.f32 0.0, %v1795
  %v1797 = vpop.f32.mrf.mxu0
  %v1798 = vadd.f32 0.0, %v1797
  %1799 = vdwg.mxu0
  %v1800 = vadd.f32 %v1639, %v1761
  %v1801 = vadd.f32 %v1640, %v1763
  %v1802 = vadd.f32 %v1641, %v1766
  %v1803 = vadd.f32 %v1642, %v1768
  %v1804 = vadd.f32 %v1643, %v1771
  %v1805 = vadd.f32 %v1644, %v1773
  %v1806 = vadd.f32 %v1645, %v1776
  %v1807 = vadd.f32 %v1646, %v1778
  %v1808 = vadd.f32 %v1647, %v1781
  %v1809 = vadd.f32 %v1648, %v1783
  %v1810 = vadd.f32 %v1649, %v1786
  %v1811 = vadd.f32 %v1650, %v1788
  %v1812 = vadd.f32 %v1651, %v1791
  %v1813 = vadd.f32 %v1652, %v1793
  %v1814 = vadd.f32 %v1653, %v1796
  %v1815 = vadd.f32 %v1654, %v1798
  %v1816 = vld [vmem:[%s3 + $0x360] sm:$0xf]
  %v1817 = vld [vmem:[%s3 + $0x364] sm:$0xf]
  %v1818 = vld [vmem:[%s3 + $0x368] sm:$0xf]
  %v1819 = vld [vmem:[%s3 + $0x36c] sm:$0xf]
  %v1820 = vld [vmem:[%s3 + $0x370] sm:$0xf]
  %v1821 = vld [vmem:[%s3 + $0x374] sm:$0xf]
  %v1822 = vld [vmem:[%s3 + $0x378] sm:$0xf]
  %v1823 = vld [vmem:[%s3 + $0x37c] sm:$0xf]
  %v1824 = vld [vmem:[%s3 + $0x380] sm:$0xf]
  %v1825 = vld [vmem:[%s3 + $0x384] sm:$0xf]
  %v1826 = vld [vmem:[%s3 + $0x388] sm:$0xf]
  %v1827 = vld [vmem:[%s3 + $0x38c] sm:$0xf]
  %v1828 = vld [vmem:[%s3 + $0x390] sm:$0xf]
  %v1829 = vld [vmem:[%s3 + $0x394] sm:$0xf]
  %v1830 = vld [vmem:[%s3 + $0x398] sm:$0xf]
  %v1831 = vld [vmem:[%s3 + $0x39c] sm:$0xf]
  %v1832 = vld [vmem:[%s3 + $0xe0] sm:$0xf]
  %v1833 = vld [vmem:[%s3 + $0xe4] sm:$0xf]
  %v1834 = vld [vmem:[%s3 + $0xe8] sm:$0xf]
  %v1835 = vld [vmem:[%s3 + $0xec] sm:$0xf]
  %v1836 = vunpack.c.l.bf16 %v1816
  %v1837 = vunpack.c.l.bf16 %v1817
  %v1838 = vunpack.c.l.bf16 %v1818
  %v1839 = vunpack.c.l.bf16 %v1819
  %v1840 = vunpack.c.l.bf16 %v1820
  %v1841 = vunpack.c.l.bf16 %v1821
  %v1842 = vunpack.c.l.bf16 %v1822
  %v1843 = vunpack.c.l.bf16 %v1823
  %v1844 = vunpack.c.l.bf16 %v1824
  %v1845 = vunpack.c.l.bf16 %v1825
  %v1846 = vunpack.c.l.bf16 %v1826
  %v1847 = vunpack.c.l.bf16 %v1827
  %v1848 = vunpack.c.l.bf16 %v1828
  %v1849 = vunpack.c.l.bf16 %v1829
  %v1850 = vunpack.c.l.bf16 %v1830
  %v1851 = vunpack.c.l.bf16 %v1831
  %v1852 = vmul.f32 %v791, %v1836
  %v1853 = vmul.f32 %v792, %v1837
  %v1854 = vmul.f32 %v793, %v1838
  %v1855 = vmul.f32 %v794, %v1839
  %v1856 = vmul.f32 %v795, %v1840
  %v1857 = vmul.f32 %v796, %v1841
  %v1858 = vmul.f32 %v797, %v1842
  %v1859 = vmul.f32 %v798, %v1843
  %v1860 = vmul.f32 %v799, %v1844
  %v1861 = vmul.f32 %v800, %v1845
  %v1862 = vmul.f32 %v801, %v1846
  %v1863 = vmul.f32 %v802, %v1847
  %v1864 = vmul.f32 %v803, %v1848
  %v1865 = vmul.f32 %v804, %v1849
  %v1866 = vmul.f32 %v789, %v1850
  %v1867 = vmul.f32 %v790, %v1851
  %v1868 = vpack.c.bf16 %v1853, %v1852
  %v1869 = vpack.c.bf16 %v1855, %v1854
  %v1870 = vpack.c.bf16 %v1857, %v1856
  %v1871 = vpack.c.bf16 %v1859, %v1858
  %v1872 = vpack.c.bf16 %v1861, %v1860
  %v1873 = vpack.c.bf16 %v1863, %v1862
  %v1874 = vpack.c.bf16 %v1865, %v1864
  %v1875 = vpack.c.bf16 %v1867, %v1866
  %v1880 = vunpack.c.l.b16 %v1832
  %v1881 = vunpack.c.l.b16 %v1833
  %v1882 = vunpack.c.l.b16 %v1834
  %v1883 = vunpack.c.l.b16 %v1835
  %v1884 = vpack.c.b16 %v1881, %v1880
  %v1885 = vpack.c.b16 %v1883, %v1882
  %v1889 = vsel %vm43, %v1868, 0
  %v1892 = vsel %vm43, %v1869, 0
  %v1895 = vsel %vm43, %v1870, 0
  %v1898 = vsel %vm43, %v1871, 0
  %v1901 = vsel %vm43, %v1872, 0
  %v1904 = vsel %vm43, %v1873, 0
  %v1907 = vsel %vm43, %v1874, 0
  %v1910 = vsel %vm43, %v1875, 0
  %1912 = vmatpush.bf16.msra.mxu0 0
  %1913 = vmatpush.bf16.msra.mxu0 0
  %1914 = vmatpush.bf16.msra.mxu0 0
  %1915 = vmatpush.bf16.msra.mxu0 0
  %1916 = vmatpush.bf16.msra.mxu0 0
  %1917 = vmatpush.bf16.msra.mxu0 0
  %1918 = vmatpush.bf16.msra.mxu0 %v1885
  %1919 = vmatpush.bf16.msra.mxu0 %v1884
  %1920 = vmatmul.bf16.gmra.mxu0 %v1889
  %v1921 = vpop.f32.mrf.mxu0
  %v1922 = vadd.f32 0.0, %v1921
  %v1923 = vpop.f32.mrf.mxu0
  %v1924 = vadd.f32 0.0, %v1923
  %1925 = vmatmul.bf16.gmra.mxu0 %v1892
  %v1926 = vpop.f32.mrf.mxu0
  %v1927 = vadd.f32 0.0, %v1926
  %v1928 = vpop.f32.mrf.mxu0
  %v1929 = vadd.f32 0.0, %v1928
  %1930 = vmatmul.bf16.gmra.mxu0 %v1895
  %v1931 = vpop.f32.mrf.mxu0
  %v1932 = vadd.f32 0.0, %v1931
  %v1933 = vpop.f32.mrf.mxu0
  %v1934 = vadd.f32 0.0, %v1933
  %1935 = vmatmul.bf16.gmra.mxu0 %v1898
  %v1936 = vpop.f32.mrf.mxu0
  %v1937 = vadd.f32 0.0, %v1936
  %v1938 = vpop.f32.mrf.mxu0
  %v1939 = vadd.f32 0.0, %v1938
  %1940 = vmatmul.bf16.gmra.mxu0 %v1901
  %v1941 = vpop.f32.mrf.mxu0
  %v1942 = vadd.f32 0.0, %v1941
  %v1943 = vpop.f32.mrf.mxu0
  %v1944 = vadd.f32 0.0, %v1943
  %1945 = vmatmul.bf16.gmra.mxu0 %v1904
  %v1946 = vpop.f32.mrf.mxu0
  %v1947 = vadd.f32 0.0, %v1946
  %v1948 = vpop.f32.mrf.mxu0
  %v1949 = vadd.f32 0.0, %v1948
  %1950 = vmatmul.bf16.gmra.mxu0 %v1907
  %v1951 = vpop.f32.mrf.mxu0
  %v1952 = vadd.f32 0.0, %v1951
  %v1953 = vpop.f32.mrf.mxu0
  %v1954 = vadd.f32 0.0, %v1953
  %1955 = vmatmul.bf16.gmra.mxu0 %v1910
  %v1956 = vpop.f32.mrf.mxu0
  %v1957 = vadd.f32 0.0, %v1956
  %v1958 = vpop.f32.mrf.mxu0
  %v1959 = vadd.f32 0.0, %v1958
  %1960 = vdwg.mxu0
  %v1961 = vadd.f32 %v1800, %v1922
  %v1962 = vadd.f32 %v1801, %v1924
  %v1963 = vadd.f32 %v1802, %v1927
  %v1964 = vadd.f32 %v1803, %v1929
  %v1965 = vadd.f32 %v1804, %v1932
  %v1966 = vadd.f32 %v1805, %v1934
  %v1967 = vadd.f32 %v1806, %v1937
  %v1968 = vadd.f32 %v1807, %v1939
  %v1969 = vadd.f32 %v1808, %v1942
  %v1970 = vadd.f32 %v1809, %v1944
  %v1971 = vadd.f32 %v1810, %v1947
  %v1972 = vadd.f32 %v1811, %v1949
  %v1973 = vadd.f32 %v1812, %v1952
  %v1974 = vadd.f32 %v1813, %v1954
  %v1975 = vadd.f32 %v1814, %v1957
  %v1976 = vadd.f32 %v1815, %v1959
  %v1977 = vld [vmem:[%s3 + $0x3a0] sm:$0xf]
  %v1978 = vld [vmem:[%s3 + $0x3a4] sm:$0xf]
  %v1979 = vld [vmem:[%s3 + $0x3a8] sm:$0xf]
  %v1980 = vld [vmem:[%s3 + $0x3ac] sm:$0xf]
  %v1981 = vld [vmem:[%s3 + $0x3b0] sm:$0xf]
  %v1982 = vld [vmem:[%s3 + $0x3b4] sm:$0xf]
  %v1983 = vld [vmem:[%s3 + $0x3b8] sm:$0xf]
  %v1984 = vld [vmem:[%s3 + $0x3bc] sm:$0xf]
  %v1985 = vld [vmem:[%s3 + $0x3c0] sm:$0xf]
  %v1986 = vld [vmem:[%s3 + $0x3c4] sm:$0xf]
  %v1987 = vld [vmem:[%s3 + $0x3c8] sm:$0xf]
  %v1988 = vld [vmem:[%s3 + $0x3cc] sm:$0xf]
  %v1989 = vld [vmem:[%s3 + $0x3d0] sm:$0xf]
  %v1990 = vld [vmem:[%s3 + $0x3d4] sm:$0xf]
  %v1991 = vld [vmem:[%s3 + $0x3d8] sm:$0xf]
  %v1992 = vld [vmem:[%s3 + $0x3dc] sm:$0xf]
  %v1993 = vld [vmem:[%s3 + $0xf0] sm:$0xf]
  %v1994 = vld [vmem:[%s3 + $0xf4] sm:$0xf]
  %v1995 = vld [vmem:[%s3 + $0xf8] sm:$0xf]
  %v1996 = vld [vmem:[%s3 + $0xfc] sm:$0xf]
  %v1997 = vunpack.c.l.bf16 %v1977
  %v1998 = vunpack.c.l.bf16 %v1978
  %v1999 = vunpack.c.l.bf16 %v1979
  %v2000 = vunpack.c.l.bf16 %v1980
  %v2001 = vunpack.c.l.bf16 %v1981
  %v2002 = vunpack.c.l.bf16 %v1982
  %v2003 = vunpack.c.l.bf16 %v1983
  %v2004 = vunpack.c.l.bf16 %v1984
  %v2005 = vunpack.c.l.bf16 %v1985
  %v2006 = vunpack.c.l.bf16 %v1986
  %v2007 = vunpack.c.l.bf16 %v1987
  %v2008 = vunpack.c.l.bf16 %v1988
  %v2009 = vunpack.c.l.bf16 %v1989
  %v2010 = vunpack.c.l.bf16 %v1990
  %v2011 = vunpack.c.l.bf16 %v1991
  %v2012 = vunpack.c.l.bf16 %v1992
  %v2013 = vmul.f32 %v883, %v1997
  %v2014 = vmul.f32 %v884, %v1998
  %v2015 = vmul.f32 %v885, %v1999
  %v2016 = vmul.f32 %v886, %v2000
  %v2017 = vmul.f32 %v887, %v2001
  %v2018 = vmul.f32 %v888, %v2002
  %v2019 = vmul.f32 %v889, %v2003
  %v2020 = vmul.f32 %v890, %v2004
  %v2021 = vmul.f32 %v891, %v2005
  %v2022 = vmul.f32 %v892, %v2006
  %v2023 = vmul.f32 %v893, %v2007
  %v2024 = vmul.f32 %v894, %v2008
  %v2025 = vmul.f32 %v895, %v2009
  %v2026 = vmul.f32 %v896, %v2010
  %v2027 = vmul.f32 %v881, %v2011
  %v2028 = vmul.f32 %v882, %v2012
  %v2029 = vpack.c.bf16 %v2014, %v2013
  %v2030 = vpack.c.bf16 %v2016, %v2015
  %v2031 = vpack.c.bf16 %v2018, %v2017
  %v2032 = vpack.c.bf16 %v2020, %v2019
  %v2033 = vpack.c.bf16 %v2022, %v2021
  %v2034 = vpack.c.bf16 %v2024, %v2023
  %v2035 = vpack.c.bf16 %v2026, %v2025
  %v2036 = vpack.c.bf16 %v2028, %v2027
  %v2041 = vunpack.c.l.b16 %v1993
  %v2042 = vunpack.c.l.b16 %v1994
  %v2043 = vunpack.c.l.b16 %v1995
  %v2044 = vunpack.c.l.b16 %v1996
  %v2045 = vpack.c.b16 %v2042, %v2041
  %v2046 = vpack.c.b16 %v2044, %v2043
  %v2050 = vsel %vm43, %v2029, 0
  %v2053 = vsel %vm43, %v2030, 0
  %v2056 = vsel %vm43, %v2031, 0
  %v2059 = vsel %vm43, %v2032, 0
  %v2062 = vsel %vm43, %v2033, 0
  %v2065 = vsel %vm43, %v2034, 0
  %v2068 = vsel %vm43, %v2035, 0
  %v2071 = vsel %vm43, %v2036, 0
  %2073 = vmatpush.bf16.msra.mxu0 0
  %2074 = vmatpush.bf16.msra.mxu0 0
  %2075 = vmatpush.bf16.msra.mxu0 0
  %2076 = vmatpush.bf16.msra.mxu0 0
  %2077 = vmatpush.bf16.msra.mxu0 0
  %2078 = vmatpush.bf16.msra.mxu0 0
  %2079 = vmatpush.bf16.msra.mxu0 %v2046
  %2080 = vmatpush.bf16.msra.mxu0 %v2045
  %2081 = vmatmul.bf16.gmra.mxu0 %v2050
  %v2082 = vpop.f32.mrf.mxu0
  %v2083 = vadd.f32 0.0, %v2082
  %v2084 = vpop.f32.mrf.mxu0
  %v2085 = vadd.f32 0.0, %v2084
  %2086 = vmatmul.bf16.gmra.mxu0 %v2053
  %v2087 = vpop.f32.mrf.mxu0
  %v2088 = vadd.f32 0.0, %v2087
  %v2089 = vpop.f32.mrf.mxu0
  %v2090 = vadd.f32 0.0, %v2089
  %2091 = vmatmul.bf16.gmra.mxu0 %v2056
  %v2092 = vpop.f32.mrf.mxu0
  %v2093 = vadd.f32 0.0, %v2092
  %v2094 = vpop.f32.mrf.mxu0
  %v2095 = vadd.f32 0.0, %v2094
  %2096 = vmatmul.bf16.gmra.mxu0 %v2059
  %v2097 = vpop.f32.mrf.mxu0
  %v2098 = vadd.f32 0.0, %v2097
  %v2099 = vpop.f32.mrf.mxu0
  %v2100 = vadd.f32 0.0, %v2099
  %2101 = vmatmul.bf16.gmra.mxu0 %v2062
  %v2102 = vpop.f32.mrf.mxu0
  %v2103 = vadd.f32 0.0, %v2102
  %v2104 = vpop.f32.mrf.mxu0
  %v2105 = vadd.f32 0.0, %v2104
  %2106 = vmatmul.bf16.gmra.mxu0 %v2065
  %v2107 = vpop.f32.mrf.mxu0
  %v2108 = vadd.f32 0.0, %v2107
  %v2109 = vpop.f32.mrf.mxu0
  %v2110 = vadd.f32 0.0, %v2109
  %2111 = vmatmul.bf16.gmra.mxu0 %v2068
  %v2112 = vpop.f32.mrf.mxu0
  %v2113 = vadd.f32 0.0, %v2112
  %v2114 = vpop.f32.mrf.mxu0
  %v2115 = vadd.f32 0.0, %v2114
  %2116 = vmatmul.bf16.gmra.mxu0 %v2071
  %v2117 = vpop.f32.mrf.mxu0
  %v2118 = vadd.f32 0.0, %v2117
  %v2119 = vpop.f32.mrf.mxu0
  %v2120 = vadd.f32 0.0, %v2119
  %2121 = vdwg.mxu0
  %v2122 = vadd.f32 %v1961, %v2083
  %v2123 = vadd.f32 %v1962, %v2085
  %v2124 = vadd.f32 %v1963, %v2088
  %v2125 = vadd.f32 %v1964, %v2090
  %v2126 = vadd.f32 %v1965, %v2093
  %v2127 = vadd.f32 %v1966, %v2095
  %v2128 = vadd.f32 %v1967, %v2098
  %v2129 = vadd.f32 %v1968, %v2100
  %v2130 = vadd.f32 %v1969, %v2103
  %v2131 = vadd.f32 %v1970, %v2105
  %v2132 = vadd.f32 %v1971, %v2108
  %v2133 = vadd.f32 %v1972, %v2110
  %v2134 = vadd.f32 %v1973, %v2113
  %v2135 = vadd.f32 %v1974, %v2115
  %v2136 = vadd.f32 %v1975, %v2118
  %v2137 = vadd.f32 %v1976, %v2120
  %v2138 = vld [vmem:[%s3 + $0x3e0] sm:$0xf]
  %v2139 = vld [vmem:[%s3 + $0x3e4] sm:$0xf]
  %v2140 = vld [vmem:[%s3 + $0x3e8] sm:$0xf]
  %v2141 = vld [vmem:[%s3 + $0x3ec] sm:$0xf]
  %v2142 = vld [vmem:[%s3 + $0x3f0] sm:$0xf]
  %v2143 = vld [vmem:[%s3 + $0x3f4] sm:$0xf]
  %v2144 = vld [vmem:[%s3 + $0x3f8] sm:$0xf]
  %v2145 = vld [vmem:[%s3 + $0x3fc] sm:$0xf]
  %v2146 = vld [vmem:[%s3 + $0x400] sm:$0xf]
  %v2147 = vld [vmem:[%s3 + $0x404] sm:$0xf]
  %v2148 = vld [vmem:[%s3 + $0x408] sm:$0xf]
  %v2149 = vld [vmem:[%s3 + $0x40c] sm:$0xf]
  %v2150 = vld [vmem:[%s3 + $0x410] sm:$0xf]
  %v2151 = vld [vmem:[%s3 + $0x414] sm:$0xf]
  %v2152 = vld [vmem:[%s3 + $0x418] sm:$0xf]
  %v2153 = vld [vmem:[%s3 + $0x41c] sm:$0xf]
  %v2154 = vld [vmem:[%s3 + $0x100] sm:$0xf]
  %v2155 = vld [vmem:[%s3 + $0x104] sm:$0xf]
  %v2156 = vld [vmem:[%s3 + $0x108] sm:$0xf]
  %v2157 = vld [vmem:[%s3 + $0x10c] sm:$0xf]
  %v2158 = vunpack.c.l.bf16 %v2138
  %v2159 = vunpack.c.l.bf16 %v2139
  %v2160 = vunpack.c.l.bf16 %v2140
  %v2161 = vunpack.c.l.bf16 %v2141
  %v2162 = vunpack.c.l.bf16 %v2142
  %v2163 = vunpack.c.l.bf16 %v2143
  %v2164 = vunpack.c.l.bf16 %v2144
  %v2165 = vunpack.c.l.bf16 %v2145
  %v2166 = vunpack.c.l.bf16 %v2146
  %v2167 = vunpack.c.l.bf16 %v2147
  %v2168 = vunpack.c.l.bf16 %v2148
  %v2169 = vunpack.c.l.bf16 %v2149
  %v2170 = vunpack.c.l.bf16 %v2150
  %v2171 = vunpack.c.l.bf16 %v2151
  %v2172 = vunpack.c.l.bf16 %v2152
  %v2173 = vunpack.c.l.bf16 %v2153
  %v2174 = vmul.f32 %v1178, %v2158
  %v2175 = vmul.f32 %v1179, %v2159
  %v2176 = vmul.f32 %v1180, %v2160
  %v2177 = vmul.f32 %v1181, %v2161
  %v2178 = vmul.f32 %v1182, %v2162
  %v2179 = vmul.f32 %v1183, %v2163
  %v2180 = vmul.f32 %v1184, %v2164
  %v2181 = vmul.f32 %v1185, %v2165
  %v2182 = vmul.f32 %v1186, %v2166
  %v2183 = vmul.f32 %v1187, %v2167
  %v2184 = vmul.f32 %v1188, %v2168
  %v2185 = vmul.f32 %v1189, %v2169
  %v2186 = vmul.f32 %v1190, %v2170
  %v2187 = vmul.f32 %v1191, %v2171
  %v2188 = vmul.f32 %v1176, %v2172
  %v2189 = vmul.f32 %v1177, %v2173
  %v2190 = vpack.c.bf16 %v2175, %v2174
  %v2191 = vpack.c.bf16 %v2177, %v2176
  %v2192 = vpack.c.bf16 %v2179, %v2178
  %v2193 = vpack.c.bf16 %v2181, %v2180
  %v2194 = vpack.c.bf16 %v2183, %v2182
  %v2195 = vpack.c.bf16 %v2185, %v2184
  %v2196 = vpack.c.bf16 %v2187, %v2186
  %v2197 = vpack.c.bf16 %v2189, %v2188
  %v2202 = vunpack.c.l.b16 %v2154
  %v2203 = vunpack.c.l.b16 %v2155
  %v2204 = vunpack.c.l.b16 %v2156
  %v2205 = vunpack.c.l.b16 %v2157
  %v2206 = vpack.c.b16 %v2203, %v2202
  %v2207 = vpack.c.b16 %v2205, %v2204
  %v2211 = vsel %vm43, %v2190, 0
  %v2214 = vsel %vm43, %v2191, 0
  %v2217 = vsel %vm43, %v2192, 0
  %v2220 = vsel %vm43, %v2193, 0
  %v2223 = vsel %vm43, %v2194, 0
  %v2226 = vsel %vm43, %v2195, 0
  %v2229 = vsel %vm43, %v2196, 0
  %v2232 = vsel %vm43, %v2197, 0
  %2234 = vmatpush.bf16.msra.mxu0 0
  %2235 = vmatpush.bf16.msra.mxu0 0
  %2236 = vmatpush.bf16.msra.mxu0 0
  %2237 = vmatpush.bf16.msra.mxu0 0
  %2238 = vmatpush.bf16.msra.mxu0 0
  %2239 = vmatpush.bf16.msra.mxu0 0
  %2240 = vmatpush.bf16.msra.mxu0 %v2207
  %2241 = vmatpush.bf16.msra.mxu0 %v2206
  %2242 = vmatmul.bf16.gmra.mxu0 %v2211
  %v2243 = vpop.f32.mrf.mxu0
  %v2244 = vadd.f32 0.0, %v2243
  %v2245 = vpop.f32.mrf.mxu0
  %v2246 = vadd.f32 0.0, %v2245
  %2247 = vmatmul.bf16.gmra.mxu0 %v2214
  %v2248 = vpop.f32.mrf.mxu0
  %v2249 = vadd.f32 0.0, %v2248
  %v2250 = vpop.f32.mrf.mxu0
  %v2251 = vadd.f32 0.0, %v2250
  %2252 = vmatmul.bf16.gmra.mxu0 %v2217
  %v2253 = vpop.f32.mrf.mxu0
  %v2254 = vadd.f32 0.0, %v2253
  %v2255 = vpop.f32.mrf.mxu0
  %v2256 = vadd.f32 0.0, %v2255
  %2257 = vmatmul.bf16.gmra.mxu0 %v2220
  %v2258 = vpop.f32.mrf.mxu0
  %v2259 = vadd.f32 0.0, %v2258
  %v2260 = vpop.f32.mrf.mxu0
  %v2261 = vadd.f32 0.0, %v2260
  %2262 = vmatmul.bf16.gmra.mxu0 %v2223
  %v2263 = vpop.f32.mrf.mxu0
  %v2264 = vadd.f32 0.0, %v2263
  %v2265 = vpop.f32.mrf.mxu0
  %v2266 = vadd.f32 0.0, %v2265
  %2267 = vmatmul.bf16.gmra.mxu0 %v2226
  %v2268 = vpop.f32.mrf.mxu0
  %v2269 = vadd.f32 0.0, %v2268
  %v2270 = vpop.f32.mrf.mxu0
  %v2271 = vadd.f32 0.0, %v2270
  %2272 = vmatmul.bf16.gmra.mxu0 %v2229
  %v2273 = vpop.f32.mrf.mxu0
  %v2274 = vadd.f32 0.0, %v2273
  %v2275 = vpop.f32.mrf.mxu0
  %v2276 = vadd.f32 0.0, %v2275
  %2277 = vmatmul.bf16.gmra.mxu0 %v2232
  %v2278 = vpop.f32.mrf.mxu0
  %v2279 = vadd.f32 0.0, %v2278
  %v2280 = vpop.f32.mrf.mxu0
  %v2281 = vadd.f32 0.0, %v2280
  %2282 = vdwg.mxu0
  %v2283 = vadd.f32 %v2122, %v2244
  %v2284 = vadd.f32 %v2123, %v2246
  %v2285 = vadd.f32 %v2124, %v2249
  %v2286 = vadd.f32 %v2125, %v2251
  %v2287 = vadd.f32 %v2126, %v2254
  %v2288 = vadd.f32 %v2127, %v2256
  %v2289 = vadd.f32 %v2128, %v2259
  %v2290 = vadd.f32 %v2129, %v2261
  %v2291 = vadd.f32 %v2130, %v2264
  %v2292 = vadd.f32 %v2131, %v2266
  %v2293 = vadd.f32 %v2132, %v2269
  %v2294 = vadd.f32 %v2133, %v2271
  %v2295 = vadd.f32 %v2134, %v2274
  %v2296 = vadd.f32 %v2135, %v2276
  %v2297 = vadd.f32 %v2136, %v2279
  %v2298 = vadd.f32 %v2137, %v2281
  %v2299 = vadd.f32 %v607, %v2283
  %v2300 = vadd.f32 %v609, %v2284
  %v2301 = vadd.f32 %v612, %v2285
  %v2302 = vadd.f32 %v614, %v2286
  %v2303 = vadd.f32 %v617, %v2287
  %v2304 = vadd.f32 %v619, %v2288
  %v2305 = vadd.f32 %v622, %v2289
  %v2306 = vadd.f32 %v624, %v2290
  %v2307 = vadd.f32 %v627, %v2291
  %v2308 = vadd.f32 %v629, %v2292
  %v2309 = vadd.f32 %v632, %v2293
  %v2310 = vadd.f32 %v634, %v2294
  %v2311 = vadd.f32 %v637, %v2295
  %v2312 = vadd.f32 %v639, %v2296
  %v2313 = vadd.f32 %v642, %v2297
  %v2314 = vadd.f32 %v644, %v2298
  %v2315 = vld [vmem:[%s2 + $0x38] sm:$0x1]
  %v2316 = vperm.slane %v2315, 0
  %v2317 = vadd.f32 %v2299, %v2316
  %v2318 = vadd.f32 %v2300, %v2316
  %v2319 = vadd.f32 %v2301, %v2316
  %v2320 = vadd.f32 %v2302, %v2316
  %v2321 = vadd.f32 %v2303, %v2316
  %v2322 = vadd.f32 %v2304, %v2316
  %v2323 = vadd.f32 %v2305, %v2316
  %v2324 = vadd.f32 %v2306, %v2316
  %v2325 = vadd.f32 %v2307, %v2316
  %v2326 = vadd.f32 %v2308, %v2316
  %v2327 = vadd.f32 %v2309, %v2316
  %v2328 = vadd.f32 %v2310, %v2316
  %v2329 = vadd.f32 %v2311, %v2316
  %v2330 = vadd.f32 %v2312, %v2316
  %v2331 = vadd.f32 %v2313, %v2316
  %v2332 = vadd.f32 %v2314, %v2316
  %v2333 = vrot.slane %v676, 3
  %v2334 = vrot.slane %v678, 3
  %v2335 = vrot.slane %v681, 3
  %v2336 = vrot.slane %v683, 3
  %vm2337 = vcmp.lt.s32.totalorder %v735, 5
  %v2338 = vsel %vm2337, %v2335, %v2336
  %v2339 = vsel %vm2337, %v2334, %v2335
  %v2340 = vsel %vm2337, %v2333, %v2334
  %v2341 = vsel %vm2337, %v2336, %v2333
  %v2342 = vld [vmem:[%s3 + $0x420] sm:$0xf]
  %v2343 = vld [vmem:[%s3 + $0x424] sm:$0xf]
  %v2344 = vld [vmem:[%s3 + $0x428] sm:$0xf]
  %v2345 = vld [vmem:[%s3 + $0x42c] sm:$0xf]
  %v2346 = vld [vmem:[%s3 + $0x110] sm:$0xf]
  %v2347 = vld [vmem:[%s3 + $0x114] sm:$0xf]
  %v2348 = vld [vmem:[%s3 + $0x118] sm:$0xf]
  %v2349 = vld [vmem:[%s3 + $0x11c] sm:$0xf]
  %v2350 = vpack.c.bf16 %v2341, %v2341
  %v2351 = vpack.c.bf16 %v2340, %v2340
  %v2352 = vpack.c.bf16 %v2339, %v2339
  %v2353 = vpack.c.bf16 %v2338, %v2338
  %v2354 = vunpack.c.l.bf16 %v2350
  %v2355 = vunpack.c.l.bf16 %v2351
  %v2356 = vunpack.c.l.bf16 %v2352
  %v2357 = vunpack.c.l.bf16 %v2353
  %v2358 = vunpack.c.l.bf16 %v2342
  %v2359 = vunpack.c.l.bf16 %v2343
  %v2360 = vunpack.c.l.bf16 %v2344
  %v2361 = vunpack.c.l.bf16 %v2345
  %v2362 = vmul.f32 %v2354, %v2358
  %v2363 = vmul.f32 %v2355, %v2359
  %v2364 = vmul.f32 %v2356, %v2360
  %v2365 = vmul.f32 %v2357, %v2361
  %v2366 = vpack.c.bf16 %v2363, %v2362
  %v2367 = vpack.c.bf16 %v2365, %v2364
  %v2368 = vrot.slane %v676, 4
  %v2369 = vrot.slane %v678, 4
  %v2370 = vrot.slane %v681, 4
  %v2371 = vrot.slane %v683, 4
  %vm2372 = vcmp.lt.s32.totalorder %v735, 4
  %v2373 = vsel %vm2372, %v2370, %v2371
  %v2374 = vsel %vm2372, %v2369, %v2370
  %v2375 = vsel %vm2372, %v2368, %v2369
  %v2376 = vsel %vm2372, %v2371, %v2368
  %v2377 = vld [vmem:[%s3 + $0x430] sm:$0xf]
  %v2378 = vld [vmem:[%s3 + $0x434] sm:$0xf]
  %v2379 = vld [vmem:[%s3 + $0x438] sm:$0xf]
  %v2380 = vld [vmem:[%s3 + $0x43c] sm:$0xf]
  %v2381 = vld [vmem:[%s3 + $0x120] sm:$0xf]
  %v2382 = vld [vmem:[%s3 + $0x124] sm:$0xf]
  %v2383 = vld [vmem:[%s3 + $0x128] sm:$0xf]
  %v2384 = vld [vmem:[%s3 + $0x12c] sm:$0xf]
  %v2385 = vpack.c.bf16 %v2376, %v2376
  %v2386 = vpack.c.bf16 %v2375, %v2375
  %v2387 = vpack.c.bf16 %v2374, %v2374
  %v2388 = vpack.c.bf16 %v2373, %v2373
  %v2389 = vunpack.c.l.bf16 %v2385
  %v2390 = vunpack.c.l.bf16 %v2386
  %v2391 = vunpack.c.l.bf16 %v2387
  %v2392 = vunpack.c.l.bf16 %v2388
  %v2393 = vunpack.c.l.bf16 %v2377
  %v2394 = vunpack.c.l.bf16 %v2378
  %v2395 = vunpack.c.l.bf16 %v2379
  %v2396 = vunpack.c.l.bf16 %v2380
  %v2397 = vmul.f32 %v2389, %v2393
  %v2398 = vmul.f32 %v2390, %v2394
  %v2399 = vmul.f32 %v2391, %v2395
  %v2400 = vmul.f32 %v2392, %v2396
  %v2401 = vpack.c.bf16 %v2398, %v2397
  %v2402 = vpack.c.bf16 %v2400, %v2399
  %v2407 = vunpack.c.l.b16 %v2381
  %v2408 = vunpack.c.l.b16 %v2382
  %v2409 = vunpack.c.l.b16 %v2383
  %v2410 = vunpack.c.l.b16 %v2384
  %v2411 = vpack.c.b16 %v2408, %v2407
  %v2412 = vpack.c.b16 %v2410, %v2409
  %v2416 = vsel %vm43, %v2401, 0
  %v2419 = vsel %vm43, %v2402, 0
  %2421 = vmatpush.bf16.msra.mxu0 0
  %2422 = vmatpush.bf16.msra.mxu0 0
  %2423 = vmatpush.bf16.msra.mxu0 0
  %2424 = vmatpush.bf16.msra.mxu0 0
  %2425 = vmatpush.bf16.msra.mxu0 0
  %2426 = vmatpush.bf16.msra.mxu0 0
  %2427 = vmatpush.bf16.msra.mxu0 %v2412
  %2428 = vmatpush.bf16.msra.mxu0 %v2411
  %2429 = vmatmul.bf16.gmra.mxu0 %v2416
  %v2430 = vpop.f32.mrf.mxu0
  %v2431 = vadd.f32 0.0, %v2430
  %v2432 = vpop.f32.mrf.mxu0
  %v2433 = vadd.f32 0.0, %v2432
  %2434 = vmatmul.bf16.gmra.mxu0 %v2419
  %v2435 = vpop.f32.mrf.mxu0
  %v2436 = vadd.f32 0.0, %v2435
  %v2437 = vpop.f32.mrf.mxu0
  %v2438 = vadd.f32 0.0, %v2437
  %2439 = vdwg.mxu0
  %v2444 = vunpack.c.l.b16 %v2346
  %v2445 = vunpack.c.l.b16 %v2347
  %v2446 = vunpack.c.l.b16 %v2348
  %v2447 = vunpack.c.l.b16 %v2349
  %v2448 = vpack.c.b16 %v2445, %v2444
  %v2449 = vpack.c.b16 %v2447, %v2446
  %v2453 = vsel %vm43, %v2366, 0
  %v2456 = vsel %vm43, %v2367, 0
  %2458 = vmatpush.bf16.msra.mxu0 0
  %2459 = vmatpush.bf16.msra.mxu0 0
  %2460 = vmatpush.bf16.msra.mxu0 0
  %2461 = vmatpush.bf16.msra.mxu0 0
  %2462 = vmatpush.bf16.msra.mxu0 0
  %2463 = vmatpush.bf16.msra.mxu0 0
  %2464 = vmatpush.bf16.msra.mxu0 %v2449
  %2465 = vmatpush.bf16.msra.mxu0 %v2448
  %2466 = vmatmul.bf16.gmra.mxu0 %v2453
  %v2467 = vpop.f32.mrf.mxu0
  %v2468 = vadd.f32 %v2431, %v2467
  %v2469 = vpop.f32.mrf.mxu0
  %v2470 = vadd.f32 %v2433, %v2469
  %2471 = vmatmul.bf16.gmra.mxu0 %v2456
  %v2472 = vpop.f32.mrf.mxu0
  %v2473 = vadd.f32 %v2436, %v2472
  %v2474 = vpop.f32.mrf.mxu0
  %v2475 = vadd.f32 %v2438, %v2474
  %2476 = vdwg.mxu0
  %v2477 = vrot.slane %v676, 5
  %v2478 = vrot.slane %v678, 5
  %v2479 = vrot.slane %v681, 5
  %v2480 = vrot.slane %v683, 5
  %vm2481 = vcmp.lt.s32.totalorder %v735, 3
  %v2482 = vsel %vm2481, %v2479, %v2480
  %v2483 = vsel %vm2481, %v2478, %v2479
  %v2484 = vsel %vm2481, %v2477, %v2478
  %v2485 = vsel %vm2481, %v2480, %v2477
  %v2486 = vld [vmem:[%s3 + $0x440] sm:$0xf]
  %v2487 = vld [vmem:[%s3 + $0x444] sm:$0xf]
  %v2488 = vld [vmem:[%s3 + $0x448] sm:$0xf]
  %v2489 = vld [vmem:[%s3 + $0x44c] sm:$0xf]
  %v2490 = vld [vmem:[%s3 + $0x130] sm:$0xf]
  %v2491 = vld [vmem:[%s3 + $0x134] sm:$0xf]
  %v2492 = vld [vmem:[%s3 + $0x138] sm:$0xf]
  %v2493 = vld [vmem:[%s3 + $0x13c] sm:$0xf]
  %v2494 = vpack.c.bf16 %v2485, %v2485
  %v2495 = vpack.c.bf16 %v2484, %v2484
  %v2496 = vpack.c.bf16 %v2483, %v2483
  %v2497 = vpack.c.bf16 %v2482, %v2482
  %v2498 = vunpack.c.l.bf16 %v2494
  %v2499 = vunpack.c.l.bf16 %v2495
  %v2500 = vunpack.c.l.bf16 %v2496
  %v2501 = vunpack.c.l.bf16 %v2497
  %v2502 = vunpack.c.l.bf16 %v2486
  %v2503 = vunpack.c.l.bf16 %v2487
  %v2504 = vunpack.c.l.bf16 %v2488
  %v2505 = vunpack.c.l.bf16 %v2489
  %v2506 = vmul.f32 %v2498, %v2502
  %v2507 = vmul.f32 %v2499, %v2503
  %v2508 = vmul.f32 %v2500, %v2504
  %v2509 = vmul.f32 %v2501, %v2505
  %v2510 = vpack.c.bf16 %v2507, %v2506
  %v2511 = vpack.c.bf16 %v2509, %v2508
  %v2516 = vunpack.c.l.b16 %v2490
  %v2517 = vunpack.c.l.b16 %v2491
  %v2518 = vunpack.c.l.b16 %v2492
  %v2519 = vunpack.c.l.b16 %v2493
  %v2520 = vpack.c.b16 %v2517, %v2516
  %v2521 = vpack.c.b16 %v2519, %v2518
  %v2525 = vsel %vm43, %v2510, 0
  %v2528 = vsel %vm43, %v2511, 0
  %2530 = vmatpush.bf16.msra.mxu0 0
  %2531 = vmatpush.bf16.msra.mxu0 0
  %2532 = vmatpush.bf16.msra.mxu0 0
  %2533 = vmatpush.bf16.msra.mxu0 0
  %2534 = vmatpush.bf16.msra.mxu0 0
  %2535 = vmatpush.bf16.msra.mxu0 0
  %2536 = vmatpush.bf16.msra.mxu0 %v2521
  %2537 = vmatpush.bf16.msra.mxu0 %v2520
  %2538 = vmatmul.bf16.gmra.mxu0 %v2525
  %v2539 = vpop.f32.mrf.mxu0
  %v2540 = vadd.f32 0.0, %v2539
  %v2541 = vpop.f32.mrf.mxu0
  %v2542 = vadd.f32 0.0, %v2541
  %2543 = vmatmul.bf16.gmra.mxu0 %v2528
  %v2544 = vpop.f32.mrf.mxu0
  %v2545 = vadd.f32 0.0, %v2544
  %v2546 = vpop.f32.mrf.mxu0
  %v2547 = vadd.f32 0.0, %v2546
  %2548 = vdwg.mxu0
  %v2549 = vadd.f32 %v2468, %v2540
  %v2550 = vadd.f32 %v2470, %v2542
  %v2551 = vadd.f32 %v2473, %v2545
  %v2552 = vadd.f32 %v2475, %v2547
  %v2553 = vrot.slane %v676, 7
  %v2554 = vrot.slane %v678, 7
  %v2555 = vrot.slane %v681, 7
  %v2556 = vrot.slane %v683, 7
  %v2557 = vsel %vm736, %v2555, %v2556
  %v2558 = vsel %vm736, %v2554, %v2555
  %v2559 = vsel %vm736, %v2553, %v2554
  %v2560 = vsel %vm736, %v2556, %v2553
  %v2561 = vld [vmem:[%s3 + $0x450] sm:$0xf]
  %v2562 = vld [vmem:[%s3 + $0x454] sm:$0xf]
  %v2563 = vld [vmem:[%s3 + $0x458] sm:$0xf]
  %v2564 = vld [vmem:[%s3 + $0x45c] sm:$0xf]
  %v2565 = vld [vmem:[%s3 + $0x140] sm:$0xf]
  %v2566 = vld [vmem:[%s3 + $0x144] sm:$0xf]
  %v2567 = vld [vmem:[%s3 + $0x148] sm:$0xf]
  %v2568 = vld [vmem:[%s3 + $0x14c] sm:$0xf]
  %v2569 = vpack.c.bf16 %v2560, %v2560
  %v2570 = vpack.c.bf16 %v2559, %v2559
  %v2571 = vpack.c.bf16 %v2558, %v2558
  %v2572 = vpack.c.bf16 %v2557, %v2557
  %v2573 = vunpack.c.l.bf16 %v2569
  %v2574 = vunpack.c.l.bf16 %v2570
  %v2575 = vunpack.c.l.bf16 %v2571
  %v2576 = vunpack.c.l.bf16 %v2572
  %v2577 = vunpack.c.l.bf16 %v2561
  %v2578 = vunpack.c.l.bf16 %v2562
  %v2579 = vunpack.c.l.bf16 %v2563
  %v2580 = vunpack.c.l.bf16 %v2564
  %v2581 = vmul.f32 %v2573, %v2577
  %v2582 = vmul.f32 %v2574, %v2578
  %v2583 = vmul.f32 %v2575, %v2579
  %v2584 = vmul.f32 %v2576, %v2580
  %v2585 = vpack.c.bf16 %v2582, %v2581
  %v2586 = vpack.c.bf16 %v2584, %v2583
  %v2591 = vunpack.c.l.b16 %v2565
  %v2592 = vunpack.c.l.b16 %v2566
  %v2593 = vunpack.c.l.b16 %v2567
  %v2594 = vunpack.c.l.b16 %v2568
  %v2595 = vpack.c.b16 %v2592, %v2591
  %v2596 = vpack.c.b16 %v2594, %v2593
  %v2600 = vsel %vm43, %v2585, 0
  %v2603 = vsel %vm43, %v2586, 0
  %2605 = vmatpush.bf16.msra.mxu0 0
  %2606 = vmatpush.bf16.msra.mxu0 0
  %2607 = vmatpush.bf16.msra.mxu0 0
  %2608 = vmatpush.bf16.msra.mxu0 0
  %2609 = vmatpush.bf16.msra.mxu0 0
  %2610 = vmatpush.bf16.msra.mxu0 0
  %2611 = vmatpush.bf16.msra.mxu0 %v2596
  %2612 = vmatpush.bf16.msra.mxu0 %v2595
  %2613 = vmatmul.bf16.gmra.mxu0 %v2600
  %v2614 = vpop.f32.mrf.mxu0
  %v2615 = vadd.f32 0.0, %v2614
  %v2616 = vpop.f32.mrf.mxu0
  %v2617 = vadd.f32 0.0, %v2616
  %2618 = vmatmul.bf16.gmra.mxu0 %v2603
  %v2619 = vpop.f32.mrf.mxu0
  %v2620 = vadd.f32 0.0, %v2619
  %v2621 = vpop.f32.mrf.mxu0
  %v2622 = vadd.f32 0.0, %v2621
  %2623 = vdwg.mxu0
  %v2624 = vadd.f32 %v2549, %v2615
  %v2625 = vadd.f32 %v2550, %v2617
  %v2626 = vadd.f32 %v2551, %v2620
  %v2627 = vadd.f32 %v2552, %v2622
  %v2628 = vld [vmem:[%s3 + $0x460] sm:$0xf]
  %v2629 = vld [vmem:[%s3 + $0x464] sm:$0xf]
  %v2630 = vld [vmem:[%s3 + $0x468] sm:$0xf]
  %v2631 = vld [vmem:[%s3 + $0x46c] sm:$0xf]
  %v2632 = vld [vmem:[%s3 + $0x150] sm:$0xf]
  %v2633 = vld [vmem:[%s3 + $0x154] sm:$0xf]
  %v2634 = vld [vmem:[%s3 + $0x158] sm:$0xf]
  %v2635 = vld [vmem:[%s3 + $0x15c] sm:$0xf]
  %v2636 = vpack.c.bf16 %v676, %v676
  %v2637 = vpack.c.bf16 %v678, %v678
  %v2638 = vpack.c.bf16 %v681, %v681
  %v2639 = vpack.c.bf16 %v683, %v683
  %v2640 = vunpack.c.l.bf16 %v2636
  %v2641 = vunpack.c.l.bf16 %v2637
  %v2642 = vunpack.c.l.bf16 %v2638
  %v2643 = vunpack.c.l.bf16 %v2639
  %v2644 = vunpack.c.l.bf16 %v2628
  %v2645 = vunpack.c.l.bf16 %v2629
  %v2646 = vunpack.c.l.bf16 %v2630
  %v2647 = vunpack.c.l.bf16 %v2631
  %v2648 = vmul.f32 %v2640, %v2644
  %v2649 = vmul.f32 %v2641, %v2645
  %v2650 = vmul.f32 %v2642, %v2646
  %v2651 = vmul.f32 %v2643, %v2647
  %v2652 = vpack.c.bf16 %v2649, %v2648
  %v2653 = vpack.c.bf16 %v2651, %v2650
  %v2658 = vunpack.c.l.b16 %v2632
  %v2659 = vunpack.c.l.b16 %v2633
  %v2660 = vunpack.c.l.b16 %v2634
  %v2661 = vunpack.c.l.b16 %v2635
  %v2662 = vpack.c.b16 %v2659, %v2658
  %v2663 = vpack.c.b16 %v2661, %v2660
  %v2667 = vsel %vm43, %v2652, 0
  %v2670 = vsel %vm43, %v2653, 0
  %2672 = vmatpush.bf16.msra.mxu0 0
  %2673 = vmatpush.bf16.msra.mxu0 0
  %2674 = vmatpush.bf16.msra.mxu0 0
  %2675 = vmatpush.bf16.msra.mxu0 0
  %2676 = vmatpush.bf16.msra.mxu0 0
  %2677 = vmatpush.bf16.msra.mxu0 0
  %2678 = vmatpush.bf16.msra.mxu0 %v2663
  %2679 = vmatpush.bf16.msra.mxu0 %v2662
  %2680 = vmatmul.bf16.gmra.mxu0 %v2667
  %v2681 = vpop.f32.mrf.mxu0
  %v2682 = vadd.f32 0.0, %v2681
  %v2683 = vpop.f32.mrf.mxu0
  %v2684 = vadd.f32 0.0, %v2683
  %2685 = vmatmul.bf16.gmra.mxu0 %v2670
  %v2686 = vpop.f32.mrf.mxu0
  %v2687 = vadd.f32 0.0, %v2686
  %v2688 = vpop.f32.mrf.mxu0
  %v2689 = vadd.f32 0.0, %v2688
  %2690 = vdwg.mxu0
  %v2691 = vadd.f32 %v2624, %v2682
  %v2692 = vadd.f32 %v2625, %v2684
  %v2693 = vadd.f32 %v2626, %v2687
  %v2694 = vadd.f32 %v2627, %v2689
  %v2695 = vrot.slane %v676, 1
  %v2696 = vrot.slane %v678, 1
  %v2697 = vrot.slane %v681, 1
  %v2698 = vrot.slane %v683, 1
  %v2699 = vsel %vm1123, %v2697, %v2698
  %v2700 = vsel %vm1123, %v2696, %v2697
  %v2701 = vsel %vm1123, %v2695, %v2696
  %v2702 = vsel %vm1123, %v2698, %v2695
  %v2703 = vld [vmem:[%s3 + $0x470] sm:$0xf]
  %v2704 = vld [vmem:[%s3 + $0x474] sm:$0xf]
  %v2705 = vld [vmem:[%s3 + $0x478] sm:$0xf]
  %v2706 = vld [vmem:[%s3 + $0x47c] sm:$0xf]
  %v2707 = vld [vmem:[%s3 + $0x160] sm:$0xf]
  %v2708 = vld [vmem:[%s3 + $0x164] sm:$0xf]
  %v2709 = vld [vmem:[%s3 + $0x168] sm:$0xf]
  %v2710 = vld [vmem:[%s3 + $0x16c] sm:$0xf]
  %v2711 = vpack.c.bf16 %v2701, %v2701
  %v2712 = vpack.c.bf16 %v2700, %v2700
  %v2713 = vpack.c.bf16 %v2699, %v2699
  %v2714 = vpack.c.bf16 %v2702, %v2702
  %v2715 = vunpack.c.l.bf16 %v2711
  %v2716 = vunpack.c.l.bf16 %v2712
  %v2717 = vunpack.c.l.bf16 %v2713
  %v2718 = vunpack.c.l.bf16 %v2714
  %v2719 = vunpack.c.l.bf16 %v2703
  %v2720 = vunpack.c.l.bf16 %v2704
  %v2721 = vunpack.c.l.bf16 %v2705
  %v2722 = vunpack.c.l.bf16 %v2706
  %v2723 = vmul.f32 %v2715, %v2719
  %v2724 = vmul.f32 %v2716, %v2720
  %v2725 = vmul.f32 %v2717, %v2721
  %v2726 = vmul.f32 %v2718, %v2722
  %v2727 = vpack.c.bf16 %v2724, %v2723
  %v2728 = vpack.c.bf16 %v2726, %v2725
  %v2733 = vunpack.c.l.b16 %v2707
  %v2734 = vunpack.c.l.b16 %v2708
  %v2735 = vunpack.c.l.b16 %v2709
  %v2736 = vunpack.c.l.b16 %v2710
  %v2737 = vpack.c.b16 %v2734, %v2733
  %v2738 = vpack.c.b16 %v2736, %v2735
  %v2742 = vsel %vm43, %v2727, 0
  %v2745 = vsel %vm43, %v2728, 0
  %2747 = vmatpush.bf16.msra.mxu0 0
  %2748 = vmatpush.bf16.msra.mxu0 0
  %2749 = vmatpush.bf16.msra.mxu0 0
  %2750 = vmatpush.bf16.msra.mxu0 0
  %2751 = vmatpush.bf16.msra.mxu0 0
  %2752 = vmatpush.bf16.msra.mxu0 0
  %2753 = vmatpush.bf16.msra.mxu0 %v2738
  %2754 = vmatpush.bf16.msra.mxu0 %v2737
  %2755 = vmatmul.bf16.gmra.mxu0 %v2742
  %v2756 = vpop.f32.mrf.mxu0
  %v2757 = vadd.f32 0.0, %v2756
  %v2758 = vpop.f32.mrf.mxu0
  %v2759 = vadd.f32 0.0, %v2758
  %2760 = vmatmul.bf16.gmra.mxu0 %v2745
  %v2761 = vpop.f32.mrf.mxu0
  %v2762 = vadd.f32 0.0, %v2761
  %v2763 = vpop.f32.mrf.mxu0
  %v2764 = vadd.f32 0.0, %v2763
  %2765 = vdwg.mxu0
  %v2766 = vadd.f32 %v2691, %v2757
  %v2767 = vadd.f32 %v2692, %v2759
  %v2768 = vadd.f32 %v2693, %v2762
  %v2769 = vadd.f32 %v2694, %v2764
  %v2770 = vld [vmem:[%s3 + $0x480] sm:$0xf]
  %v2771 = vld [vmem:[%s3 + $0x484] sm:$0xf]
  %v2772 = vld [vmem:[%s3 + $0x488] sm:$0xf]
  %v2773 = vld [vmem:[%s3 + $0x48c] sm:$0xf]
  %v2774 = vld [vmem:[%s3 + $0x170] sm:$0xf]
  %v2775 = vld [vmem:[%s3 + $0x174] sm:$0xf]
  %v2776 = vld [vmem:[%s3 + $0x178] sm:$0xf]
  %v2777 = vld [vmem:[%s3 + $0x17c] sm:$0xf]
  %v2778 = vunpack.c.l.bf16 %v2770
  %v2779 = vunpack.c.l.bf16 %v2771
  %v2780 = vunpack.c.l.bf16 %v2772
  %v2781 = vunpack.c.l.bf16 %v2773
  %v2782 = vmul.f32 %v2355, %v2778
  %v2783 = vmul.f32 %v2356, %v2779
  %v2784 = vmul.f32 %v2357, %v2780
  %v2785 = vmul.f32 %v2354, %v2781
  %v2786 = vpack.c.bf16 %v2783, %v2782
  %v2787 = vpack.c.bf16 %v2785, %v2784
  %v2792 = vunpack.c.l.b16 %v2774
  %v2793 = vunpack.c.l.b16 %v2775
  %v2794 = vunpack.c.l.b16 %v2776
  %v2795 = vunpack.c.l.b16 %v2777
  %v2796 = vpack.c.b16 %v2793, %v2792
  %v2797 = vpack.c.b16 %v2795, %v2794
  %v2801 = vsel %vm43, %v2786, 0
  %v2804 = vsel %vm43, %v2787, 0
  %2806 = vmatpush.bf16.msra.mxu0 0
  %2807 = vmatpush.bf16.msra.mxu0 0
  %2808 = vmatpush.bf16.msra.mxu0 0
  %2809 = vmatpush.bf16.msra.mxu0 0
  %2810 = vmatpush.bf16.msra.mxu0 0
  %2811 = vmatpush.bf16.msra.mxu0 0
  %2812 = vmatpush.bf16.msra.mxu0 %v2797
  %2813 = vmatpush.bf16.msra.mxu0 %v2796
  %2814 = vmatmul.bf16.gmra.mxu0 %v2801
  %v2815 = vpop.f32.mrf.mxu0
  %v2816 = vadd.f32 0.0, %v2815
  %v2817 = vpop.f32.mrf.mxu0
  %v2818 = vadd.f32 0.0, %v2817
  %2819 = vmatmul.bf16.gmra.mxu0 %v2804
  %v2820 = vpop.f32.mrf.mxu0
  %v2821 = vadd.f32 0.0, %v2820
  %v2822 = vpop.f32.mrf.mxu0
  %v2823 = vadd.f32 0.0, %v2822
  %2824 = vdwg.mxu0
  %v2825 = vadd.f32 %v2766, %v2816
  %v2826 = vadd.f32 %v2767, %v2818
  %v2827 = vadd.f32 %v2768, %v2821
  %v2828 = vadd.f32 %v2769, %v2823
  %v2829 = vld [vmem:[%s3 + $0x490] sm:$0xf]
  %v2830 = vld [vmem:[%s3 + $0x494] sm:$0xf]
  %v2831 = vld [vmem:[%s3 + $0x498] sm:$0xf]
  %v2832 = vld [vmem:[%s3 + $0x49c] sm:$0xf]
  %v2833 = vld [vmem:[%s3 + $0x180] sm:$0xf]
  %v2834 = vld [vmem:[%s3 + $0x184] sm:$0xf]
  %v2835 = vld [vmem:[%s3 + $0x188] sm:$0xf]
  %v2836 = vld [vmem:[%s3 + $0x18c] sm:$0xf]
  %v2837 = vunpack.c.l.bf16 %v2829
  %v2838 = vunpack.c.l.bf16 %v2830
  %v2839 = vunpack.c.l.bf16 %v2831
  %v2840 = vunpack.c.l.bf16 %v2832
  %v2841 = vmul.f32 %v2390, %v2837
  %v2842 = vmul.f32 %v2391, %v2838
  %v2843 = vmul.f32 %v2392, %v2839
  %v2844 = vmul.f32 %v2389, %v2840
  %v2845 = vpack.c.bf16 %v2842, %v2841
  %v2846 = vpack.c.bf16 %v2844, %v2843
  %v2851 = vunpack.c.l.b16 %v2833
  %v2852 = vunpack.c.l.b16 %v2834
  %v2853 = vunpack.c.l.b16 %v2835
  %v2854 = vunpack.c.l.b16 %v2836
  %v2855 = vpack.c.b16 %v2852, %v2851
  %v2856 = vpack.c.b16 %v2854, %v2853
  %v2860 = vsel %vm43, %v2845, 0
  %v2863 = vsel %vm43, %v2846, 0
  %2865 = vmatpush.bf16.msra.mxu0 0
  %2866 = vmatpush.bf16.msra.mxu0 0
  %2867 = vmatpush.bf16.msra.mxu0 0
  %2868 = vmatpush.bf16.msra.mxu0 0
  %2869 = vmatpush.bf16.msra.mxu0 0
  %2870 = vmatpush.bf16.msra.mxu0 0
  %2871 = vmatpush.bf16.msra.mxu0 %v2856
  %2872 = vmatpush.bf16.msra.mxu0 %v2855
  %2873 = vmatmul.bf16.gmra.mxu0 %v2860
  %v2874 = vpop.f32.mrf.mxu0
  %v2875 = vadd.f32 0.0, %v2874
  %v2876 = vpop.f32.mrf.mxu0
  %v2877 = vadd.f32 0.0, %v2876
  %2878 = vmatmul.bf16.gmra.mxu0 %v2863
  %v2879 = vpop.f32.mrf.mxu0
  %v2880 = vadd.f32 0.0, %v2879
  %v2881 = vpop.f32.mrf.mxu0
  %v2882 = vadd.f32 0.0, %v2881
  %2883 = vdwg.mxu0
  %v2884 = vadd.f32 %v2825, %v2875
  %v2885 = vadd.f32 %v2826, %v2877
  %v2886 = vadd.f32 %v2827, %v2880
  %v2887 = vadd.f32 %v2828, %v2882
  %v2888 = vld [vmem:[%s3 + $0x4a0] sm:$0xf]
  %v2889 = vld [vmem:[%s3 + $0x4a4] sm:$0xf]
  %v2890 = vld [vmem:[%s3 + $0x4a8] sm:$0xf]
  %v2891 = vld [vmem:[%s3 + $0x4ac] sm:$0xf]
  %v2892 = vld [vmem:[%s3 + $0x190] sm:$0xf]
  %v2893 = vld [vmem:[%s3 + $0x194] sm:$0xf]
  %v2894 = vld [vmem:[%s3 + $0x198] sm:$0xf]
  %v2895 = vld [vmem:[%s3 + $0x19c] sm:$0xf]
  %v2896 = vunpack.c.l.bf16 %v2888
  %v2897 = vunpack.c.l.bf16 %v2889
  %v2898 = vunpack.c.l.bf16 %v2890
  %v2899 = vunpack.c.l.bf16 %v2891
  %v2900 = vmul.f32 %v2499, %v2896
  %v2901 = vmul.f32 %v2500, %v2897
  %v2902 = vmul.f32 %v2501, %v2898
  %v2903 = vmul.f32 %v2498, %v2899
  %v2904 = vpack.c.bf16 %v2901, %v2900
  %v2905 = vpack.c.bf16 %v2903, %v2902
  %v2910 = vunpack.c.l.b16 %v2892
  %v2911 = vunpack.c.l.b16 %v2893
  %v2912 = vunpack.c.l.b16 %v2894
  %v2913 = vunpack.c.l.b16 %v2895
  %v2914 = vpack.c.b16 %v2911, %v2910
  %v2915 = vpack.c.b16 %v2913, %v2912
  %v2919 = vsel %vm43, %v2904, 0
  %v2922 = vsel %vm43, %v2905, 0
  %2924 = vmatpush.bf16.msra.mxu0 0
  %2925 = vmatpush.bf16.msra.mxu0 0
  %2926 = vmatpush.bf16.msra.mxu0 0
  %2927 = vmatpush.bf16.msra.mxu0 0
  %2928 = vmatpush.bf16.msra.mxu0 0
  %2929 = vmatpush.bf16.msra.mxu0 0
  %2930 = vmatpush.bf16.msra.mxu0 %v2915
  %2931 = vmatpush.bf16.msra.mxu0 %v2914
  %2932 = vmatmul.bf16.gmra.mxu0 %v2919
  %v2933 = vpop.f32.mrf.mxu0
  %v2934 = vadd.f32 0.0, %v2933
  %v2935 = vpop.f32.mrf.mxu0
  %v2936 = vadd.f32 0.0, %v2935
  %2937 = vmatmul.bf16.gmra.mxu0 %v2922
  %v2938 = vpop.f32.mrf.mxu0
  %v2939 = vadd.f32 0.0, %v2938
  %v2940 = vpop.f32.mrf.mxu0
  %v2941 = vadd.f32 0.0, %v2940
  %2942 = vdwg.mxu0
  %v2943 = vadd.f32 %v2884, %v2934
  %v2944 = vadd.f32 %v2885, %v2936
  %v2945 = vadd.f32 %v2886, %v2939
  %v2946 = vadd.f32 %v2887, %v2941
  %v2947 = vadd.f32 %v676, %v2943
  %v2948 = vadd.f32 %v678, %v2944
  %v2949 = vadd.f32 %v681, %v2945
  %v2950 = vadd.f32 %v683, %v2946
  %v2951 = vld [vmem:[%s2 + $0x40] sm:$0x1]
  %v2952 = vperm.slane %v2951, 0
  %v2953 = vadd.f32 %v2947, %v2952
  %v2954 = vadd.f32 %v2948, %v2952
  %v2955 = vadd.f32 %v2949, %v2952
  %v2956 = vadd.f32 %v2950, %v2952
  %v2957 = vld [vmem:[%s3 + $0x1a0] sm:$0xf]
  %v2958 = vld [vmem:[%s3 + $0x1a4] sm:$0xf]
  %v2959 = vld [vmem:[%s3 + $0x1a8] sm:$0xf]
  %v2960 = vld [vmem:[%s3 + $0x1ac] sm:$0xf]
  %v2961 = vld [vmem:[%s3 + $0x1b0] sm:$0xf]
  %v2962 = vld [vmem:[%s3 + $0x1b4] sm:$0xf]
  %v2963 = vld [vmem:[%s3 + $0x1b8] sm:$0xf]
  %v2964 = vld [vmem:[%s3 + $0x1bc] sm:$0xf]
  %v2965 = vld [vmem:[%s3 + $0x1c0] sm:$0xf]
  %v2966 = vld [vmem:[%s3 + $0x1c4] sm:$0xf]
  %v2967 = vld [vmem:[%s3 + $0x1c8] sm:$0xf]
  %v2968 = vld [vmem:[%s3 + $0x1cc] sm:$0xf]
  %v2969 = vld [vmem:[%s3 + $0x1d0] sm:$0xf]
  %v2970 = vld [vmem:[%s3 + $0x1d4] sm:$0xf]
  %v2971 = vld [vmem:[%s3 + $0x1d8] sm:$0xf]
  %v2972 = vld [vmem:[%s3 + $0x1dc] sm:$0xf]
  %v2973 = vpack.c.bf16 %v2953, %v2953
  %v2974 = vpack.c.bf16 %v2954, %v2954
  %v2975 = vpack.c.bf16 %v2955, %v2955
  %v2976 = vpack.c.bf16 %v2956, %v2956
  %v2977 = vpack.c.bf16 %v709, %v709
  %v2978 = vpack.c.bf16 %v711, %v711
  %v2979 = vpack.c.bf16 %v714, %v714
  %v2980 = vpack.c.bf16 %v716, %v716
  %v2985 = vunpack.c.l.b16 %v2973
  %v2986 = vunpack.c.l.b16 %v2974
  %v2987 = vunpack.c.l.b16 %v2975
  %v2988 = vunpack.c.l.b16 %v2976
  %v2989 = vpack.c.b16 %v2986, %v2985
  %v2990 = vpack.c.b16 %v2988, %v2987
  %v2993 = vunpack.c.l.bf16 %v2989
  %v2994 = vunpack.c.h.bf16 %v2989
  %v2995 = vunpack.c.l.bf16 %v2990
  %v2996 = vunpack.c.h.bf16 %v2990
  %v2997 = vunpack.c.l.bf16 %v2957
  %v2998 = vunpack.c.l.bf16 %v2958
  %v2999 = vunpack.c.l.bf16 %v2959
  %v3000 = vunpack.c.l.bf16 %v2960
  %v3001 = vunpack.c.l.bf16 %v2961
  %v3002 = vunpack.c.l.bf16 %v2962
  %v3003 = vunpack.c.l.bf16 %v2963
  %v3004 = vunpack.c.l.bf16 %v2964
  %v3005 = vunpack.c.l.bf16 %v2965
  %v3006 = vunpack.c.l.bf16 %v2966
  %v3007 = vunpack.c.l.bf16 %v2967
  %v3008 = vunpack.c.l.bf16 %v2968
  %v3009 = vunpack.c.l.bf16 %v2969
  %v3010 = vunpack.c.l.bf16 %v2970
  %v3011 = vunpack.c.l.bf16 %v2971
  %v3012 = vunpack.c.l.bf16 %v2972
  %v3013 = vmul.f32 %v2993, %v2997
  %v3014 = vmul.f32 %v2994, %v2998
  %v3015 = vmul.f32 %v2995, %v2999
  %v3016 = vmul.f32 %v2996, %v3000
  %v3017 = vmul.f32 %v2993, %v3001
  %v3018 = vmul.f32 %v2994, %v3002
  %v3019 = vmul.f32 %v2995, %v3003
  %v3020 = vmul.f32 %v2996, %v3004
  %v3021 = vmul.f32 %v2993, %v3005
  %v3022 = vmul.f32 %v2994, %v3006
  %v3023 = vmul.f32 %v2995, %v3007
  %v3024 = vmul.f32 %v2996, %v3008
  %v3025 = vmul.f32 %v2993, %v3009
  %v3026 = vmul.f32 %v2994, %v3010
  %v3027 = vmul.f32 %v2995, %v3011
  %v3028 = vmul.f32 %v2996, %v3012
  %v3029 = vpack.c.bf16 %v3014, %v3013
  %v3030 = vpack.c.bf16 %v3016, %v3015
  %v3031 = vpack.c.bf16 %v3018, %v3017
  %v3032 = vpack.c.bf16 %v3020, %v3019
  %v3033 = vpack.c.bf16 %v3022, %v3021
  %v3034 = vpack.c.bf16 %v3024, %v3023
  %v3035 = vpack.c.bf16 %v3026, %v3025
  %v3036 = vpack.c.bf16 %v3028, %v3027
  %v3041 = vunpack.c.l.b16 %v2977
  %v3042 = vunpack.c.l.b16 %v2978
  %v3043 = vunpack.c.l.b16 %v2979
  %v3044 = vunpack.c.l.b16 %v2980
  %v3045 = vpack.c.b16 %v3042, %v3041
  %v3046 = vpack.c.b16 %v3044, %v3043
  %v3049 = vunpack.c.l.bf16 %v3045
  %v3050 = vunpack.c.h.bf16 %v3045
  %v3051 = vunpack.c.l.bf16 %v3046
  %v3052 = vunpack.c.h.bf16 %v3046
  %v3053 = vmul.f32 %v3049, %v2997
  %v3054 = vmul.f32 %v3050, %v2998
  %v3055 = vmul.f32 %v3051, %v2999
  %v3056 = vmul.f32 %v3052, %v3000
  %v3057 = vmul.f32 %v3049, %v3001
  %v3058 = vmul.f32 %v3050, %v3002
  %v3059 = vmul.f32 %v3051, %v3003
  %v3060 = vmul.f32 %v3052, %v3004
  %v3061 = vmul.f32 %v3049, %v3005
  %v3062 = vmul.f32 %v3050, %v3006
  %v3063 = vmul.f32 %v3051, %v3007
  %v3064 = vmul.f32 %v3052, %v3008
  %v3065 = vmul.f32 %v3049, %v3009
  %v3066 = vmul.f32 %v3050, %v3010
  %v3067 = vmul.f32 %v3051, %v3011
  %v3068 = vmul.f32 %v3052, %v3012
  %v3069 = vpack.c.bf16 %v3054, %v3053
  %v3070 = vpack.c.bf16 %v3056, %v3055
  %v3071 = vpack.c.bf16 %v3058, %v3057
  %v3072 = vpack.c.bf16 %v3060, %v3059
  %v3073 = vpack.c.bf16 %v3062, %v3061
  %v3074 = vpack.c.bf16 %v3064, %v3063
  %v3075 = vpack.c.bf16 %v3066, %v3065
  %v3076 = vpack.c.bf16 %v3068, %v3067
  %v3077 = vpack.c.bf16 %v2318, %v2317
  %v3078 = vpack.c.bf16 %v2320, %v2319
  %v3079 = vpack.c.bf16 %v2322, %v2321
  %v3080 = vpack.c.bf16 %v2324, %v2323
  %v3081 = vpack.c.bf16 %v2326, %v2325
  %v3082 = vpack.c.bf16 %v2328, %v2327
  %v3083 = vpack.c.bf16 %v2330, %v2329
  %v3084 = vpack.c.bf16 %v2332, %v2331
  %v3085 = vld [vmem:[%s2 + $0x70] sm:$0xff]
  %v3086 = vld [vmem:[%s2 + $0x78] sm:$0xff]
  %v3087 = vld [vmem:[%s2 + $0x80] sm:$0xff]
  %v3088 = vld [vmem:[%s2 + $0x88] sm:$0xff]
  %v3089 = vld [vmem:[%s2 + $0x90] sm:$0xff]
  %v3090 = vld [vmem:[%s2 + $0x98] sm:$0xff]
  %v3091 = vld [vmem:[%s2 + $0xa0] sm:$0xff]
  %v3092 = vld [vmem:[%s2 + $0xa8] sm:$0xff]
  %v3093 = vld [vmem:[%s2 + $0xb0] sm:$0xff]
  %v3094 = vld [vmem:[%s2 + $0xb8] sm:$0xff]
  %v3095 = vld [vmem:[%s2 + $0xc0] sm:$0xff]
  %v3096 = vld [vmem:[%s2 + $0xc8] sm:$0xff]
  %v3097 = vld [vmem:[%s2 + $0xd0] sm:$0xff]
  %v3098 = vld [vmem:[%s2 + $0xd8] sm:$0xff]
  %v3099 = vld [vmem:[%s2 + $0xe0] sm:$0xff]
  %v3100 = vld [vmem:[%s2 + $0xe8] sm:$0xff]
  %v3102 = vsel %vm43, %v3077, 0
  %v3105 = vsel %vm43, %v3078, 0
  %v3108 = vsel %vm43, %v3079, 0
  %v3111 = vsel %vm43, %v3080, 0
  %v3114 = vsel %vm43, %v3081, 0
  %v3117 = vsel %vm43, %v3082, 0
  %v3120 = vsel %vm43, %v3083, 0
  %v3123 = vsel %vm43, %v3084, 0
  %v3126 = vsel %vm43, %v3029, 0
  %v3129 = vsel %vm43, %v3030, 0
  %v3132 = vsel %vm43, %v3031, 0
  %v3135 = vsel %vm43, %v3032, 0
  %v3138 = vsel %vm43, %v3033, 0
  %v3141 = vsel %vm43, %v3034, 0
  %v3144 = vsel %vm43, %v3035, 0
  %v3147 = vsel %vm43, %v3036, 0
  %3149 = vmatpush.bf16.xpose.msra.mxu0 %v3147
  %3150 = vmatpush.bf16.xpose.msra.mxu0 %v3144
  %3151 = vmatpush.bf16.xpose.msra.mxu0 %v3141
  %3152 = vmatpush.bf16.xpose.msra.mxu0 %v3138
  %3153 = vmatpush.bf16.xpose.msra.mxu0 %v3135
  %3154 = vmatpush.bf16.xpose.msra.mxu0 %v3132
  %3155 = vmatpush.bf16.xpose.msra.mxu0 %v3129
  %3156 = vmatpush.bf16.xpose.msra.mxu0 %v3126
  %3157 = vmatmul.bf16.gmra.mxu0 %v3102
  %v3158 = vpop.f32.mrf.mxu0
  %v3159 = vadd.f32 %v3085, %v3158
  %v3160 = vpop.f32.mrf.mxu0
  %v3161 = vadd.f32 %v3086, %v3160
  %3162 = vmatmul.bf16.gmra.mxu0 %v3105
  %v3163 = vpop.f32.mrf.mxu0
  %v3164 = vadd.f32 %v3087, %v3163
  %v3165 = vpop.f32.mrf.mxu0
  %v3166 = vadd.f32 %v3088, %v3165
  %3167 = vmatmul.bf16.gmra.mxu0 %v3108
  %v3168 = vpop.f32.mrf.mxu0
  %v3169 = vadd.f32 %v3089, %v3168
  %v3170 = vpop.f32.mrf.mxu0
  %v3171 = vadd.f32 %v3090, %v3170
  %3172 = vmatmul.bf16.gmra.mxu0 %v3111
  %v3173 = vpop.f32.mrf.mxu0
  %v3174 = vadd.f32 %v3091, %v3173
  %v3175 = vpop.f32.mrf.mxu0
  %v3176 = vadd.f32 %v3092, %v3175
  %3177 = vmatmul.bf16.gmra.mxu0 %v3114
  %v3178 = vpop.f32.mrf.mxu0
  %v3179 = vadd.f32 %v3093, %v3178
  %v3180 = vpop.f32.mrf.mxu0
  %v3181 = vadd.f32 %v3094, %v3180
  %3182 = vmatmul.bf16.gmra.mxu0 %v3117
  %v3183 = vpop.f32.mrf.mxu0
  %v3184 = vadd.f32 %v3095, %v3183
  %v3185 = vpop.f32.mrf.mxu0
  %v3186 = vadd.f32 %v3096, %v3185
  %3187 = vmatmul.bf16.gmra.mxu0 %v3120
  %v3188 = vpop.f32.mrf.mxu0
  %v3189 = vadd.f32 %v3097, %v3188
  %v3190 = vpop.f32.mrf.mxu0
  %v3191 = vadd.f32 %v3098, %v3190
  %3192 = vmatmul.bf16.gmra.mxu0 %v3123
  %v3193 = vpop.f32.mrf.mxu0
  %v3194 = vadd.f32 %v3099, %v3193
  %v3195 = vpop.f32.mrf.mxu0
  %v3196 = vadd.f32 %v3100, %v3195
  %3197 = vdwg.mxu0
  %3198 = vmax.xlane.f32.xlu0 %v3159
  %v3199 = vpop.xlane.xlu0 %3198
  %3200 = vmax.xlane.f32.xlu0 %v3161
  %v3201 = vpop.xlane.xlu0 %3200
  %3202 = vmax.xlane.f32.xlu0 %v3164
  %v3203 = vpop.xlane.xlu0 %3202
  %3204 = vmax.xlane.f32.xlu0 %v3166
  %v3205 = vpop.xlane.xlu0 %3204
  %3206 = vmax.xlane.f32.xlu0 %v3169
  %v3207 = vpop.xlane.xlu0 %3206
  %3208 = vmax.xlane.f32.xlu0 %v3171
  %v3209 = vpop.xlane.xlu0 %3208
  %3210 = vmax.xlane.f32.xlu0 %v3174
  %v3211 = vpop.xlane.xlu0 %3210
  %3212 = vmax.xlane.f32.xlu0 %v3176
  %v3213 = vpop.xlane.xlu0 %3212
  %3214 = vmax.xlane.f32.xlu0 %v3179
  %v3215 = vpop.xlane.xlu0 %3214
  %3216 = vmax.xlane.f32.xlu0 %v3181
  %v3217 = vpop.xlane.xlu0 %3216
  %3218 = vmax.xlane.f32.xlu0 %v3184
  %v3219 = vpop.xlane.xlu0 %3218
  %3220 = vmax.xlane.f32.xlu0 %v3186
  %v3221 = vpop.xlane.xlu0 %3220
  %3222 = vmax.xlane.f32.xlu0 %v3189
  %v3223 = vpop.xlane.xlu0 %3222
  %3224 = vmax.xlane.f32.xlu0 %v3191
  %v3225 = vpop.xlane.xlu0 %3224
  %3226 = vmax.xlane.f32.xlu0 %v3194
  %v3227 = vpop.xlane.xlu0 %3226
  %3228 = vmax.xlane.f32.xlu0 %v3196
  %v3229 = vpop.xlane.xlu0 %3228
  %v3230 = vsub.f32 %v3159, %v3199
  %v3231 = vsub.f32 %v3161, %v3201
  %v3232 = vsub.f32 %v3164, %v3203
  %v3233 = vsub.f32 %v3166, %v3205
  %v3234 = vsub.f32 %v3169, %v3207
  %v3235 = vsub.f32 %v3171, %v3209
  %v3236 = vsub.f32 %v3174, %v3211
  %v3237 = vsub.f32 %v3176, %v3213
  %v3238 = vsub.f32 %v3179, %v3215
  %v3239 = vsub.f32 %v3181, %v3217
  %v3240 = vsub.f32 %v3184, %v3219
  %v3241 = vsub.f32 %v3186, %v3221
  %v3242 = vsub.f32 %v3189, %v3223
  %v3243 = vsub.f32 %v3191, %v3225
  %v3244 = vsub.f32 %v3194, %v3227
  %v3245 = vsub.f32 %v3196, %v3229
  %v3246 = vmul.f32 %v3230, 1.442695
  %v3247 = vpow.pop %v3246
  %v3248 = vmul.f32 %v3231, 1.442695
  %v3249 = vpow.pop %v3248
  %v3250 = vmul.f32 %v3232, 1.442695
  %v3251 = vpow.pop %v3250
  %v3252 = vmul.f32 %v3233, 1.442695
  %v3253 = vpow.pop %v3252
  %v3254 = vmul.f32 %v3234, 1.442695
  %v3255 = vpow.pop %v3254
  %v3256 = vmul.f32 %v3235, 1.442695
  %v3257 = vpow.pop %v3256
  %v3258 = vmul.f32 %v3236, 1.442695
  %v3259 = vpow.pop %v3258
  %v3260 = vmul.f32 %v3237, 1.442695
  %v3261 = vpow.pop %v3260
  %v3262 = vmul.f32 %v3238, 1.442695
  %v3263 = vpow.pop %v3262
  %v3264 = vmul.f32 %v3239, 1.442695
  %v3265 = vpow.pop %v3264
  %v3266 = vmul.f32 %v3240, 1.442695
  %v3267 = vpow.pop %v3266
  %v3268 = vmul.f32 %v3241, 1.442695
  %v3269 = vpow.pop %v3268
  %v3270 = vmul.f32 %v3242, 1.442695
  %v3271 = vpow.pop %v3270
  %v3272 = vmul.f32 %v3243, 1.442695
  %v3273 = vpow.pop %v3272
  %v3274 = vmul.f32 %v3244, 1.442695
  %v3275 = vpow.pop %v3274
  %v3276 = vmul.f32 %v3245, 1.442695
  %v3277 = vpow.pop %v3276
  %v3278 = vpack.c.bf16 %v3247, %v3247
  %v3279 = vpack.c.bf16 %v3249, %v3249
  %v3280 = vpack.c.bf16 %v3251, %v3251
  %v3281 = vpack.c.bf16 %v3253, %v3253
  %v3282 = vpack.c.bf16 %v3255, %v3255
  %v3283 = vpack.c.bf16 %v3257, %v3257
  %v3284 = vpack.c.bf16 %v3259, %v3259
  %v3285 = vpack.c.bf16 %v3261, %v3261
  %v3286 = vpack.c.bf16 %v3263, %v3263
  %v3287 = vpack.c.bf16 %v3265, %v3265
  %v3288 = vpack.c.bf16 %v3267, %v3267
  %v3289 = vpack.c.bf16 %v3269, %v3269
  %v3290 = vpack.c.bf16 %v3271, %v3271
  %v3291 = vpack.c.bf16 %v3273, %v3273
  %v3292 = vpack.c.bf16 %v3275, %v3275
  %v3293 = vpack.c.bf16 %v3277, %v3277
  %v3294 = vld [vmem:[%s4 + $0x10] sm:$0xf]
  %v3295 = vld [vmem:[%s4 + $0x14] sm:$0xf]
  %v3296 = vld [vmem:[%s4 + $0x18] sm:$0xf]
  %v3297 = vld [vmem:[%s4 + $0x1c] sm:$0xf]
  %v3298 = vld [vmem:[%s4 + $0x20] sm:$0xf]
  %v3299 = vld [vmem:[%s4 + $0x24] sm:$0xf]
  %v3300 = vld [vmem:[%s4 + $0x28] sm:$0xf]
  %v3301 = vld [vmem:[%s4 + $0x2c] sm:$0xf]
  %v3302 = vld [vmem:[%s4 + $0x30] sm:$0xf]
  %v3303 = vld [vmem:[%s4 + $0x34] sm:$0xf]
  %v3304 = vld [vmem:[%s4 + $0x38] sm:$0xf]
  %v3305 = vld [vmem:[%s4 + $0x3c] sm:$0xf]
  %v3306 = vld [vmem:[%s4 + $0x40] sm:$0xf]
  %v3307 = vld [vmem:[%s4 + $0x44] sm:$0xf]
  %v3308 = vld [vmem:[%s4 + $0x48] sm:$0xf]
  %v3309 = vld [vmem:[%s4 + $0x4c] sm:$0xf]
  %v3326 = vunpack.c.l.b16 %v3278
  %v3327 = vunpack.c.l.b16 %v3279
  %v3328 = vunpack.c.l.b16 %v3280
  %v3329 = vunpack.c.l.b16 %v3281
  %v3330 = vunpack.c.l.b16 %v3282
  %v3331 = vunpack.c.l.b16 %v3283
  %v3332 = vunpack.c.l.b16 %v3284
  %v3333 = vunpack.c.l.b16 %v3285
  %v3334 = vunpack.c.l.b16 %v3286
  %v3335 = vunpack.c.l.b16 %v3287
  %v3336 = vunpack.c.l.b16 %v3288
  %v3337 = vunpack.c.l.b16 %v3289
  %v3338 = vunpack.c.l.b16 %v3290
  %v3339 = vunpack.c.l.b16 %v3291
  %v3340 = vunpack.c.l.b16 %v3292
  %v3341 = vunpack.c.l.b16 %v3293
  %v3342 = vpack.c.b16 %v3327, %v3326
  %v3343 = vpack.c.b16 %v3329, %v3328
  %v3344 = vpack.c.b16 %v3331, %v3330
  %v3345 = vpack.c.b16 %v3333, %v3332
  %v3346 = vpack.c.b16 %v3335, %v3334
  %v3347 = vpack.c.b16 %v3337, %v3336
  %v3348 = vpack.c.b16 %v3339, %v3338
  %v3349 = vpack.c.b16 %v3341, %v3340
  %v3374 = vunpack.c.l.b16 %v3294
  %v3375 = vunpack.c.l.b16 %v3295
  %v3376 = vunpack.c.l.b16 %v3296
  %v3377 = vunpack.c.l.b16 %v3297
  %v3378 = vunpack.c.l.b16 %v3298
  %v3379 = vunpack.c.l.b16 %v3299
  %v3380 = vunpack.c.l.b16 %v3300
  %v3381 = vunpack.c.l.b16 %v3301
  %v3382 = vunpack.c.l.b16 %v3302
  %v3383 = vunpack.c.l.b16 %v3303
  %v3384 = vunpack.c.l.b16 %v3304
  %v3385 = vunpack.c.l.b16 %v3305
  %v3386 = vunpack.c.l.b16 %v3306
  %v3387 = vunpack.c.l.b16 %v3307
  %v3388 = vunpack.c.l.b16 %v3308
  %v3389 = vunpack.c.l.b16 %v3309
  %v3390 = vpack.c.b16 %v3375, %v3374
  %v3391 = vpack.c.b16 %v3377, %v3376
  %v3392 = vpack.c.b16 %v3379, %v3378
  %v3393 = vpack.c.b16 %v3381, %v3380
  %v3394 = vpack.c.b16 %v3383, %v3382
  %v3395 = vpack.c.b16 %v3385, %v3384
  %v3396 = vpack.c.b16 %v3387, %v3386
  %v3397 = vpack.c.b16 %v3389, %v3388
  %3406 = vmatpush.bf16.msra.mxu0 %v3397
  %3407 = vmatpush.bf16.msra.mxu0 %v3396
  %3408 = vmatpush.bf16.msra.mxu0 %v3395
  %3409 = vmatpush.bf16.msra.mxu0 %v3394
  %3410 = vmatpush.bf16.msra.mxu0 %v3393
  %3411 = vmatpush.bf16.msra.mxu0 %v3392
  %3412 = vmatpush.bf16.msra.mxu0 %v3391
  %3413 = vmatpush.bf16.msra.mxu0 %v3390
  %3414 = vmatmul.bf16.gmra.mxu0 %v3342
  %v3415 = vpop.f32.mrf.mxu0
  %v3416 = vadd.f32 1e-30, %v3415
  %v3417 = vpop.f32.mrf.mxu0
  %v3418 = vadd.f32 1e-30, %v3417
  %3419 = vmatmul.bf16.gmra.mxu0 %v3343
  %v3420 = vpop.f32.mrf.mxu0
  %v3421 = vadd.f32 1e-30, %v3420
  %v3422 = vpop.f32.mrf.mxu0
  %v3423 = vadd.f32 1e-30, %v3422
  %3424 = vmatmul.bf16.gmra.mxu0 %v3344
  %v3425 = vpop.f32.mrf.mxu0
  %v3426 = vadd.f32 1e-30, %v3425
  %v3427 = vpop.f32.mrf.mxu0
  %v3428 = vadd.f32 1e-30, %v3427
  %3429 = vmatmul.bf16.gmra.mxu0 %v3345
  %v3430 = vpop.f32.mrf.mxu0
  %v3431 = vadd.f32 1e-30, %v3430
  %v3432 = vpop.f32.mrf.mxu0
  %v3433 = vadd.f32 1e-30, %v3432
  %3434 = vmatmul.bf16.gmra.mxu0 %v3346
  %v3435 = vpop.f32.mrf.mxu0
  %v3436 = vadd.f32 1e-30, %v3435
  %v3437 = vpop.f32.mrf.mxu0
  %v3438 = vadd.f32 1e-30, %v3437
  %3439 = vmatmul.bf16.gmra.mxu0 %v3347
  %v3440 = vpop.f32.mrf.mxu0
  %v3441 = vadd.f32 1e-30, %v3440
  %v3442 = vpop.f32.mrf.mxu0
  %v3443 = vadd.f32 1e-30, %v3442
  %3444 = vmatmul.bf16.gmra.mxu0 %v3348
  %v3445 = vpop.f32.mrf.mxu0
  %v3446 = vadd.f32 1e-30, %v3445
  %v3447 = vpop.f32.mrf.mxu0
  %v3448 = vadd.f32 1e-30, %v3447
  %3449 = vmatmul.bf16.gmra.mxu0 %v3349
  %v3450 = vpop.f32.mrf.mxu0
  %v3451 = vadd.f32 1e-30, %v3450
  %v3452 = vpop.f32.mrf.mxu0
  %v3453 = vadd.f32 1e-30, %v3452
  %3454 = vdwg.mxu0
  %v3455 = vrcp.pop %v3416
  %v3456 = vrcp.pop %v3418
  %v3457 = vrcp.pop %v3421
  %v3458 = vrcp.pop %v3423
  %v3459 = vrcp.pop %v3426
  %v3460 = vrcp.pop %v3428
  %v3461 = vrcp.pop %v3431
  %v3462 = vrcp.pop %v3433
  %v3463 = vrcp.pop %v3436
  %v3464 = vrcp.pop %v3438
  %v3465 = vrcp.pop %v3441
  %v3466 = vrcp.pop %v3443
  %v3467 = vrcp.pop %v3446
  %v3468 = vrcp.pop %v3448
  %v3469 = vrcp.pop %v3451
  %v3470 = vrcp.pop %v3453
  %v3471 = vpack.c.bf16 %v3455, %v3455
  %v3472 = vpack.c.bf16 %v3456, %v3456
  %v3473 = vpack.c.bf16 %v3457, %v3457
  %v3474 = vpack.c.bf16 %v3458, %v3458
  %v3475 = vpack.c.bf16 %v3459, %v3459
  %v3476 = vpack.c.bf16 %v3460, %v3460
  %v3477 = vpack.c.bf16 %v3461, %v3461
  %v3478 = vpack.c.bf16 %v3462, %v3462
  %v3479 = vpack.c.bf16 %v3463, %v3463
  %v3480 = vpack.c.bf16 %v3464, %v3464
  %v3481 = vpack.c.bf16 %v3465, %v3465
  %v3482 = vpack.c.bf16 %v3466, %v3466
  %v3483 = vpack.c.bf16 %v3467, %v3467
  %v3484 = vpack.c.bf16 %v3468, %v3468
  %v3485 = vpack.c.bf16 %v3469, %v3469
  %v3486 = vpack.c.bf16 %v3470, %v3470
  %v3487 = vunpack.c.l.bf16 %v3278
  %v3488 = vunpack.c.l.bf16 %v3279
  %v3489 = vunpack.c.l.bf16 %v3280
  %v3490 = vunpack.c.l.bf16 %v3281
  %v3491 = vunpack.c.l.bf16 %v3282
  %v3492 = vunpack.c.l.bf16 %v3283
  %v3493 = vunpack.c.l.bf16 %v3284
  %v3494 = vunpack.c.l.bf16 %v3285
  %v3495 = vunpack.c.l.bf16 %v3286
  %v3496 = vunpack.c.l.bf16 %v3287
  %v3497 = vunpack.c.l.bf16 %v3288
  %v3498 = vunpack.c.l.bf16 %v3289
  %v3499 = vunpack.c.l.bf16 %v3290
  %v3500 = vunpack.c.l.bf16 %v3291
  %v3501 = vunpack.c.l.bf16 %v3292
  %v3502 = vunpack.c.l.bf16 %v3293
  %v3503 = vunpack.c.l.bf16 %v3471
  %v3504 = vunpack.c.l.bf16 %v3472
  %v3505 = vunpack.c.l.bf16 %v3473
  %v3506 = vunpack.c.l.bf16 %v3474
  %v3507 = vunpack.c.l.bf16 %v3475
  %v3508 = vunpack.c.l.bf16 %v3476
  %v3509 = vunpack.c.l.bf16 %v3477
  %v3510 = vunpack.c.l.bf16 %v3478
  %v3511 = vunpack.c.l.bf16 %v3479
  %v3512 = vunpack.c.l.bf16 %v3480
  %v3513 = vunpack.c.l.bf16 %v3481
  %v3514 = vunpack.c.l.bf16 %v3482
  %v3515 = vunpack.c.l.bf16 %v3483
  %v3516 = vunpack.c.l.bf16 %v3484
  %v3517 = vunpack.c.l.bf16 %v3485
  %v3518 = vunpack.c.l.bf16 %v3486
  %v3519 = vmul.f32 %v3487, %v3503
  %v3520 = vmul.f32 %v3488, %v3504
  %v3521 = vmul.f32 %v3489, %v3505
  %v3522 = vmul.f32 %v3490, %v3506
  %v3523 = vmul.f32 %v3491, %v3507
  %v3524 = vmul.f32 %v3492, %v3508
  %v3525 = vmul.f32 %v3493, %v3509
  %v3526 = vmul.f32 %v3494, %v3510
  %v3527 = vmul.f32 %v3495, %v3511
  %v3528 = vmul.f32 %v3496, %v3512
  %v3529 = vmul.f32 %v3497, %v3513
  %v3530 = vmul.f32 %v3498, %v3514
  %v3531 = vmul.f32 %v3499, %v3515
  %v3532 = vmul.f32 %v3500, %v3516
  %v3533 = vmul.f32 %v3501, %v3517
  %v3534 = vmul.f32 %v3502, %v3518
  %v3535 = vpack.c.bf16 %v3520, %v3519
  %v3536 = vpack.c.bf16 %v3522, %v3521
  %v3537 = vpack.c.bf16 %v3524, %v3523
  %v3538 = vpack.c.bf16 %v3526, %v3525
  %v3539 = vpack.c.bf16 %v3528, %v3527
  %v3540 = vpack.c.bf16 %v3530, %v3529
  %v3541 = vpack.c.bf16 %v3532, %v3531
  %v3542 = vpack.c.bf16 %v3534, %v3533
  %3543 = vmatpush.bf16.msra.mxu0 %v3076
  %3544 = vmatpush.bf16.msra.mxu0 %v3075
  %3545 = vmatpush.bf16.msra.mxu0 %v3074
  %3546 = vmatpush.bf16.msra.mxu0 %v3073
  %3547 = vmatpush.bf16.msra.mxu0 %v3072
  %3548 = vmatpush.bf16.msra.mxu0 %v3071
  %3549 = vmatpush.bf16.msra.mxu0 %v3070
  %3550 = vmatpush.bf16.msra.mxu0 %v3069
  %3551 = vmatmul.bf16.gmra.mxu0 %v3535
  %v3552 = vpop.f32.mrf.mxu0
  %v3553 = vadd.f32 0.0, %v3552
  %v3554 = vpop.f32.mrf.mxu0
  %v3555 = vadd.f32 0.0, %v3554
  %3556 = vmatmul.bf16.gmra.mxu0 %v3536
  %v3557 = vpop.f32.mrf.mxu0
  %v3558 = vadd.f32 0.0, %v3557
  %v3559 = vpop.f32.mrf.mxu0
  %v3560 = vadd.f32 0.0, %v3559
  %3561 = vmatmul.bf16.gmra.mxu0 %v3537
  %v3562 = vpop.f32.mrf.mxu0
  %v3563 = vadd.f32 0.0, %v3562
  %v3564 = vpop.f32.mrf.mxu0
  %v3565 = vadd.f32 0.0, %v3564
  %3566 = vmatmul.bf16.gmra.mxu0 %v3538
  %v3567 = vpop.f32.mrf.mxu0
  %v3568 = vadd.f32 0.0, %v3567
  %v3569 = vpop.f32.mrf.mxu0
  %v3570 = vadd.f32 0.0, %v3569
  %3571 = vmatmul.bf16.gmra.mxu0 %v3539
  %v3572 = vpop.f32.mrf.mxu0
  %v3573 = vadd.f32 0.0, %v3572
  %v3574 = vpop.f32.mrf.mxu0
  %v3575 = vadd.f32 0.0, %v3574
  %3576 = vmatmul.bf16.gmra.mxu0 %v3540
  %v3577 = vpop.f32.mrf.mxu0
  %v3578 = vadd.f32 0.0, %v3577
  %v3579 = vpop.f32.mrf.mxu0
  %v3580 = vadd.f32 0.0, %v3579
  %3581 = vmatmul.bf16.gmra.mxu0 %v3541
  %v3582 = vpop.f32.mrf.mxu0
  %v3583 = vadd.f32 0.0, %v3582
  %v3584 = vpop.f32.mrf.mxu0
  %v3585 = vadd.f32 0.0, %v3584
  %3586 = vmatmul.bf16.gmra.mxu0 %v3542
  %v3587 = vpop.f32.mrf.mxu0
  %v3588 = vadd.f32 0.0, %v3587
  %v3589 = vpop.f32.mrf.mxu0
  %v3590 = vadd.f32 0.0, %v3589
  %3591 = vdwg.mxu0
  %v3592 = vld [vmem:[%s3 + $0x30] sm:$0xf]
  %v3593 = vld [vmem:[%s3 + $0x34] sm:$0xf]
  %v3594 = vld [vmem:[%s3 + $0x38] sm:$0xf]
  %v3595 = vld [vmem:[%s3 + $0x3c] sm:$0xf]
  %v3596 = vpack.c.bf16 %v3555, %v3553
  %v3597 = vpack.c.bf16 %v3560, %v3558
  %v3598 = vpack.c.bf16 %v3565, %v3563
  %v3599 = vpack.c.bf16 %v3570, %v3568
  %v3600 = vpack.c.bf16 %v3575, %v3573
  %v3601 = vpack.c.bf16 %v3580, %v3578
  %v3602 = vpack.c.bf16 %v3585, %v3583
  %v3603 = vpack.c.bf16 %v3590, %v3588
  %v3604 = vld [vmem:[%s2 + $0x48] sm:$0x1]
  %v3605 = vperm.slane %v3604, 0
  %v3610 = vunpack.c.l.b16 %v3592
  %v3611 = vunpack.c.l.b16 %v3593
  %v3612 = vunpack.c.l.b16 %v3594
  %v3613 = vunpack.c.l.b16 %v3595
  %v3614 = vpack.c.b16 %v3611, %v3610
  %v3615 = vpack.c.b16 %v3613, %v3612
  %v3619 = vsel %vm43, %v3596, 0
  %v3622 = vsel %vm43, %v3597, 0
  %v3625 = vsel %vm43, %v3598, 0
  %v3628 = vsel %vm43, %v3599, 0
  %v3631 = vsel %vm43, %v3600, 0
  %v3634 = vsel %vm43, %v3601, 0
  %v3637 = vsel %vm43, %v3602, 0
  %v3640 = vsel %vm43, %v3603, 0
  %3642 = vmatpush.bf16.msra.mxu0 0
  %3643 = vmatpush.bf16.msra.mxu0 0
  %3644 = vmatpush.bf16.msra.mxu0 0
  %3645 = vmatpush.bf16.msra.mxu0 0
  %3646 = vmatpush.bf16.msra.mxu0 0
  %3647 = vmatpush.bf16.msra.mxu0 0
  %3648 = vmatpush.bf16.msra.mxu0 %v3615
  %3649 = vmatpush.bf16.msra.mxu0 %v3614
  %3650 = vmatmul.bf16.gmra.mxu0 %v3619
  %v3651 = vpop.f32.mrf.mxu0
  %v3652 = vadd.f32 %v3605, %v3651
  %v3653 = vpop.f32.mrf.mxu0
  %v3654 = vadd.f32 %v3605, %v3653
  %3655 = vmatmul.bf16.gmra.mxu0 %v3622
  %v3656 = vpop.f32.mrf.mxu0
  %v3657 = vadd.f32 %v3605, %v3656
  %v3658 = vpop.f32.mrf.mxu0
  %v3659 = vadd.f32 %v3605, %v3658
  %3660 = vmatmul.bf16.gmra.mxu0 %v3625
  %v3661 = vpop.f32.mrf.mxu0
  %v3662 = vadd.f32 %v3605, %v3661
  %v3663 = vpop.f32.mrf.mxu0
  %v3664 = vadd.f32 %v3605, %v3663
  %3665 = vmatmul.bf16.gmra.mxu0 %v3628
  %v3666 = vpop.f32.mrf.mxu0
  %v3667 = vadd.f32 %v3605, %v3666
  %v3668 = vpop.f32.mrf.mxu0
  %v3669 = vadd.f32 %v3605, %v3668
  %3670 = vmatmul.bf16.gmra.mxu0 %v3631
  %v3671 = vpop.f32.mrf.mxu0
  %v3672 = vadd.f32 %v3605, %v3671
  %v3673 = vpop.f32.mrf.mxu0
  %v3674 = vadd.f32 %v3605, %v3673
  %3675 = vmatmul.bf16.gmra.mxu0 %v3634
  %v3676 = vpop.f32.mrf.mxu0
  %v3677 = vadd.f32 %v3605, %v3676
  %v3678 = vpop.f32.mrf.mxu0
  %v3679 = vadd.f32 %v3605, %v3678
  %3680 = vmatmul.bf16.gmra.mxu0 %v3637
  %v3681 = vpop.f32.mrf.mxu0
  %v3682 = vadd.f32 %v3605, %v3681
  %v3683 = vpop.f32.mrf.mxu0
  %v3684 = vadd.f32 %v3605, %v3683
  %3685 = vmatmul.bf16.gmra.mxu0 %v3640
  %v3686 = vpop.f32.mrf.mxu0
  %v3687 = vadd.f32 %v3605, %v3686
  %v3688 = vpop.f32.mrf.mxu0
  %v3689 = vadd.f32 %v3605, %v3688
  %3690 = vdwg.mxu0
  %v3691 = vadd.f32 %v21, %v3652
  %v3692 = vadd.f32 %v22, %v3654
  %v3693 = vadd.f32 %v23, %v3657
  %v3694 = vadd.f32 %v24, %v3659
  %v3695 = vadd.f32 %v25, %v3662
  %v3696 = vadd.f32 %v26, %v3664
  %v3697 = vadd.f32 %v27, %v3667
  %v3698 = vadd.f32 %v28, %v3669
  %v3699 = vadd.f32 %v29, %v3672
  %v3700 = vadd.f32 %v30, %v3674
  %v3701 = vadd.f32 %v31, %v3677
  %v3702 = vadd.f32 %v32, %v3679
  %v3703 = vadd.f32 %v33, %v3682
  %v3704 = vadd.f32 %v34, %v3684
  %v3705 = vadd.f32 %v35, %v3687
  %v3706 = vadd.f32 %v36, %v3689
  %v3707 = vld [vmem:[%s2 + $0x50] sm:$0x1]
  %v3708 = vld [vmem:[%s2 + $0x58] sm:$0x1]
  %v3709 = vsel %vm43, %v3691, 0.0
  %3710 = vadd.xlane.f32.xlu0 %v3709
  %v3711 = vpop.xlane.xlu0 %3710
  %v3712 = vsel %vm43, %v3692, 0.0
  %3713 = vadd.xlane.f32.xlu0 %v3712
  %v3714 = vpop.xlane.xlu0 %3713
  %v3715 = vsel %vm43, %v3693, 0.0
  %3716 = vadd.xlane.f32.xlu0 %v3715
  %v3717 = vpop.xlane.xlu0 %3716
  %v3718 = vsel %vm43, %v3694, 0.0
  %3719 = vadd.xlane.f32.xlu0 %v3718
  %v3720 = vpop.xlane.xlu0 %3719
  %v3721 = vsel %vm43, %v3695, 0.0
  %3722 = vadd.xlane.f32.xlu0 %v3721
  %v3723 = vpop.xlane.xlu0 %3722
  %v3724 = vsel %vm43, %v3696, 0.0
  %3725 = vadd.xlane.f32.xlu0 %v3724
  %v3726 = vpop.xlane.xlu0 %3725
  %v3727 = vsel %vm43, %v3697, 0.0
  %3728 = vadd.xlane.f32.xlu0 %v3727
  %v3729 = vpop.xlane.xlu0 %3728
  %v3730 = vsel %vm43, %v3698, 0.0
  %3731 = vadd.xlane.f32.xlu0 %v3730
  %v3732 = vpop.xlane.xlu0 %3731
  %v3733 = vsel %vm43, %v3699, 0.0
  %3734 = vadd.xlane.f32.xlu0 %v3733
  %v3735 = vpop.xlane.xlu0 %3734
  %v3736 = vsel %vm43, %v3700, 0.0
  %3737 = vadd.xlane.f32.xlu0 %v3736
  %v3738 = vpop.xlane.xlu0 %3737
  %v3739 = vsel %vm43, %v3701, 0.0
  %3740 = vadd.xlane.f32.xlu0 %v3739
  %v3741 = vpop.xlane.xlu0 %3740
  %v3742 = vsel %vm43, %v3702, 0.0
  %3743 = vadd.xlane.f32.xlu0 %v3742
  %v3744 = vpop.xlane.xlu0 %3743
  %v3745 = vsel %vm43, %v3703, 0.0
  %3746 = vadd.xlane.f32.xlu0 %v3745
  %v3747 = vpop.xlane.xlu0 %3746
  %v3748 = vsel %vm43, %v3704, 0.0
  %3749 = vadd.xlane.f32.xlu0 %v3748
  %v3750 = vpop.xlane.xlu0 %3749
  %v3751 = vsel %vm43, %v3705, 0.0
  %3752 = vadd.xlane.f32.xlu0 %v3751
  %v3753 = vpop.xlane.xlu0 %3752
  %v3754 = vsel %vm43, %v3706, 0.0
  %3755 = vadd.xlane.f32.xlu0 %v3754
  %v3756 = vpop.xlane.xlu0 %3755
  %v3757 = vmul.f32 %v3711, %v98
  %v3758 = vmul.f32 %v3714, %v98
  %v3759 = vmul.f32 %v3717, %v98
  %v3760 = vmul.f32 %v3720, %v98
  %v3761 = vmul.f32 %v3723, %v98
  %v3762 = vmul.f32 %v3726, %v98
  %v3763 = vmul.f32 %v3729, %v98
  %v3764 = vmul.f32 %v3732, %v98
  %v3765 = vmul.f32 %v3735, %v98
  %v3766 = vmul.f32 %v3738, %v98
  %v3767 = vmul.f32 %v3741, %v98
  %v3768 = vmul.f32 %v3744, %v98
  %v3769 = vmul.f32 %v3747, %v98
  %v3770 = vmul.f32 %v3750, %v98
  %v3771 = vmul.f32 %v3753, %v98
  %v3772 = vmul.f32 %v3756, %v98
  %v3773 = vsub.f32 %v3691, %v3757
  %v3774 = vsub.f32 %v3692, %v3758
  %v3775 = vsub.f32 %v3693, %v3759
  %v3776 = vsub.f32 %v3694, %v3760
  %v3777 = vsub.f32 %v3695, %v3761
  %v3778 = vsub.f32 %v3696, %v3762
  %v3779 = vsub.f32 %v3697, %v3763
  %v3780 = vsub.f32 %v3698, %v3764
  %v3781 = vsub.f32 %v3699, %v3765
  %v3782 = vsub.f32 %v3700, %v3766
  %v3783 = vsub.f32 %v3701, %v3767
  %v3784 = vsub.f32 %v3702, %v3768
  %v3785 = vsub.f32 %v3703, %v3769
  %v3786 = vsub.f32 %v3704, %v3770
  %v3787 = vsub.f32 %v3705, %v3771
  %v3788 = vsub.f32 %v3706, %v3772
  %v3789 = vmul.f32 %v3773, %v3773
  %v3790 = vmul.f32 %v3774, %v3774
  %v3791 = vmul.f32 %v3775, %v3775
  %v3792 = vmul.f32 %v3776, %v3776
  %v3793 = vmul.f32 %v3777, %v3777
  %v3794 = vmul.f32 %v3778, %v3778
  %v3795 = vmul.f32 %v3779, %v3779
  %v3796 = vmul.f32 %v3780, %v3780
  %v3797 = vmul.f32 %v3781, %v3781
  %v3798 = vmul.f32 %v3782, %v3782
  %v3799 = vmul.f32 %v3783, %v3783
  %v3800 = vmul.f32 %v3784, %v3784
  %v3801 = vmul.f32 %v3785, %v3785
  %v3802 = vmul.f32 %v3786, %v3786
  %v3803 = vmul.f32 %v3787, %v3787
  %v3804 = vmul.f32 %v3788, %v3788
  %v3805 = vsel %vm43, %v3789, 0.0
  %3806 = vadd.xlane.f32.xlu0 %v3805
  %v3807 = vpop.xlane.xlu0 %3806
  %v3808 = vsel %vm43, %v3790, 0.0
  %3809 = vadd.xlane.f32.xlu0 %v3808
  %v3810 = vpop.xlane.xlu0 %3809
  %v3811 = vsel %vm43, %v3791, 0.0
  %3812 = vadd.xlane.f32.xlu0 %v3811
  %v3813 = vpop.xlane.xlu0 %3812
  %v3814 = vsel %vm43, %v3792, 0.0
  %3815 = vadd.xlane.f32.xlu0 %v3814
  %v3816 = vpop.xlane.xlu0 %3815
  %v3817 = vsel %vm43, %v3793, 0.0
  %3818 = vadd.xlane.f32.xlu0 %v3817
  %v3819 = vpop.xlane.xlu0 %3818
  %v3820 = vsel %vm43, %v3794, 0.0
  %3821 = vadd.xlane.f32.xlu0 %v3820
  %v3822 = vpop.xlane.xlu0 %3821
  %v3823 = vsel %vm43, %v3795, 0.0
  %3824 = vadd.xlane.f32.xlu0 %v3823
  %v3825 = vpop.xlane.xlu0 %3824
  %v3826 = vsel %vm43, %v3796, 0.0
  %3827 = vadd.xlane.f32.xlu0 %v3826
  %v3828 = vpop.xlane.xlu0 %3827
  %v3829 = vsel %vm43, %v3797, 0.0
  %3830 = vadd.xlane.f32.xlu0 %v3829
  %v3831 = vpop.xlane.xlu0 %3830
  %v3832 = vsel %vm43, %v3798, 0.0
  %3833 = vadd.xlane.f32.xlu0 %v3832
  %v3834 = vpop.xlane.xlu0 %3833
  %v3835 = vsel %vm43, %v3799, 0.0
  %3836 = vadd.xlane.f32.xlu0 %v3835
  %v3837 = vpop.xlane.xlu0 %3836
  %v3838 = vsel %vm43, %v3800, 0.0
  %3839 = vadd.xlane.f32.xlu0 %v3838
  %v3840 = vpop.xlane.xlu0 %3839
  %v3841 = vsel %vm43, %v3801, 0.0
  %3842 = vadd.xlane.f32.xlu0 %v3841
  %v3843 = vpop.xlane.xlu0 %3842
  %v3844 = vsel %vm43, %v3802, 0.0
  %3845 = vadd.xlane.f32.xlu0 %v3844
  %v3846 = vpop.xlane.xlu0 %3845
  %v3847 = vsel %vm43, %v3803, 0.0
  %3848 = vadd.xlane.f32.xlu0 %v3847
  %v3849 = vpop.xlane.xlu0 %3848
  %v3850 = vsel %vm43, %v3804, 0.0
  %3851 = vadd.xlane.f32.xlu0 %v3850
  %v3852 = vpop.xlane.xlu0 %3851
  %v3853 = vmul.f32 %v3807, %v98
  %v3854 = vmul.f32 %v3810, %v98
  %v3855 = vmul.f32 %v3813, %v98
  %v3856 = vmul.f32 %v3816, %v98
  %v3857 = vmul.f32 %v3819, %v98
  %v3858 = vmul.f32 %v3822, %v98
  %v3859 = vmul.f32 %v3825, %v98
  %v3860 = vmul.f32 %v3828, %v98
  %v3861 = vmul.f32 %v3831, %v98
  %v3862 = vmul.f32 %v3834, %v98
  %v3863 = vmul.f32 %v3837, %v98
  %v3864 = vmul.f32 %v3840, %v98
  %v3865 = vmul.f32 %v3843, %v98
  %v3866 = vmul.f32 %v3846, %v98
  %v3867 = vmul.f32 %v3849, %v98
  %v3868 = vmul.f32 %v3852, %v98
  %v3869 = vadd.f32 %v3853, 1e-05
  %v3870 = vadd.f32 %v3854, 1e-05
  %v3871 = vadd.f32 %v3855, 1e-05
  %v3872 = vadd.f32 %v3856, 1e-05
  %v3873 = vadd.f32 %v3857, 1e-05
  %v3874 = vadd.f32 %v3858, 1e-05
  %v3875 = vadd.f32 %v3859, 1e-05
  %v3876 = vadd.f32 %v3860, 1e-05
  %v3877 = vadd.f32 %v3861, 1e-05
  %v3878 = vadd.f32 %v3862, 1e-05
  %v3879 = vadd.f32 %v3863, 1e-05
  %v3880 = vadd.f32 %v3864, 1e-05
  %v3881 = vadd.f32 %v3865, 1e-05
  %v3882 = vadd.f32 %v3866, 1e-05
  %v3883 = vadd.f32 %v3867, 1e-05
  %v3884 = vadd.f32 %v3868, 1e-05
  %v3885 = vrsqrt.pop %v3869
  %v3886 = vmul.f32 %v3885, %v3869
  %v3887 = vmul.f32 %v3886, %v3885
  %v3888 = vmul.f32 0.5, %v3887
  %v3889 = vsub.f32 1.5, %v3888
  %v3890 = vmul.f32 %v3885, %v3889
  %vm3891 = vweird.f32 %v3869
  %vm3892 = vweird.f32 %v3885
  %vm3893 = vmor %vm3891, %vm3892
  %v3894 = vsel %vm3893, %v3885, %v3890
  %v3895 = vrsqrt.pop %v3870
  %v3896 = vmul.f32 %v3895, %v3870
  %v3897 = vmul.f32 %v3896, %v3895
  %v3898 = vmul.f32 0.5, %v3897
  %v3899 = vsub.f32 1.5, %v3898
  %v3900 = vmul.f32 %v3895, %v3899
  %vm3901 = vweird.f32 %v3870
  %vm3902 = vweird.f32 %v3895
  %vm3903 = vmor %vm3901, %vm3902
  %v3904 = vsel %vm3903, %v3895, %v3900
  %v3905 = vrsqrt.pop %v3871
  %v3906 = vmul.f32 %v3905, %v3871
  %v3907 = vmul.f32 %v3906, %v3905
  %v3908 = vmul.f32 0.5, %v3907
  %v3909 = vsub.f32 1.5, %v3908
  %v3910 = vmul.f32 %v3905, %v3909
  %vm3911 = vweird.f32 %v3871
  %vm3912 = vweird.f32 %v3905
  %vm3913 = vmor %vm3911, %vm3912
  %v3914 = vsel %vm3913, %v3905, %v3910
  %v3915 = vrsqrt.pop %v3872
  %v3916 = vmul.f32 %v3915, %v3872
  %v3917 = vmul.f32 %v3916, %v3915
  %v3918 = vmul.f32 0.5, %v3917
  %v3919 = vsub.f32 1.5, %v3918
  %v3920 = vmul.f32 %v3915, %v3919
  %vm3921 = vweird.f32 %v3872
  %vm3922 = vweird.f32 %v3915
  %vm3923 = vmor %vm3921, %vm3922
  %v3924 = vsel %vm3923, %v3915, %v3920
  %v3925 = vrsqrt.pop %v3873
  %v3926 = vmul.f32 %v3925, %v3873
  %v3927 = vmul.f32 %v3926, %v3925
  %v3928 = vmul.f32 0.5, %v3927
  %v3929 = vsub.f32 1.5, %v3928
  %v3930 = vmul.f32 %v3925, %v3929
  %vm3931 = vweird.f32 %v3873
  %vm3932 = vweird.f32 %v3925
  %vm3933 = vmor %vm3931, %vm3932
  %v3934 = vsel %vm3933, %v3925, %v3930
  %v3935 = vrsqrt.pop %v3874
  %v3936 = vmul.f32 %v3935, %v3874
  %v3937 = vmul.f32 %v3936, %v3935
  %v3938 = vmul.f32 0.5, %v3937
  %v3939 = vsub.f32 1.5, %v3938
  %v3940 = vmul.f32 %v3935, %v3939
  %vm3941 = vweird.f32 %v3874
  %vm3942 = vweird.f32 %v3935
  %vm3943 = vmor %vm3941, %vm3942
  %v3944 = vsel %vm3943, %v3935, %v3940
  %v3945 = vrsqrt.pop %v3875
  %v3946 = vmul.f32 %v3945, %v3875
  %v3947 = vmul.f32 %v3946, %v3945
  %v3948 = vmul.f32 0.5, %v3947
  %v3949 = vsub.f32 1.5, %v3948
  %v3950 = vmul.f32 %v3945, %v3949
  %vm3951 = vweird.f32 %v3875
  %vm3952 = vweird.f32 %v3945
  %vm3953 = vmor %vm3951, %vm3952
  %v3954 = vsel %vm3953, %v3945, %v3950
  %v3955 = vrsqrt.pop %v3876
  %v3956 = vmul.f32 %v3955, %v3876
  %v3957 = vmul.f32 %v3956, %v3955
  %v3958 = vmul.f32 0.5, %v3957
  %v3959 = vsub.f32 1.5, %v3958
  %v3960 = vmul.f32 %v3955, %v3959
  %vm3961 = vweird.f32 %v3876
  %vm3962 = vweird.f32 %v3955
  %vm3963 = vmor %vm3961, %vm3962
  %v3964 = vsel %vm3963, %v3955, %v3960
  %v3965 = vrsqrt.pop %v3877
  %v3966 = vmul.f32 %v3965, %v3877
  %v3967 = vmul.f32 %v3966, %v3965
  %v3968 = vmul.f32 0.5, %v3967
  %v3969 = vsub.f32 1.5, %v3968
  %v3970 = vmul.f32 %v3965, %v3969
  %vm3971 = vweird.f32 %v3877
  %vm3972 = vweird.f32 %v3965
  %vm3973 = vmor %vm3971, %vm3972
  %v3974 = vsel %vm3973, %v3965, %v3970
  %v3975 = vrsqrt.pop %v3878
  %v3976 = vmul.f32 %v3975, %v3878
  %v3977 = vmul.f32 %v3976, %v3975
  %v3978 = vmul.f32 0.5, %v3977
  %v3979 = vsub.f32 1.5, %v3978
  %v3980 = vmul.f32 %v3975, %v3979
  %vm3981 = vweird.f32 %v3878
  %vm3982 = vweird.f32 %v3975
  %vm3983 = vmor %vm3981, %vm3982
  %v3984 = vsel %vm3983, %v3975, %v3980
  %v3985 = vrsqrt.pop %v3879
  %v3986 = vmul.f32 %v3985, %v3879
  %v3987 = vmul.f32 %v3986, %v3985
  %v3988 = vmul.f32 0.5, %v3987
  %v3989 = vsub.f32 1.5, %v3988
  %v3990 = vmul.f32 %v3985, %v3989
  %vm3991 = vweird.f32 %v3879
  %vm3992 = vweird.f32 %v3985
  %vm3993 = vmor %vm3991, %vm3992
  %v3994 = vsel %vm3993, %v3985, %v3990
  %v3995 = vrsqrt.pop %v3880
  %v3996 = vmul.f32 %v3995, %v3880
  %v3997 = vmul.f32 %v3996, %v3995
  %v3998 = vmul.f32 0.5, %v3997
  %v3999 = vsub.f32 1.5, %v3998
  %v4000 = vmul.f32 %v3995, %v3999
  %vm4001 = vweird.f32 %v3880
  %vm4002 = vweird.f32 %v3995
  %vm4003 = vmor %vm4001, %vm4002
  %v4004 = vsel %vm4003, %v3995, %v4000
  %v4005 = vrsqrt.pop %v3881
  %v4006 = vmul.f32 %v4005, %v3881
  %v4007 = vmul.f32 %v4006, %v4005
  %v4008 = vmul.f32 0.5, %v4007
  %v4009 = vsub.f32 1.5, %v4008
  %v4010 = vmul.f32 %v4005, %v4009
  %vm4011 = vweird.f32 %v3881
  %vm4012 = vweird.f32 %v4005
  %vm4013 = vmor %vm4011, %vm4012
  %v4014 = vsel %vm4013, %v4005, %v4010
  %v4015 = vrsqrt.pop %v3882
  %v4016 = vmul.f32 %v4015, %v3882
  %v4017 = vmul.f32 %v4016, %v4015
  %v4018 = vmul.f32 0.5, %v4017
  %v4019 = vsub.f32 1.5, %v4018
  %v4020 = vmul.f32 %v4015, %v4019
  %vm4021 = vweird.f32 %v3882
  %vm4022 = vweird.f32 %v4015
  %vm4023 = vmor %vm4021, %vm4022
  %v4024 = vsel %vm4023, %v4015, %v4020
  %v4025 = vrsqrt.pop %v3883
  %v4026 = vmul.f32 %v4025, %v3883
  %v4027 = vmul.f32 %v4026, %v4025
  %v4028 = vmul.f32 0.5, %v4027
  %v4029 = vsub.f32 1.5, %v4028
  %v4030 = vmul.f32 %v4025, %v4029
  %vm4031 = vweird.f32 %v3883
  %vm4032 = vweird.f32 %v4025
  %vm4033 = vmor %vm4031, %vm4032
  %v4034 = vsel %vm4033, %v4025, %v4030
  %v4035 = vrsqrt.pop %v3884
  %v4036 = vmul.f32 %v4035, %v3884
  %v4037 = vmul.f32 %v4036, %v4035
  %v4038 = vmul.f32 0.5, %v4037
  %v4039 = vsub.f32 1.5, %v4038
  %v4040 = vmul.f32 %v4035, %v4039
  %vm4041 = vweird.f32 %v3884
  %vm4042 = vweird.f32 %v4035
  %vm4043 = vmor %vm4041, %vm4042
  %v4044 = vsel %vm4043, %v4035, %v4040
  %v4045 = vmul.f32 %v3773, %v3894
  %v4046 = vmul.f32 %v3774, %v3904
  %v4047 = vmul.f32 %v3775, %v3914
  %v4048 = vmul.f32 %v3776, %v3924
  %v4049 = vmul.f32 %v3777, %v3934
  %v4050 = vmul.f32 %v3778, %v3944
  %v4051 = vmul.f32 %v3779, %v3954
  %v4052 = vmul.f32 %v3780, %v3964
  %v4053 = vmul.f32 %v3781, %v3974
  %v4054 = vmul.f32 %v3782, %v3984
  %v4055 = vmul.f32 %v3783, %v3994
  %v4056 = vmul.f32 %v3784, %v4004
  %v4057 = vmul.f32 %v3785, %v4014
  %v4058 = vmul.f32 %v3786, %v4024
  %v4059 = vmul.f32 %v3787, %v4034
  %v4060 = vmul.f32 %v3788, %v4044
  %v4061 = vperm.slane %v3707, 0
  %v4062 = vmul.f32 %v4045, %v4061
  %v4063 = vmul.f32 %v4046, %v4061
  %v4064 = vmul.f32 %v4047, %v4061
  %v4065 = vmul.f32 %v4048, %v4061
  %v4066 = vmul.f32 %v4049, %v4061
  %v4067 = vmul.f32 %v4050, %v4061
  %v4068 = vmul.f32 %v4051, %v4061
  %v4069 = vmul.f32 %v4052, %v4061
  %v4070 = vmul.f32 %v4053, %v4061
  %v4071 = vmul.f32 %v4054, %v4061
  %v4072 = vmul.f32 %v4055, %v4061
  %v4073 = vmul.f32 %v4056, %v4061
  %v4074 = vmul.f32 %v4057, %v4061
  %v4075 = vmul.f32 %v4058, %v4061
  %v4076 = vmul.f32 %v4059, %v4061
  %v4077 = vmul.f32 %v4060, %v4061
  %v4078 = vperm.slane %v3708, 0
  %v4079 = vadd.f32 %v4062, %v4078
  %v4080 = vadd.f32 %v4063, %v4078
  %v4081 = vadd.f32 %v4064, %v4078
  %v4082 = vadd.f32 %v4065, %v4078
  %v4083 = vadd.f32 %v4066, %v4078
  %v4084 = vadd.f32 %v4067, %v4078
  %v4085 = vadd.f32 %v4068, %v4078
  %v4086 = vadd.f32 %v4069, %v4078
  %v4087 = vadd.f32 %v4070, %v4078
  %v4088 = vadd.f32 %v4071, %v4078
  %v4089 = vadd.f32 %v4072, %v4078
  %v4090 = vadd.f32 %v4073, %v4078
  %v4091 = vadd.f32 %v4074, %v4078
  %v4092 = vadd.f32 %v4075, %v4078
  %v4093 = vadd.f32 %v4076, %v4078
  %v4094 = vadd.f32 %v4077, %v4078
  %v4095 = vpack.c.bf16 %v4080, %v4079
  %v4096 = vpack.c.bf16 %v4082, %v4081
  %v4097 = vpack.c.bf16 %v4084, %v4083
  %v4098 = vpack.c.bf16 %v4086, %v4085
  %v4099 = vpack.c.bf16 %v4088, %v4087
  %v4100 = vpack.c.bf16 %v4090, %v4089
  %v4101 = vpack.c.bf16 %v4092, %v4091
  %v4102 = vpack.c.bf16 %v4094, %v4093
  %v4103 = vld [vmem:[%s4] sm:$0xf]
  %v4104 = vld [vmem:[%s4 + $0x4] sm:$0xf]
  %v4105 = vld [vmem:[%s4 + $0x8] sm:$0xf]
  %v4106 = vld [vmem:[%s4 + $0xc] sm:$0xf]
  %v4107 = vld [vmem:[%s2 + $0x60] sm:$0x1]
  %v4108 = vperm.slane %v4107, 0
  %v4113 = vunpack.c.l.b16 %v4103
  %v4114 = vunpack.c.l.b16 %v4104
  %v4115 = vunpack.c.l.b16 %v4105
  %v4116 = vunpack.c.l.b16 %v4106
  %v4117 = vpack.c.b16 %v4114, %v4113
  %v4118 = vpack.c.b16 %v4116, %v4115
  %v4122 = vsel %vm43, %v4095, 0
  %v4125 = vsel %vm43, %v4096, 0
  %v4128 = vsel %vm43, %v4097, 0
  %v4131 = vsel %vm43, %v4098, 0
  %v4134 = vsel %vm43, %v4099, 0
  %v4137 = vsel %vm43, %v4100, 0
  %v4140 = vsel %vm43, %v4101, 0
  %v4143 = vsel %vm43, %v4102, 0
  %4145 = vmatpush.bf16.msra.mxu0 0
  %4146 = vmatpush.bf16.msra.mxu0 0
  %4147 = vmatpush.bf16.msra.mxu0 0
  %4148 = vmatpush.bf16.msra.mxu0 0
  %4149 = vmatpush.bf16.msra.mxu0 0
  %4150 = vmatpush.bf16.msra.mxu0 0
  %4151 = vmatpush.bf16.msra.mxu0 %v4118
  %4152 = vmatpush.bf16.msra.mxu0 %v4117
  %4153 = vmatmul.bf16.gmra.mxu0 %v4122
  %v4154 = vpop.f32.mrf.mxu0
  %v4155 = vadd.f32 %v4108, %v4154
  %v4156 = vpop.f32.mrf.mxu0
  %v4157 = vadd.f32 %v4108, %v4156
  %4158 = vmatmul.bf16.gmra.mxu0 %v4125
  %v4159 = vpop.f32.mrf.mxu0
  %v4160 = vadd.f32 %v4108, %v4159
  %v4161 = vpop.f32.mrf.mxu0
  %v4162 = vadd.f32 %v4108, %v4161
  %4163 = vmatmul.bf16.gmra.mxu0 %v4128
  %v4164 = vpop.f32.mrf.mxu0
  %v4165 = vadd.f32 %v4108, %v4164
  %v4166 = vpop.f32.mrf.mxu0
  %v4167 = vadd.f32 %v4108, %v4166
  %4168 = vmatmul.bf16.gmra.mxu0 %v4131
  %v4169 = vpop.f32.mrf.mxu0
  %v4170 = vadd.f32 %v4108, %v4169
  %v4171 = vpop.f32.mrf.mxu0
  %v4172 = vadd.f32 %v4108, %v4171
  %4173 = vmatmul.bf16.gmra.mxu0 %v4134
  %v4174 = vpop.f32.mrf.mxu0
  %v4175 = vadd.f32 %v4108, %v4174
  %v4176 = vpop.f32.mrf.mxu0
  %v4177 = vadd.f32 %v4108, %v4176
  %4178 = vmatmul.bf16.gmra.mxu0 %v4137
  %v4179 = vpop.f32.mrf.mxu0
  %v4180 = vadd.f32 %v4108, %v4179
  %v4181 = vpop.f32.mrf.mxu0
  %v4182 = vadd.f32 %v4108, %v4181
  %4183 = vmatmul.bf16.gmra.mxu0 %v4140
  %v4184 = vpop.f32.mrf.mxu0
  %v4185 = vadd.f32 %v4108, %v4184
  %v4186 = vpop.f32.mrf.mxu0
  %v4187 = vadd.f32 %v4108, %v4186
  %4188 = vmatmul.bf16.gmra.mxu0 %v4143
  %v4189 = vpop.f32.mrf.mxu0
  %v4190 = vadd.f32 %v4108, %v4189
  %v4191 = vpop.f32.mrf.mxu0
  %v4192 = vadd.f32 %v4108, %v4191
  %4193 = vdwg.mxu0
  %v4194 = vmul.f32 %v4155, 0.5
  %v4195 = vmul.f32 %v4157, 0.5
  %v4196 = vmul.f32 %v4160, 0.5
  %v4197 = vmul.f32 %v4162, 0.5
  %v4198 = vmul.f32 %v4165, 0.5
  %v4199 = vmul.f32 %v4167, 0.5
  %v4200 = vmul.f32 %v4170, 0.5
  %v4201 = vmul.f32 %v4172, 0.5
  %v4202 = vmul.f32 %v4175, 0.5
  %v4203 = vmul.f32 %v4177, 0.5
  %v4204 = vmul.f32 %v4180, 0.5
  %v4205 = vmul.f32 %v4182, 0.5
  %v4206 = vmul.f32 %v4185, 0.5
  %v4207 = vmul.f32 %v4187, 0.5
  %v4208 = vmul.f32 %v4190, 0.5
  %v4209 = vmul.f32 %v4192, 0.5
  %v4210 = vmul.f32 %v4155, 0.044715
  %v4211 = vmul.f32 %v4157, 0.044715
  %v4212 = vmul.f32 %v4160, 0.044715
  %v4213 = vmul.f32 %v4162, 0.044715
  %v4214 = vmul.f32 %v4165, 0.044715
  %v4215 = vmul.f32 %v4167, 0.044715
  %v4216 = vmul.f32 %v4170, 0.044715
  %v4217 = vmul.f32 %v4172, 0.044715
  %v4218 = vmul.f32 %v4175, 0.044715
  %v4219 = vmul.f32 %v4177, 0.044715
  %v4220 = vmul.f32 %v4180, 0.044715
  %v4221 = vmul.f32 %v4182, 0.044715
  %v4222 = vmul.f32 %v4185, 0.044715
  %v4223 = vmul.f32 %v4187, 0.044715
  %v4224 = vmul.f32 %v4190, 0.044715
  %v4225 = vmul.f32 %v4192, 0.044715
  %v4226 = vmul.f32 %v4210, %v4155
  %v4227 = vmul.f32 %v4211, %v4157
  %v4228 = vmul.f32 %v4212, %v4160
  %v4229 = vmul.f32 %v4213, %v4162
  %v4230 = vmul.f32 %v4214, %v4165
  %v4231 = vmul.f32 %v4215, %v4167
  %v4232 = vmul.f32 %v4216, %v4170
  %v4233 = vmul.f32 %v4217, %v4172
  %v4234 = vmul.f32 %v4218, %v4175
  %v4235 = vmul.f32 %v4219, %v4177
  %v4236 = vmul.f32 %v4220, %v4180
  %v4237 = vmul.f32 %v4221, %v4182
  %v4238 = vmul.f32 %v4222, %v4185
  %v4239 = vmul.f32 %v4223, %v4187
  %v4240 = vmul.f32 %v4224, %v4190
  %v4241 = vmul.f32 %v4225, %v4192
  %v4242 = vmul.f32 %v4226, %v4155
  %v4243 = vmul.f32 %v4227, %v4157
  %v4244 = vmul.f32 %v4228, %v4160
  %v4245 = vmul.f32 %v4229, %v4162
  %v4246 = vmul.f32 %v4230, %v4165
  %v4247 = vmul.f32 %v4231, %v4167
  %v4248 = vmul.f32 %v4232, %v4170
  %v4249 = vmul.f32 %v4233, %v4172
  %v4250 = vmul.f32 %v4234, %v4175
  %v4251 = vmul.f32 %v4235, %v4177
  %v4252 = vmul.f32 %v4236, %v4180
  %v4253 = vmul.f32 %v4237, %v4182
  %v4254 = vmul.f32 %v4238, %v4185
  %v4255 = vmul.f32 %v4239, %v4187
  %v4256 = vmul.f32 %v4240, %v4190
  %v4257 = vmul.f32 %v4241, %v4192
  %v4258 = vadd.f32 %v4155, %v4242
  %v4259 = vadd.f32 %v4157, %v4243
  %v4260 = vadd.f32 %v4160, %v4244
  %v4261 = vadd.f32 %v4162, %v4245
  %v4262 = vadd.f32 %v4165, %v4246
  %v4263 = vadd.f32 %v4167, %v4247
  %v4264 = vadd.f32 %v4170, %v4248
  %v4265 = vadd.f32 %v4172, %v4249
  %v4266 = vadd.f32 %v4175, %v4250
  %v4267 = vadd.f32 %v4177, %v4251
  %v4268 = vadd.f32 %v4180, %v4252
  %v4269 = vadd.f32 %v4182, %v4253
  %v4270 = vadd.f32 %v4185, %v4254
  %v4271 = vadd.f32 %v4187, %v4255
  %v4272 = vadd.f32 %v4190, %v4256
  %v4273 = vadd.f32 %v4192, %v4257
  %v4274 = vmul.f32 %v4258, 0.7978846
  %v4275 = vmul.f32 %v4259, 0.7978846
  %v4276 = vmul.f32 %v4260, 0.7978846
  %v4277 = vmul.f32 %v4261, 0.7978846
  %v4278 = vmul.f32 %v4262, 0.7978846
  %v4279 = vmul.f32 %v4263, 0.7978846
  %v4280 = vmul.f32 %v4264, 0.7978846
  %v4281 = vmul.f32 %v4265, 0.7978846
  %v4282 = vmul.f32 %v4266, 0.7978846
  %v4283 = vmul.f32 %v4267, 0.7978846
  %v4284 = vmul.f32 %v4268, 0.7978846
  %v4285 = vmul.f32 %v4269, 0.7978846
  %v4286 = vmul.f32 %v4270, 0.7978846
  %v4287 = vmul.f32 %v4271, 0.7978846
  %v4288 = vmul.f32 %v4272, 0.7978846
  %v4289 = vmul.f32 %v4273, 0.7978846
  %v4290 = vtanh.pop %v4274
  %v4291 = vtanh.pop %v4275
  %v4292 = vtanh.pop %v4276
  %v4293 = vtanh.pop %v4277
  %v4294 = vtanh.pop %v4278
  %v4295 = vtanh.pop %v4279
  %v4296 = vtanh.pop %v4280
  %v4297 = vtanh.pop %v4281
  %v4298 = vtanh.pop %v4282
  %v4299 = vtanh.pop %v4283
  %v4300 = vtanh.pop %v4284
  %v4301 = vtanh.pop %v4285
  %v4302 = vtanh.pop %v4286
  %v4303 = vtanh.pop %v4287
  %v4304 = vtanh.pop %v4288
  %v4305 = vtanh.pop %v4289
  %v4306 = vadd.f32 %v4290, 1.0
  %v4307 = vadd.f32 %v4291, 1.0
  %v4308 = vadd.f32 %v4292, 1.0
  %v4309 = vadd.f32 %v4293, 1.0
  %v4310 = vadd.f32 %v4294, 1.0
  %v4311 = vadd.f32 %v4295, 1.0
  %v4312 = vadd.f32 %v4296, 1.0
  %v4313 = vadd.f32 %v4297, 1.0
  %v4314 = vadd.f32 %v4298, 1.0
  %v4315 = vadd.f32 %v4299, 1.0
  %v4316 = vadd.f32 %v4300, 1.0
  %v4317 = vadd.f32 %v4301, 1.0
  %v4318 = vadd.f32 %v4302, 1.0
  %v4319 = vadd.f32 %v4303, 1.0
  %v4320 = vadd.f32 %v4304, 1.0
  %v4321 = vadd.f32 %v4305, 1.0
  %v4322 = vmul.f32 %v4194, %v4306
  %v4323 = vmul.f32 %v4195, %v4307
  %v4324 = vmul.f32 %v4196, %v4308
  %v4325 = vmul.f32 %v4197, %v4309
  %v4326 = vmul.f32 %v4198, %v4310
  %v4327 = vmul.f32 %v4199, %v4311
  %v4328 = vmul.f32 %v4200, %v4312
  %v4329 = vmul.f32 %v4201, %v4313
  %v4330 = vmul.f32 %v4202, %v4314
  %v4331 = vmul.f32 %v4203, %v4315
  %v4332 = vmul.f32 %v4204, %v4316
  %v4333 = vmul.f32 %v4205, %v4317
  %v4334 = vmul.f32 %v4206, %v4318
  %v4335 = vmul.f32 %v4207, %v4319
  %v4336 = vmul.f32 %v4208, %v4320
  %v4337 = vmul.f32 %v4209, %v4321
  %v4338 = vpack.c.bf16 %v4323, %v4322
  %v4339 = vpack.c.bf16 %v4325, %v4324
  %v4340 = vpack.c.bf16 %v4327, %v4326
  %v4341 = vpack.c.bf16 %v4329, %v4328
  %v4342 = vpack.c.bf16 %v4331, %v4330
  %v4343 = vpack.c.bf16 %v4333, %v4332
  %v4344 = vpack.c.bf16 %v4335, %v4334
  %v4345 = vpack.c.bf16 %v4337, %v4336
  %v4346 = vld [vmem:[%s3 + $0x40] sm:$0xf]
  %v4347 = vld [vmem:[%s3 + $0x44] sm:$0xf]
  %v4348 = vld [vmem:[%s3 + $0x48] sm:$0xf]
  %v4349 = vld [vmem:[%s3 + $0x4c] sm:$0xf]
  %v4350 = vld [vmem:[%s3 + $0x50] sm:$0xf]
  %v4351 = vld [vmem:[%s3 + $0x54] sm:$0xf]
  %v4352 = vld [vmem:[%s3 + $0x58] sm:$0xf]
  %v4353 = vld [vmem:[%s3 + $0x5c] sm:$0xf]
  %v4354 = vld [vmem:[%s3 + $0x60] sm:$0xf]
  %v4355 = vld [vmem:[%s3 + $0x64] sm:$0xf]
  %v4356 = vld [vmem:[%s3 + $0x68] sm:$0xf]
  %v4357 = vld [vmem:[%s3 + $0x6c] sm:$0xf]
  %v4358 = vld [vmem:[%s3 + $0x70] sm:$0xf]
  %v4359 = vld [vmem:[%s3 + $0x74] sm:$0xf]
  %v4360 = vld [vmem:[%s3 + $0x78] sm:$0xf]
  %v4361 = vld [vmem:[%s3 + $0x7c] sm:$0xf]
  %v4362 = vld [vmem:[%s2 + $0x68] sm:$0x1]
  %v4363 = vperm.slane %v4362, 0
  %v4380 = vunpack.c.l.b16 %v4346
  %v4381 = vunpack.c.l.b16 %v4347
  %v4382 = vunpack.c.l.b16 %v4348
  %v4383 = vunpack.c.l.b16 %v4349
  %v4384 = vunpack.c.l.b16 %v4350
  %v4385 = vunpack.c.l.b16 %v4351
  %v4386 = vunpack.c.l.b16 %v4352
  %v4387 = vunpack.c.l.b16 %v4353
  %v4388 = vunpack.c.l.b16 %v4354
  %v4389 = vunpack.c.l.b16 %v4355
  %v4390 = vunpack.c.l.b16 %v4356
  %v4391 = vunpack.c.l.b16 %v4357
  %v4392 = vunpack.c.l.b16 %v4358
  %v4393 = vunpack.c.l.b16 %v4359
  %v4394 = vunpack.c.l.b16 %v4360
  %v4395 = vunpack.c.l.b16 %v4361
  %v4396 = vpack.c.b16 %v4381, %v4380
  %v4397 = vpack.c.b16 %v4383, %v4382
  %v4398 = vpack.c.b16 %v4385, %v4384
  %v4399 = vpack.c.b16 %v4387, %v4386
  %v4400 = vpack.c.b16 %v4389, %v4388
  %v4401 = vpack.c.b16 %v4391, %v4390
  %v4402 = vpack.c.b16 %v4393, %v4392
  %v4403 = vpack.c.b16 %v4395, %v4394
  %4412 = vmatpush.bf16.msra.mxu0 %v4403
  %4413 = vmatpush.bf16.msra.mxu0 %v4402
  %4414 = vmatpush.bf16.msra.mxu0 %v4401
  %4415 = vmatpush.bf16.msra.mxu0 %v4400
  %4416 = vmatpush.bf16.msra.mxu0 %v4399
  %4417 = vmatpush.bf16.msra.mxu0 %v4398
  %4418 = vmatpush.bf16.msra.mxu0 %v4397
  %4419 = vmatpush.bf16.msra.mxu0 %v4396
  %4420 = vmatmul.bf16.gmra.mxu0 %v4338
  %v4421 = vpop.f32.mrf.mxu0
  %v4422 = vadd.f32 %v4363, %v4421
  %v4423 = vpop.f32.mrf.mxu0
  %v4424 = vadd.f32 %v4363, %v4423
  %4425 = vmatmul.bf16.gmra.mxu0 %v4339
  %v4426 = vpop.f32.mrf.mxu0
  %v4427 = vadd.f32 %v4363, %v4426
  %v4428 = vpop.f32.mrf.mxu0
  %v4429 = vadd.f32 %v4363, %v4428
  %4430 = vmatmul.bf16.gmra.mxu0 %v4340
  %v4431 = vpop.f32.mrf.mxu0
  %v4432 = vadd.f32 %v4363, %v4431
  %v4433 = vpop.f32.mrf.mxu0
  %v4434 = vadd.f32 %v4363, %v4433
  %4435 = vmatmul.bf16.gmra.mxu0 %v4341
  %v4436 = vpop.f32.mrf.mxu0
  %v4437 = vadd.f32 %v4363, %v4436
  %v4438 = vpop.f32.mrf.mxu0
  %v4439 = vadd.f32 %v4363, %v4438
  %4440 = vmatmul.bf16.gmra.mxu0 %v4342
  %v4441 = vpop.f32.mrf.mxu0
  %v4442 = vadd.f32 %v4363, %v4441
  %v4443 = vpop.f32.mrf.mxu0
  %v4444 = vadd.f32 %v4363, %v4443
  %4445 = vmatmul.bf16.gmra.mxu0 %v4343
  %v4446 = vpop.f32.mrf.mxu0
  %v4447 = vadd.f32 %v4363, %v4446
  %v4448 = vpop.f32.mrf.mxu0
  %v4449 = vadd.f32 %v4363, %v4448
  %4450 = vmatmul.bf16.gmra.mxu0 %v4344
  %v4451 = vpop.f32.mrf.mxu0
  %v4452 = vadd.f32 %v4363, %v4451
  %v4453 = vpop.f32.mrf.mxu0
  %v4454 = vadd.f32 %v4363, %v4453
  %4455 = vmatmul.bf16.gmra.mxu0 %v4345
  %v4456 = vpop.f32.mrf.mxu0
  %v4457 = vadd.f32 %v4363, %v4456
  %v4458 = vpop.f32.mrf.mxu0
  %v4459 = vadd.f32 %v4363, %v4458
  %4460 = vdwg.mxu0
  %v4461 = vadd.f32 %v3691, %v4422
  %v4462 = vadd.f32 %v3692, %v4424
  %v4463 = vadd.f32 %v3693, %v4427
  %v4464 = vadd.f32 %v3694, %v4429
  %v4465 = vadd.f32 %v3695, %v4432
  %v4466 = vadd.f32 %v3696, %v4434
  %v4467 = vadd.f32 %v3697, %v4437
  %v4468 = vadd.f32 %v3698, %v4439
  %v4469 = vadd.f32 %v3699, %v4442
  %v4470 = vadd.f32 %v3700, %v4444
  %v4471 = vadd.f32 %v3701, %v4447
  %v4472 = vadd.f32 %v3702, %v4449
  %v4473 = vadd.f32 %v3703, %v4452
  %v4474 = vadd.f32 %v3704, %v4454
  %v4475 = vadd.f32 %v3705, %v4457
  %v4476 = vadd.f32 %v3706, %v4459
  %4477 = vst.msk [vmem:[%s5] sm:$0xff] %vm43, %v4461
  %4478 = vst.msk [vmem:[%s5 + $0x8] sm:$0xff] %vm43, %v4462
  %4479 = vst.msk [vmem:[%s5 + $0x10] sm:$0xff] %vm43, %v4463
  %4480 = vst.msk [vmem:[%s5 + $0x18] sm:$0xff] %vm43, %v4464
  %4481 = vst.msk [vmem:[%s5 + $0x20] sm:$0xff] %vm43, %v4465
  %4482 = vst.msk [vmem:[%s5 + $0x28] sm:$0xff] %vm43, %v4466
  %4483 = vst.msk [vmem:[%s5 + $0x30] sm:$0xff] %vm43, %v4467
  %4484 = vst.msk [vmem:[%s5 + $0x38] sm:$0xff] %vm43, %v4468
  %4485 = vst.msk [vmem:[%s5 + $0x40] sm:$0xff] %vm43, %v4469
  %4486 = vst.msk [vmem:[%s5 + $0x48] sm:$0xff] %vm43, %v4470
  %4487 = vst.msk [vmem:[%s5 + $0x50] sm:$0xff] %vm43, %v4471
  %4488 = vst.msk [vmem:[%s5 + $0x58] sm:$0xff] %vm43, %v4472
  %4489 = vst.msk [vmem:[%s5 + $0x60] sm:$0xff] %vm43, %v4473
  %4490 = vst.msk [vmem:[%s5 + $0x68] sm:$0xff] %vm43, %v4474
  %4491 = vst.msk [vmem:[%s5 + $0x70] sm:$0xff] %vm43, %v4475
  %4492 = vst.msk [vmem:[%s5 + $0x78] sm:$0xff] %vm43, %v4476
  // Predicated region
  $region22: #{tpu_custom_call.1} parent=0 // pred_check
    _
  $region23: #{tpu_custom_call.1} parent=0 // pred_check_branch
    %4494 = sbr.rel (0) target = $region25
  $region24: #{tpu_custom_call.1} parent=0 // pred_region
    _
  $region25: #{tpu_custom_call.1} parent=0 // pred_fallthru
    _
  // Predicated region
  $region26: #{tpu_custom_call.1} parent=0 // pred_check
    _
  $region27: #{tpu_custom_call.1} parent=0 // pred_check_branch
    %4496 = sbr.rel (0) target = $region29
  $region28: #{tpu_custom_call.1} parent=0 // pred_region
    _
  $region29: #{tpu_custom_call.1} parent=0 // pred_fallthru
    _

</llo_original>
